<compile_context>
chip_gen: v7x
topology: tpu7x:2x2x1
jax: 0.10.0
libtpu: 0.0.40
codegen_flags: <defaults>
</compile_context>

<pallas_src>
import functools

import jax
import jax.numpy as jnp
from jax.experimental import pallas as pl
from jax.experimental.pallas import tpu as pltpu


# ---------------------------------------------------------------------------
# helpers
# ---------------------------------------------------------------------------

def _round_up(n, m):
    return ((n + m - 1) // m) * m


def _row_tile(m, cap):
    # whole extent if it fits (block == full dim is always legal), else the
    # cap (a multiple of 8) with a masked partial tail block.
    return m if m <= cap else cap


# ---------------------------------------------------------------------------
# Pallas kernels
# ---------------------------------------------------------------------------

def _matmul_bias_relu_kernel(x_ref, w_ref, b_ref, o_ref):
    # y = relu(x @ w + b); bf16 operands on the MXU, f32 accumulate + epilogue.
    y = jnp.dot(x_ref[...], w_ref[...], preferred_element_type=jnp.float32)
    y = jnp.maximum(y + b_ref[...], 0.0)
    o_ref[...] = y.astype(o_ref.dtype)


def _max4_kernel(a_ref, b_ref, c_ref, d_ref, o_ref):
    # elementwise max of the 4 quadrants of a 2x2 max-pool window
    o_ref[...] = jnp.maximum(
        jnp.maximum(a_ref[...], b_ref[...]),
        jnp.maximum(c_ref[...], d_ref[...]),
    )


def _fc_tail_kernel(x_ref, w0_ref, b0_ref, w1_ref, b1_ref, w2_ref, b2_ref,
                    logp_ref, x1_ref, *, num_classes):
    # Fused fc0 -> relu -> fc1 -> relu -> fc2 -> masked log_softmax.
    # All weights are lane-padded to 128 and resident in VMEM; the (B, 400)
    # activation never leaves vregs/VMEM between layers.
    x = x_ref[...]                                                   # (TM, 400) bf16

    x1 = jnp.dot(x, w0_ref[...], preferred_element_type=jnp.float32)
    x1 = jnp.maximum(x1 + b0_ref[...], 0.0)                          # (TM, 128) f32

    h = jnp.dot(x1.astype(jnp.bfloat16), w1_ref[...],
                preferred_element_type=jnp.float32)
    h = jnp.maximum(h + b1_ref[...], 0.0)                            # (TM, 128) f32

    logits = jnp.dot(h.astype(jnp.bfloat16), w2_ref[...],
                     preferred_element_type=jnp.float32)
    logits = logits + b2_ref[...]                                    # (TM, NP) f32

    # log_softmax over the first `num_classes` lanes only (rest are padding).
    mask = jax.lax.broadcasted_iota(jnp.int32, logits.shape, 1) < num_classes
    neg = jnp.finfo(jnp.float32).min
    m = jnp.max(jnp.where(mask, logits, neg), axis=-1, keepdims=True)
    z = logits - m
    e = jnp.where(mask, jnp.exp(z), 0.0)
    lse = jnp.log(jnp.sum(e, axis=-1, keepdims=True))

    logp_ref[...] = (z - lse).astype(logp_ref.dtype)
    x1_ref[...] = x1.astype(x1_ref.dtype)


# ---------------------------------------------------------------------------
# Pallas wrappers
# ---------------------------------------------------------------------------

def conv_matmul_relu(x, w_pad, b_pad, *, cap=512):
    """relu(x @ w_pad + b_pad) with M-tiled, pipelined, parallel grid.

    x: (M, K) (cast to bf16), w_pad: (K, Npad) bf16 resident,
    b_pad: (1, Npad) f32 resident. Output: (M, Npad) f32, lane-dense.
    """
    M, K = x.shape
    Kw, Np = w_pad.shape
    assert K == Kw
    tm = _row_tile(M, cap)
    return pl.pallas_call(
        _matmul_bias_relu_kernel,
        out_shape=jax.ShapeDtypeStruct((M, Np), jnp.float32),
        grid=(pl.cdiv(M, tm),),
        in_specs=[
            pl.BlockSpec((tm, K), lambda i: (i, 0)),
            pl.BlockSpec((K, Np), lambda i: (0, 0)),   # resident weights
            pl.BlockSpec((1, Np), lambda i: (0, 0)),   # resident bias
        ],
        out_specs=pl.BlockSpec((tm, Np), lambda i: (i, 0)),
        compiler_params=pltpu.CompilerParams(
            dimension_semantics=("parallel",)),
    )(x.astype(jnp.bfloat16), w_pad, b_pad)


def maxpool2x2(x):
    """2x2 max-pool on NHWC. C is the padded (multiple-of-128) channel dim, so
    the elementwise kernel sees lane-dense (rows, Wo*C) slabs."""
    B, H, W, C = x.shape
    Ho, Wo = H // 2, W // 2
    a = x[:, 0::2, 0::2, :].reshape(B * Ho, Wo * C)
    b = x[:, 0::2, 1::2, :].reshape(B * Ho, Wo * C)
    c = x[:, 1::2, 0::2, :].reshape(B * Ho, Wo * C)
    d = x[:, 1::2, 1::2, :].reshape(B * Ho, Wo * C)
    M, N = a.shape
    tm = _row_tile(M, 256)
    out = pl.pallas_call(
        _max4_kernel,
        out_shape=jax.ShapeDtypeStruct((M, N), x.dtype),
        grid=(pl.cdiv(M, tm),),
        in_specs=[pl.BlockSpec((tm, N), lambda i: (i, 0))] * 4,
        out_specs=pl.BlockSpec((tm, N), lambda i: (i, 0)),
        compiler_params=pltpu.CompilerParams(
            dimension_semantics=("parallel",)),
    )(a, b, c, d)
    return out.reshape(B, Ho, Wo, C)


def fc_tail(x_flat, prep, num_classes):
    """Fused fc0/fc1/fc2 + log_softmax. Returns (logp (B,nc), x1 (B,120))."""
    B, K = x_flat.shape
    NP = prep["fc2_w"].shape[1]            # lane-padded class width (>= nc)
    tm = _row_tile(B, 256)
    logp_pad, x1_pad = pl.pallas_call(
        functools.partial(_fc_tail_kernel, num_classes=num_classes),
        out_shape=(jax.ShapeDtypeStruct((B, NP), jnp.float32),
                   jax.ShapeDtypeStruct((B, 128), jnp.float32)),
        grid=(pl.cdiv(B, tm),),
        in_specs=[
            pl.BlockSpec((tm, K), lambda i: (i, 0)),
            pl.BlockSpec(prep["fc0_w"].shape, lambda i: (0, 0)),
            pl.BlockSpec(prep["fc0_b"].shape, lambda i: (0, 0)),
            pl.BlockSpec(prep["fc1_w"].shape, lambda i: (0, 0)),
            pl.BlockSpec(prep["fc1_b"].shape, lambda i: (0, 0)),
            pl.BlockSpec(prep["fc2_w"].shape, lambda i: (0, 0)),
            pl.BlockSpec(prep["fc2_b"].shape, lambda i: (0, 0)),
        ],
        out_specs=(pl.BlockSpec((tm, NP), lambda i: (i, 0)),
                   pl.BlockSpec((tm, 128), lambda i: (i, 0))),
        compiler_params=pltpu.CompilerParams(
            dimension_semantics=("parallel",)),
    )(x_flat.astype(jnp.bfloat16),
      prep["fc0_w"], prep["fc0_b"],
      prep["fc1_w"], prep["fc1_b"],
      prep["fc2_w"], prep["fc2_b"])
    return logp_pad[:, :num_classes], x1_pad[:, :120]


# ---------------------------------------------------------------------------
# Glue: im2col, parameter setup / preprocessing, full forward
# ---------------------------------------------------------------------------

def im2col(x, k):
    # x: (B, H, W, C) -> patches (B*Ho*Wo, k*k*C), column order (ki, kj, ci)
    B, H, W, C = x.shape
    Ho, Wo = H - k + 1, W - k + 1
    cols = []
    for ki in range(k):
        for kj in range(k):
            cols.append(x[:, ki:ki + Ho, kj:kj + Wo, :])
    patches = jnp.stack(cols, axis=3)               # (B, Ho, Wo, k*k, C)
    return patches.reshape(B * Ho * Wo, k * k * C), (B, Ho, Wo)


def conv_weight_to_mat(w_oihw):
    # torch conv weight (Cout, Cin, K, K) -> matmul matrix (K*K*Cin, Cout)
    Cout, Cin, K, _ = w_oihw.shape
    return jnp.transpose(w_oihw, (2, 3, 1, 0)).reshape(K * K * Cin, Cout)


def init_params(key, num_classes=10):
    ks = jax.random.split(key, 10)
    s = 0.1
    return {
        "conv1_w": jax.random.normal(ks[0], (6, 3, 5, 5), jnp.float32) * s,
        "conv1_b": jax.random.normal(ks[1], (6,), jnp.float32) * s,
        "conv2_w": jax.random.normal(ks[2], (16, 6, 5, 5), jnp.float32) * s,
        "conv2_b": jax.random.normal(ks[3], (16,), jnp.float32) * s,
        "fc0_w": jax.random.normal(ks[4], (120, 400), jnp.float32) * s,
        "fc0_b": jax.random.normal(ks[5], (120,), jnp.float32) * s,
        "fc1_w": jax.random.normal(ks[6], (84, 120), jnp.float32) * s,
        "fc1_b": jax.random.normal(ks[7], (84,), jnp.float32) * s,
        "fc2_w": jax.random.normal(ks[8], (num_classes, 84), jnp.float32) * s,
        "fc2_b": jax.random.normal(ks[9], (num_classes,), jnp.float32) * s,
    }


def prepare_params(params, num_classes):
    """One-time weight preprocessing: transpose, zero-pad lane dims to 128,
    cast matmul operands to bf16 (biases stay f32 for the f32 epilogue)."""
    def pad2(a, rows, cols):
        r, c = a.shape
        return jnp.pad(a, ((0, rows - r), (0, cols - c)))

    NP = _round_up(max(num_classes, 1), 128)
    w1 = conv_weight_to_mat(params["conv1_w"])        # (75, 6)
    w2 = conv_weight_to_mat(params["conv2_w"])        # (150, 16)
    return {
        "conv1_w": pad2(w1, 75, 128).astype(jnp.bfloat16),
        "conv1_b": pad2(params["conv1_b"].reshape(1, -1), 1, 128).astype(jnp.float32),
        "conv2_w": pad2(w2, 150, 128).astype(jnp.bfloat16),
        "conv2_b": pad2(params["conv2_b"].reshape(1, -1), 1, 128).astype(jnp.float32),
        "fc0_w": pad2(params["fc0_w"].T, 400, 128).astype(jnp.bfloat16),
        "fc0_b": pad2(params["fc0_b"].reshape(1, -1), 1, 128).astype(jnp.float32),
        "fc1_w": pad2(params["fc1_w"].T, 128, 128).astype(jnp.bfloat16),
        "fc1_b": pad2(params["fc1_b"].reshape(1, -1), 1, 128).astype(jnp.float32),
        "fc2_w": pad2(params["fc2_w"].T, 128, NP).astype(jnp.bfloat16),
        "fc2_b": pad2(params["fc2_b"].reshape(1, -1), 1, NP).astype(jnp.float32),
    }


def cnn_cifar_forward(x_nchw, prep, num_classes):
    # x_nchw: (B, 3, 32, 32) float32 (torch NCHW convention)
    x = jnp.transpose(x_nchw, (0, 2, 3, 1)).astype(jnp.bfloat16)   # NHWC bf16

    # conv1 (3->6, k=5) + ReLU, output lane-padded to 128 channels
    p, (B, Ho, Wo) = im2col(x, 5)                                  # (B*784, 75)
    h = conv_matmul_relu(p, prep["conv1_w"], prep["conv1_b"])      # (B*784, 128)
    h = h.reshape(B, Ho, Wo, 128)
    h = maxpool2x2(h)                                              # (B,14,14,128)
    h = h[..., :6].astype(jnp.bfloat16)                            # drop pad channels

    # conv2 (6->16, k=5) + ReLU
    p, (B, Ho, Wo) = im2col(h, 5)                                  # (B*100, 150)
    h = conv_matmul_relu(p, prep["conv2_w"], prep["conv2_b"])      # (B*100, 128)
    h = h.reshape(B, Ho, Wo, 128)
    h = maxpool2x2(h)                                              # (B,5,5,128)
    h = h[..., :16]                                                # (B,5,5,16)

    # flatten in torch NCHW order: (B, C, H, W) -> (B, 400)
    flat = jnp.transpose(h, (0, 3, 1, 2)).reshape(B, 16 * 5 * 5)

    # fused fc0/fc1/fc2 + log_softmax
    logp, x1 = fc_tail(flat, prep, num_classes)
    return logp, x1


if __name__ == "__main__":
    key = jax.random.PRNGKey(0)
    k_param, k_x = jax.random.split(key)
    num_classes = 10

    params = init_params(k_param, num_classes=num_classes)
    prep = prepare_params(params, num_classes)      # one-time, outside the jit

    # CIFAR-shaped input; 32x32 is required by the fixed 16*5*5 flatten.
    x = jax.random.normal(k_x, (2, 3, 32, 32), jnp.float32)

    fwd = jax.jit(cnn_cifar_forward, static_argnames=("num_classes",))
    logp, x1 = fwd(x, prep, num_classes=num_classes)
    jax.block_until_ready((logp, x1))

    assert logp.shape == (2, num_classes)
    assert x1.shape == (2, 120)
    # log_softmax rows should exp-sum to 1
    assert jnp.allclose(jnp.exp(logp).sum(axis=1), 1.0, atol=1e-4)

    print("KERNEL_OK")
</pallas_src>

<mosaic_0001>
module attributes {stable_mosaic.version = 11 : i64} {
  func.func @_matmul_bias_relu_kernel(%arg0: i32, %arg1: memref<512x75xbf16, #tpu.memory_space<vmem>>, %arg2: memref<75x128xbf16, #tpu.memory_space<vmem>>, %arg3: memref<1x128xf32, #tpu.memory_space<vmem>>, %arg4: memref<512x128xf32, #tpu.memory_space<vmem>>) attributes {dimension_semantics = [#tpu.dimension_semantics<parallel>], iteration_bounds = array<i64: 4>, scalar_prefetch = 0 : i64, scratch_operands = 0 : i64, tpu.core_type = #tpu.core_type<tc>, window_params = [{transform_indices = @transform_0, window_bounds = array<i64: 512, 75>}, {pipeline_mode = #tpu.pipeline_mode<synchronous>, transform_indices = @transform_1, window_bounds = array<i64: 75, 128>}, {pipeline_mode = #tpu.pipeline_mode<synchronous>, transform_indices = @transform_2, window_bounds = array<i64: 1, 128>}, {transform_indices = @transform_3, window_bounds = array<i64: 512, 128>}]} {
    %c0 = arith.constant 0 : index
    %c0_0 = arith.constant 0 : index
    %0 = vector.load %arg1[%c0, %c0_0] : memref<512x75xbf16, #tpu.memory_space<vmem>>, vector<512x75xbf16>
    %c0_1 = arith.constant 0 : index
    %c0_2 = arith.constant 0 : index
    %1 = vector.load %arg2[%c0_1, %c0_2] : memref<75x128xbf16, #tpu.memory_space<vmem>>, vector<75x128xbf16>
    %cst = arith.constant dense<0.000000e+00> : vector<512x128xf32>
    %2 = tpu.matmul %0, %1, %cst {dimension_numbers = #tpu.dot_dimension_numbers<[1], [0], [0], [1], [0, 0, 1, 1], [], []>} : vector<512x75xbf16>, vector<75x128xbf16>, vector<512x128xf32> -> vector<512x128xf32>
    %c0_3 = arith.constant 0 : index
    %c0_4 = arith.constant 0 : index
    %3 = vector.load %arg3[%c0_3, %c0_4] : memref<1x128xf32, #tpu.memory_space<vmem>>, vector<1x128xf32>
    %4 = vector.broadcast %3 : vector<1x128xf32> to vector<512x128xf32>
    %5 = arith.addf %2, %4 : vector<512x128xf32>
    %cst_5 = arith.constant 0.000000e+00 : f32
    %6 = vector.broadcast %cst_5 : f32 to vector<512x128xf32>
    %7 = arith.maximumf %5, %6 : vector<512x128xf32>
    %c0_6 = arith.constant 0 : index
    %c0_7 = arith.constant 0 : index
    %8 = vector.load %arg4[%c0_6, %c0_7] : memref<512x128xf32, #tpu.memory_space<vmem>>, vector<512x128xf32>
    tpu.vector_store %arg4[%c0_6, %c0_7], %7 {strides = array<i32>} : memref<512x128xf32, #tpu.memory_space<vmem>>, vector<512x128xf32>,
    return
  }
  func.func @transform_0(%arg0: i32) -> (i32, i32) {
    %c0_i32 = arith.constant 0 : i32
    %c0_i32_0 = arith.constant 0 : i32
    return %arg0, %c0_i32 : i32, i32
  }
  func.func @transform_1(%arg0: i32) -> (i32, i32) {
    %c0_i32 = arith.constant 0 : i32
    %c0_i32_0 = arith.constant 0 : i32
    %c0_i32_1 = arith.constant 0 : i32
    return %c0_i32, %c0_i32_0 : i32, i32
  }
  func.func @transform_2(%arg0: i32) -> (i32, i32) {
    %c0_i32 = arith.constant 0 : i32
    %c0_i32_0 = arith.constant 0 : i32
    %c0_i32_1 = arith.constant 0 : i32
    return %c0_i32, %c0_i32_0 : i32, i32
  }
  func.func @transform_3(%arg0: i32) -> (i32, i32) {
    %c0_i32 = arith.constant 0 : i32
    %c0_i32_0 = arith.constant 0 : i32
    return %arg0, %c0_i32 : i32, i32
  }
}

module attributes {stable_mosaic.version = 11 : i64} {
  func.func @_max4_kernel(%arg0: i32, %arg1: memref<28x1792xf32, #tpu.memory_space<vmem>>, %arg2: memref<28x1792xf32, #tpu.memory_space<vmem>>, %arg3: memref<28x1792xf32, #tpu.memory_space<vmem>>, %arg4: memref<28x1792xf32, #tpu.memory_space<vmem>>, %arg5: memref<28x1792xf32, #tpu.memory_space<vmem>>) attributes {dimension_semantics = [#tpu.dimension_semantics<parallel>], iteration_bounds = array<i64: 1>, scalar_prefetch = 0 : i64, scratch_operands = 0 : i64, tpu.core_type = #tpu.core_type<tc>, window_params = [{transform_indices = @transform_0, window_bounds = array<i64: 28, 1792>}, {transform_indices = @transform_1, window_bounds = array<i64: 28, 1792>}, {transform_indices = @transform_2, window_bounds = array<i64: 28, 1792>}, {transform_indices = @transform_3, window_bounds = array<i64: 28, 1792>}, {transform_indices = @transform_4, window_bounds = array<i64: 28, 1792>}]} {
    %c0 = arith.constant 0 : index
    %c0_0 = arith.constant 0 : index
    %0 = vector.load %arg1[%c0, %c0_0] : memref<28x1792xf32, #tpu.memory_space<vmem>>, vector<28x1792xf32>
    %c0_1 = arith.constant 0 : index
    %c0_2 = arith.constant 0 : index
    %1 = vector.load %arg2[%c0_1, %c0_2] : memref<28x1792xf32, #tpu.memory_space<vmem>>, vector<28x1792xf32>
    %2 = arith.maximumf %0, %1 : vector<28x1792xf32>
    %c0_3 = arith.constant 0 : index
    %c0_4 = arith.constant 0 : index
    %3 = vector.load %arg3[%c0_3, %c0_4] : memref<28x1792xf32, #tpu.memory_space<vmem>>, vector<28x1792xf32>
    %c0_5 = arith.constant 0 : index
    %c0_6 = arith.constant 0 : index
    %4 = vector.load %arg4[%c0_5, %c0_6] : memref<28x1792xf32, #tpu.memory_space<vmem>>, vector<28x1792xf32>
    %5 = arith.maximumf %3, %4 : vector<28x1792xf32>
    %6 = arith.maximumf %2, %5 : vector<28x1792xf32>
    %c0_7 = arith.constant 0 : index
    %c0_8 = arith.constant 0 : index
    %7 = vector.load %arg5[%c0_7, %c0_8] : memref<28x1792xf32, #tpu.memory_space<vmem>>, vector<28x1792xf32>
    tpu.vector_store %arg5[%c0_7, %c0_8], %6 {strides = array<i32>} : memref<28x1792xf32, #tpu.memory_space<vmem>>, vector<28x1792xf32>,
    return
  }
  func.func @transform_0(%arg0: i32) -> (i32, i32) {
    %c0_i32 = arith.constant 0 : i32
    %c0_i32_0 = arith.constant 0 : i32
    return %arg0, %c0_i32 : i32, i32
  }
  func.func @transform_1(%arg0: i32) -> (i32, i32) {
    %c0_i32 = arith.constant 0 : i32
    %c0_i32_0 = arith.constant 0 : i32
    return %arg0, %c0_i32 : i32, i32
  }
  func.func @transform_2(%arg0: i32) -> (i32, i32) {
    %c0_i32 = arith.constant 0 : i32
    %c0_i32_0 = arith.constant 0 : i32
    return %arg0, %c0_i32 : i32, i32
  }
  func.func @transform_3(%arg0: i32) -> (i32, i32) {
    %c0_i32 = arith.constant 0 : i32
    %c0_i32_0 = arith.constant 0 : i32
    return %arg0, %c0_i32 : i32, i32
  }
  func.func @transform_4(%arg0: i32) -> (i32, i32) {
    %c0_i32 = arith.constant 0 : i32
    %c0_i32_0 = arith.constant 0 : i32
    return %arg0, %c0_i32 : i32, i32
  }
}

module attributes {stable_mosaic.version = 11 : i64} {
  func.func @_matmul_bias_relu_kernel(%arg0: i32, %arg1: memref<200x150xbf16, #tpu.memory_space<vmem>>, %arg2: memref<150x128xbf16, #tpu.memory_space<vmem>>, %arg3: memref<1x128xf32, #tpu.memory_space<vmem>>, %arg4: memref<200x128xf32, #tpu.memory_space<vmem>>) attributes {dimension_semantics = [#tpu.dimension_semantics<parallel>], iteration_bounds = array<i64: 1>, scalar_prefetch = 0 : i64, scratch_operands = 0 : i64, tpu.core_type = #tpu.core_type<tc>, window_params = [{transform_indices = @transform_0, window_bounds = array<i64: 200, 150>}, {pipeline_mode = #tpu.pipeline_mode<synchronous>, transform_indices = @transform_1, window_bounds = array<i64: 150, 128>}, {pipeline_mode = #tpu.pipeline_mode<synchronous>, transform_indices = @transform_2, window_bounds = array<i64: 1, 128>}, {transform_indices = @transform_3, window_bounds = array<i64: 200, 128>}]} {
    %c0 = arith.constant 0 : index
    %c0_0 = arith.constant 0 : index
    %0 = vector.load %arg1[%c0, %c0_0] : memref<200x150xbf16, #tpu.memory_space<vmem>>, vector<200x150xbf16>
    %c0_1 = arith.constant 0 : index
    %c0_2 = arith.constant 0 : index
    %1 = vector.load %arg2[%c0_1, %c0_2] : memref<150x128xbf16, #tpu.memory_space<vmem>>, vector<150x128xbf16>
    %cst = arith.constant dense<0.000000e+00> : vector<200x128xf32>
    %2 = tpu.matmul %0, %1, %cst {dimension_numbers = #tpu.dot_dimension_numbers<[1], [0], [0], [1], [0, 0, 1, 1], [], []>} : vector<200x150xbf16>, vector<150x128xbf16>, vector<200x128xf32> -> vector<200x128xf32>
    %c0_3 = arith.constant 0 : index
    %c0_4 = arith.constant 0 : index
    %3 = vector.load %arg3[%c0_3, %c0_4] : memref<1x128xf32, #tpu.memory_space<vmem>>, vector<1x128xf32>
    %4 = vector.broadcast %3 : vector<1x128xf32> to vector<200x128xf32>
    %5 = arith.addf %2, %4 : vector<200x128xf32>
    %cst_5 = arith.constant 0.000000e+00 : f32
    %6 = vector.broadcast %cst_5 : f32 to vector<200x128xf32>
    %7 = arith.maximumf %5, %6 : vector<200x128xf32>
    %c0_6 = arith.constant 0 : index
    %c0_7 = arith.constant 0 : index
    %8 = vector.load %arg4[%c0_6, %c0_7] : memref<200x128xf32, #tpu.memory_space<vmem>>, vector<200x128xf32>
    tpu.vector_store %arg4[%c0_6, %c0_7], %7 {strides = array<i32>} : memref<200x128xf32, #tpu.memory_space<vmem>>, vector<200x128xf32>,
    return
  }
  func.func @transform_0(%arg0: i32) -> (i32, i32) {
    %c0_i32 = arith.constant 0 : i32
    %c0_i32_0 = arith.constant 0 : i32
    return %arg0, %c0_i32 : i32, i32
  }
  func.func @transform_1(%arg0: i32) -> (i32, i32) {
    %c0_i32 = arith.constant 0 : i32
    %c0_i32_0 = arith.constant 0 : i32
    %c0_i32_1 = arith.constant 0 : i32
    return %c0_i32, %c0_i32_0 : i32, i32
  }
  func.func @transform_2(%arg0: i32) -> (i32, i32) {
    %c0_i32 = arith.constant 0 : i32
    %c0_i32_0 = arith.constant 0 : i32
    %c0_i32_1 = arith.constant 0 : i32
    return %c0_i32, %c0_i32_0 : i32, i32
  }
  func.func @transform_3(%arg0: i32) -> (i32, i32) {
    %c0_i32 = arith.constant 0 : i32
    %c0_i32_0 = arith.constant 0 : i32
    return %arg0, %c0_i32 : i32, i32
  }
}

module attributes {stable_mosaic.version = 11 : i64} {
  func.func @_max4_kernel(%arg0: i32, %arg1: memref<10x640xf32, #tpu.memory_space<vmem>>, %arg2: memref<10x640xf32, #tpu.memory_space<vmem>>, %arg3: memref<10x640xf32, #tpu.memory_space<vmem>>, %arg4: memref<10x640xf32, #tpu.memory_space<vmem>>, %arg5: memref<10x640xf32, #tpu.memory_space<vmem>>) attributes {dimension_semantics = [#tpu.dimension_semantics<parallel>], iteration_bounds = array<i64: 1>, scalar_prefetch = 0 : i64, scratch_operands = 0 : i64, tpu.core_type = #tpu.core_type<tc>, window_params = [{transform_indices = @transform_0, window_bounds = array<i64: 10, 640>}, {transform_indices = @transform_1, window_bounds = array<i64: 10, 640>}, {transform_indices = @transform_2, window_bounds = array<i64: 10, 640>}, {transform_indices = @transform_3, window_bounds = array<i64: 10, 640>}, {transform_indices = @transform_4, window_bounds = array<i64: 10, 640>}]} {
    %c0 = arith.constant 0 : index
    %c0_0 = arith.constant 0 : index
    %0 = vector.load %arg1[%c0, %c0_0] : memref<10x640xf32, #tpu.memory_space<vmem>>, vector<10x640xf32>
    %c0_1 = arith.constant 0 : index
    %c0_2 = arith.constant 0 : index
    %1 = vector.load %arg2[%c0_1, %c0_2] : memref<10x640xf32, #tpu.memory_space<vmem>>, vector<10x640xf32>
    %2 = arith.maximumf %0, %1 : vector<10x640xf32>
    %c0_3 = arith.constant 0 : index
    %c0_4 = arith.constant 0 : index
    %3 = vector.load %arg3[%c0_3, %c0_4] : memref<10x640xf32, #tpu.memory_space<vmem>>, vector<10x640xf32>
    %c0_5 = arith.constant 0 : index
    %c0_6 = arith.constant 0 : index
    %4 = vector.load %arg4[%c0_5, %c0_6] : memref<10x640xf32, #tpu.memory_space<vmem>>, vector<10x640xf32>
    %5 = arith.maximumf %3, %4 : vector<10x640xf32>
    %6 = arith.maximumf %2, %5 : vector<10x640xf32>
    %c0_7 = arith.constant 0 : index
    %c0_8 = arith.constant 0 : index
    %7 = vector.load %arg5[%c0_7, %c0_8] : memref<10x640xf32, #tpu.memory_space<vmem>>, vector<10x640xf32>
    tpu.vector_store %arg5[%c0_7, %c0_8], %6 {strides = array<i32>} : memref<10x640xf32, #tpu.memory_space<vmem>>, vector<10x640xf32>,
    return
  }
  func.func @transform_0(%arg0: i32) -> (i32, i32) {
    %c0_i32 = arith.constant 0 : i32
    %c0_i32_0 = arith.constant 0 : i32
    return %arg0, %c0_i32 : i32, i32
  }
  func.func @transform_1(%arg0: i32) -> (i32, i32) {
    %c0_i32 = arith.constant 0 : i32
    %c0_i32_0 = arith.constant 0 : i32
    return %arg0, %c0_i32 : i32, i32
  }
  func.func @transform_2(%arg0: i32) -> (i32, i32) {
    %c0_i32 = arith.constant 0 : i32
    %c0_i32_0 = arith.constant 0 : i32
    return %arg0, %c0_i32 : i32, i32
  }
  func.func @transform_3(%arg0: i32) -> (i32, i32) {
    %c0_i32 = arith.constant 0 : i32
    %c0_i32_0 = arith.constant 0 : i32
    return %arg0, %c0_i32 : i32, i32
  }
  func.func @transform_4(%arg0: i32) -> (i32, i32) {
    %c0_i32 = arith.constant 0 : i32
    %c0_i32_0 = arith.constant 0 : i32
    return %arg0, %c0_i32 : i32, i32
  }
}

module attributes {stable_mosaic.version = 11 : i64} {
  func.func @_fc_tail_kernel(%arg0: i32, %arg1: memref<2x400xbf16, #tpu.memory_space<vmem>>, %arg2: memref<400x128xbf16, #tpu.memory_space<vmem>>, %arg3: memref<1x128xf32, #tpu.memory_space<vmem>>, %arg4: memref<128x128xbf16, #tpu.memory_space<vmem>>, %arg5: memref<1x128xf32, #tpu.memory_space<vmem>>, %arg6: memref<128x128xbf16, #tpu.memory_space<vmem>>, %arg7: memref<1x128xf32, #tpu.memory_space<vmem>>, %arg8: memref<2x128xf32, #tpu.memory_space<vmem>>, %arg9: memref<2x128xf32, #tpu.memory_space<vmem>>) attributes {dimension_semantics = [#tpu.dimension_semantics<parallel>], iteration_bounds = array<i64: 1>, scalar_prefetch = 0 : i64, scratch_operands = 0 : i64, tpu.core_type = #tpu.core_type<tc>, window_params = [{transform_indices = @transform_0, window_bounds = array<i64: 2, 400>}, {pipeline_mode = #tpu.pipeline_mode<synchronous>, transform_indices = @transform_1, window_bounds = array<i64: 400, 128>}, {pipeline_mode = #tpu.pipeline_mode<synchronous>, transform_indices = @transform_2, window_bounds = array<i64: 1, 128>}, {pipeline_mode = #tpu.pipeline_mode<synchronous>, transform_indices = @transform_3, window_bounds = array<i64: 128, 128>}, {pipeline_mode = #tpu.pipeline_mode<synchronous>, transform_indices = @transform_4, window_bounds = array<i64: 1, 128>}, {pipeline_mode = #tpu.pipeline_mode<synchronous>, transform_indices = @transform_5, window_bounds = array<i64: 128, 128>}, {pipeline_mode = #tpu.pipeline_mode<synchronous>, transform_indices = @transform_6, window_bounds = array<i64: 1, 128>}, {transform_indices = @transform_7, window_bounds = array<i64: 2, 128>}, {transform_indices = @transform_8, window_bounds = array<i64: 2, 128>}]} {
    %c0 = arith.constant 0 : index
    %c0_0 = arith.constant 0 : index
    %0 = vector.load %arg1[%c0, %c0_0] : memref<2x400xbf16, #tpu.memory_space<vmem>>, vector<2x400xbf16>
    %c0_1 = arith.constant 0 : index
    %c0_2 = arith.constant 0 : index
    %1 = vector.load %arg2[%c0_1, %c0_2] : memref<400x128xbf16, #tpu.memory_space<vmem>>, vector<400x128xbf16>
    %cst = arith.constant dense<0.000000e+00> : vector<2x128xf32>
    %2 = tpu.matmul %0, %1, %cst {dimension_numbers = #tpu.dot_dimension_numbers<[1], [0], [0], [1], [0, 0, 1, 1], [], []>} : vector<2x400xbf16>, vector<400x128xbf16>, vector<2x128xf32> -> vector<2x128xf32>
    %c0_3 = arith.constant 0 : index
    %c0_4 = arith.constant 0 : index
    %3 = vector.load %arg3[%c0_3, %c0_4] : memref<1x128xf32, #tpu.memory_space<vmem>>, vector<1x128xf32>
    %4 = vector.broadcast %3 : vector<1x128xf32> to vector<2x128xf32>
    %5 = arith.addf %2, %4 : vector<2x128xf32>
    %cst_5 = arith.constant 0.000000e+00 : f32
    %6 = vector.broadcast %cst_5 : f32 to vector<2x128xf32>
    %7 = arith.maximumf %5, %6 : vector<2x128xf32>
    %8 = arith.truncf %7 : vector<2x128xf32> to vector<2x128xbf16>
    %c0_6 = arith.constant 0 : index
    %c0_7 = arith.constant 0 : index
    %9 = vector.load %arg4[%c0_6, %c0_7] : memref<128x128xbf16, #tpu.memory_space<vmem>>, vector<128x128xbf16>
    %cst_8 = arith.constant dense<0.000000e+00> : vector<2x128xf32>
    %10 = tpu.matmul %8, %9, %cst_8 {dimension_numbers = #tpu.dot_dimension_numbers<[1], [0], [0], [1], [0, 0, 1, 1], [], []>} : vector<2x128xbf16>, vector<128x128xbf16>, vector<2x128xf32> -> vector<2x128xf32>
    %c0_9 = arith.constant 0 : index
    %c0_10 = arith.constant 0 : index
    %11 = vector.load %arg5[%c0_9, %c0_10] : memref<1x128xf32, #tpu.memory_space<vmem>>, vector<1x128xf32>
    %12 = vector.broadcast %11 : vector<1x128xf32> to vector<2x128xf32>
    %13 = arith.addf %10, %12 : vector<2x128xf32>
    %cst_11 = arith.constant 0.000000e+00 : f32
    %14 = vector.broadcast %cst_11 : f32 to vector<2x128xf32>
    %15 = arith.maximumf %13, %14 : vector<2x128xf32>
    %16 = arith.truncf %15 : vector<2x128xf32> to vector<2x128xbf16>
    %c0_12 = arith.constant 0 : index
    %c0_13 = arith.constant 0 : index
    %17 = vector.load %arg6[%c0_12, %c0_13] : memref<128x128xbf16, #tpu.memory_space<vmem>>, vector<128x128xbf16>
    %cst_14 = arith.constant dense<0.000000e+00> : vector<2x128xf32>
    %18 = tpu.matmul %16, %17, %cst_14 {dimension_numbers = #tpu.dot_dimension_numbers<[1], [0], [0], [1], [0, 0, 1, 1], [], []>} : vector<2x128xbf16>, vector<128x128xbf16>, vector<2x128xf32> -> vector<2x128xf32>
    %c0_15 = arith.constant 0 : index
    %c0_16 = arith.constant 0 : index
    %19 = vector.load %arg7[%c0_15, %c0_16] : memref<1x128xf32, #tpu.memory_space<vmem>>, vector<1x128xf32>
    %20 = vector.broadcast %19 : vector<1x128xf32> to vector<2x128xf32>
    %21 = arith.addf %18, %20 : vector<2x128xf32>
    %22 = tpu.iota {dimensions = array<i32: 1>} : vector<2x128xi32>
    %c10_i32 = arith.constant 10 : i32
    %23 = vector.broadcast %c10_i32 : i32 to vector<2x128xi32>
    %24 = arith.cmpi slt, %22, %23 : vector<2x128xi32>
    %cst_17 = arith.constant -3.40282347E+38 : f32
    %25 = vector.broadcast %cst_17 : f32 to vector<2x128xf32>
    %26 = arith.select %24, %21, %25 : vector<2x128xi1>, vector<2x128xf32>
    %cst_18 = arith.constant dense<0xFF800000> : vector<2xf32>
    %27 = vector.multi_reduction <maximumf>, %26, %cst_18 [1] : vector<2x128xf32> to vector<2xf32>
    %28 = vector.shape_cast %27 : vector<2xf32> to vector<2x1xf32>
    %29 = vector.broadcast %28 : vector<2x1xf32> to vector<2x128xf32>
    %30 = arith.subf %21, %29 : vector<2x128xf32>
    %31 = math.exp %30 : vector<2x128xf32>
    %cst_19 = arith.constant 0.000000e+00 : f32
    %32 = vector.broadcast %cst_19 : f32 to vector<2x128xf32>
    %33 = arith.select %24, %31, %32 : vector<2x128xi1>, vector<2x128xf32>
    %cst_20 = arith.constant dense<0.000000e+00> : vector<2xf32>
    %34 = vector.multi_reduction <add>, %33, %cst_20 [1] : vector<2x128xf32> to vector<2xf32>
    %35 = vector.shape_cast %34 : vector<2xf32> to vector<2x1xf32>
    %36 = math.log %35 : vector<2x1xf32>
    %37 = vector.broadcast %36 : vector<2x1xf32> to vector<2x128xf32>
    %38 = arith.subf %30, %37 : vector<2x128xf32>
    %c0_21 = arith.constant 0 : index
    %c0_22 = arith.constant 0 : index
    %39 = vector.load %arg8[%c0_21, %c0_22] : memref<2x128xf32, #tpu.memory_space<vmem>>, vector<2x128xf32>
    tpu.vector_store %arg8[%c0_21, %c0_22], %38 {strides = array<i32>} : memref<2x128xf32, #tpu.memory_space<vmem>>, vector<2x128xf32>,
    %c0_23 = arith.constant 0 : index
    %c0_24 = arith.constant 0 : index
    %40 = vector.load %arg9[%c0_23, %c0_24] : memref<2x128xf32, #tpu.memory_space<vmem>>, vector<2x128xf32>
    tpu.vector_store %arg9[%c0_23, %c0_24], %7 {strides = array<i32>} : memref<2x128xf32, #tpu.memory_space<vmem>>, vector<2x128xf32>,
    return
  }
  func.func @transform_0(%arg0: i32) -> (i32, i32) {
    %c0_i32 = arith.constant 0 : i32
    %c0_i32_0 = arith.constant 0 : i32
    return %arg0, %c0_i32 : i32, i32
  }
  func.func @transform_1(%arg0: i32) -> (i32, i32) {
    %c0_i32 = arith.constant 0 : i32
    %c0_i32_0 = arith.constant 0 : i32
    %c0_i32_1 = arith.constant 0 : i32
    return %c0_i32, %c0_i32_0 : i32, i32
  }
  func.func @transform_2(%arg0: i32) -> (i32, i32) {
    %c0_i32 = arith.constant 0 : i32
    %c0_i32_0 = arith.constant 0 : i32
    %c0_i32_1 = arith.constant 0 : i32
    return %c0_i32, %c0_i32_0 : i32, i32
  }
  func.func @transform_3(%arg0: i32) -> (i32, i32) {
    %c0_i32 = arith.constant 0 : i32
    %c0_i32_0 = arith.constant 0 : i32
    %c0_i32_1 = arith.constant 0 : i32
    return %c0_i32, %c0_i32_0 : i32, i32
  }
  func.func @transform_4(%arg0: i32) -> (i32, i32) {
    %c0_i32 = arith.constant 0 : i32
    %c0_i32_0 = arith.constant 0 : i32
    %c0_i32_1 = arith.constant 0 : i32
    return %c0_i32, %c0_i32_0 : i32, i32
  }
  func.func @transform_5(%arg0: i32) -> (i32, i32) {
    %c0_i32 = arith.constant 0 : i32
    %c0_i32_0 = arith.constant 0 : i32
    %c0_i32_1 = arith.constant 0 : i32
    return %c0_i32, %c0_i32_0 : i32, i32
  }
  func.func @transform_6(%arg0: i32) -> (i32, i32) {
    %c0_i32 = arith.constant 0 : i32
    %c0_i32_0 = arith.constant 0 : i32
    %c0_i32_1 = arith.constant 0 : i32
    return %c0_i32, %c0_i32_0 : i32, i32
  }
  func.func @transform_7(%arg0: i32) -> (i32, i32) {
    %c0_i32 = arith.constant 0 : i32
    %c0_i32_0 = arith.constant 0 : i32
    return %arg0, %c0_i32 : i32, i32
  }
  func.func @transform_8(%arg0: i32) -> (i32, i32) {
    %c0_i32 = arith.constant 0 : i32
    %c0_i32_0 = arith.constant 0 : i32
    return %arg0, %c0_i32 : i32, i32
  }
}

</mosaic_0001>

<llo_original>
// kernel: cnn_cifar_forward.5
$region0: #{cnn_cifar_forward.5}
  #allocation0 [shape = 'u32[]', space=smem, size = 0x4, offset = 0x4, fixed_abs, tag = 'smem constant byte address 0x4 - core index']
  #allocation1 [shape = 'u32[144,128]{1,0:T(1,128)}', space=vmem, size = 0x12000, scoped, tag = 'internal scratch']
  %s0 = inlined_call_operand.vmem [shape: bf16[1568,75], index: 0, kind: input, shape index: {}]
  %s1 = inlined_call_operand.vmem [shape: bf16[75,128], index: 1, kind: input, shape index: {}]
  %s2 = inlined_call_operand.vmem [shape: f32[1,128], index: 2, kind: input, shape index: {}]
  %s3 = inlined_call_operand.vmem [shape: f32[1568,128], index: 3, kind: output, shape index: {}]
  %s4 = sld [smem:[#allocation0]]
  $region93: #{cnn_cifar_forward.5} parent=0
    _
  %s6 = ssub.s32 1, %s4
  %s7 = scalar_select 0, %s6, %s4
  $region1: #{cnn_cifar_forward.5} parent=0
    #allocation2 [shape = 'u8[524288]{0}', space=vmem, size = 0x80000, scoped, tag = 'output window, operand 0']
    loop: start=0, step=1, limit=6
    $region2: #{cnn_cifar_forward.5} parent=1 // loop_pre_header
      _
    $region3: #{cnn_cifar_forward.5} parent=1 // loop_header
      %s9 = sphi 0, %s13
      %p10 = scmp.ge.s32.totalorder %s9, 6
      %s19 = sphi 0, %s21
      %s22 = sphi 0, %s19
      %s23 = sphi 0, %s22
      %s39 = sphi 0, %s23
      %s43 = sphi 0, %s43
      %s45 = sphi 0, %s43
      %s46 = sphi 0, %s45
      %s60 = sphi 0, %s46
      %s64 = sphi 0, %s64
      %s66 = sphi 0, %s64
      %s67 = sphi 0, %s66
      %s81 = sphi 0, %s67
      %s87 = sphi 0, %s89
      %s90 = sphi 0, %s87
      %s91 = sphi 0, %s90
      %s107 = sphi 0, %s91
    $region4: #{cnn_cifar_forward.5} parent=1 // loop_header_branch
      %12 = sbr.rel (%p10) target = $region8
    $region5: #{cnn_cifar_forward.5} parent=1 // loop_body
      %s14 = ssub.s32 %s9, 1
      %s15 = ssub.s32 %s9, 2
      %s16 = sadd.s32 %s9, 1
      %s17 = ssub.s32 %s9, %s16
      %p18 = scmp.eq.s32.totalorder %s17, 0
      %s20 = sadd.s32 %s19, 1
      %s21 = scalar_select %p18, %s19, %s20
      %p24 = pneg %p18
      %p25 = scmp.eq.s32.totalorder %s9, 3
      %p26 = por %p24, %p25
      %p27 = scmp.ne.s32.totalorder %s19, %s22
      %p28 = scmp.eq.s32.totalorder %s9, 0
      %p29 = por %p27, %p28
      %p30 = scmp.ne.s32.totalorder %s19, %s22
      %p31 = scmp.eq.s32.totalorder %s14, 3
      %p32 = por %p30, %p31
      %p33 = scmp.ne.s32.totalorder %s22, %s23
      %p34 = scmp.eq.s32.totalorder %s14, 0
      %p35 = por %p33, %p34
      %p36 = scmp.ne.s32.totalorder %s22, %s23
      %p37 = scmp.eq.s32.totalorder %s15, 3
      %p38 = por %p36, %p37
      %p40 = scmp.ne.s32.totalorder %s23, %s39
      %p41 = scmp.eq.s32.totalorder %s15, 0
      %p42 = por %p40, %p41
      %s44 = sadd.s32 %s43, 1
      %p47 = scmp.eq.s32.totalorder %s9, 3
      %p48 = scmp.ne.s32.totalorder %s43, %s45
      %p49 = scmp.eq.s32.totalorder %s9, 0
      %p50 = por %p48, %p49
      %p51 = scmp.ne.s32.totalorder %s43, %s45
      %p52 = scmp.eq.s32.totalorder %s14, 3
      %p53 = por %p51, %p52
      %p54 = scmp.ne.s32.totalorder %s45, %s46
      %p55 = scmp.eq.s32.totalorder %s14, 0
      %p56 = por %p54, %p55
      %p57 = scmp.ne.s32.totalorder %s45, %s46
      %p58 = scmp.eq.s32.totalorder %s15, 3
      %p59 = por %p57, %p58
      %p61 = scmp.ne.s32.totalorder %s46, %s60
      %p62 = scmp.eq.s32.totalorder %s15, 0
      %p63 = por %p61, %p62
      %s65 = sadd.s32 %s64, 1
      %p68 = scmp.eq.s32.totalorder %s9, 3
      %p69 = scmp.ne.s32.totalorder %s64, %s66
      %p70 = scmp.eq.s32.totalorder %s9, 0
      %p71 = por %p69, %p70
      %p72 = scmp.ne.s32.totalorder %s64, %s66
      %p73 = scmp.eq.s32.totalorder %s14, 3
      %p74 = por %p72, %p73
      %p75 = scmp.ne.s32.totalorder %s66, %s67
      %p76 = scmp.eq.s32.totalorder %s14, 0
      %p77 = por %p75, %p76
      %p78 = scmp.ne.s32.totalorder %s66, %s67
      %p79 = scmp.eq.s32.totalorder %s15, 3
      %p80 = por %p78, %p79
      %p82 = scmp.ne.s32.totalorder %s67, %s81
      %p83 = scmp.eq.s32.totalorder %s15, 0
      %p84 = por %p82, %p83
      %s85 = ssub.s32 %s9, %s16
      %p86 = scmp.eq.s32.totalorder %s85, 0
      %s88 = sadd.s32 %s87, 1
      %s89 = scalar_select %p86, %s87, %s88
      %p92 = pneg %p86
      %p93 = scmp.eq.s32.totalorder %s9, 3
      %p94 = por %p92, %p93
      %p95 = scmp.ne.s32.totalorder %s87, %s90
      %p96 = scmp.eq.s32.totalorder %s9, 0
      %p97 = por %p95, %p96
      %p98 = scmp.ne.s32.totalorder %s87, %s90
      %p99 = scmp.eq.s32.totalorder %s14, 3
      %p100 = por %p98, %p99
      %p101 = scmp.ne.s32.totalorder %s90, %s91
      %p102 = scmp.eq.s32.totalorder %s14, 0
      %p103 = por %p101, %p102
      %p104 = scmp.ne.s32.totalorder %s90, %s91
      %p105 = scmp.eq.s32.totalorder %s15, 3
      %p106 = por %p104, %p105
      %p108 = scmp.ne.s32.totalorder %s91, %s107
      %p109 = scmp.eq.s32.totalorder %s15, 0
      %p110 = por %p108, %p109
      %p111 = scmp.le.s32.totalorder 1, %s9
      %p112 = scmp.lt.s32.totalorder %s9, 5
      %p113 = pnand %p111, %p112
      %p114 = pneg %p113
      // Predicated region
      $region9: #{cnn_cifar_forward.5} parent=5 // pred_check
        _
      $region10: #{cnn_cifar_forward.5} parent=5 // pred_check_branch
        %116 = sbr.rel (%p113) target = $region12
      $region11: #{cnn_cifar_forward.5} parent=5 // pred_region
        %s117 = ssub.s32 %s9, 1
        // Predicated region
        $region13: #{cnn_cifar_forward.5} parent=11 // pred_check
          %p118 = pneg %p56
        $region14: #{cnn_cifar_forward.5} parent=11 // pred_check_branch
          %120 = sbr.rel (%p118) target = $region16
        $region15: #{cnn_cifar_forward.5} parent=11 // pred_region
          _
        $region16: #{cnn_cifar_forward.5} parent=11 // pred_fallthru
          _
        // Predicated region
        $region17: #{cnn_cifar_forward.5} parent=11 // pred_check
          %p121 = pneg %p77
        $region18: #{cnn_cifar_forward.5} parent=11 // pred_check_branch
          %123 = sbr.rel (%p121) target = $region20
        $region19: #{cnn_cifar_forward.5} parent=11 // pred_region
          _
        $region20: #{cnn_cifar_forward.5} parent=11 // pred_fallthru
          _
      $region12: #{cnn_cifar_forward.5} parent=5 // pred_fallthru
        _
      %p124 = scmp.lt.s32.totalorder %s9, 4
      // Predicated region
      $region21: #{cnn_cifar_forward.5} parent=5 // pred_check
        %p125 = pneg %p124
      $region22: #{cnn_cifar_forward.5} parent=5 // pred_check_branch
        %127 = sbr.rel (%p125) target = $region24
      $region23: #{cnn_cifar_forward.5} parent=5 // pred_region
        // Predicated region
        $region25: #{cnn_cifar_forward.5} parent=23 // pred_check
          %p128 = pneg %p29
        $region26: #{cnn_cifar_forward.5} parent=23 // pred_check_branch
          %130 = sbr.rel (%p128) target = $region28
        $region27: #{cnn_cifar_forward.5} parent=23 // pred_region
          %s131 = smul.u32 64, %s9
          %s132 = ssub.s32 196, %s131
          %p133 = scmp.lt.s32.totalorder %s132, 64
          %s134 = scalar_select %p133, %s132, 64
          %s135 = smul.u32 64, %s134
          %p136 = scmp.lt.s32.totalorder %s131, 195
          %s137 = scalar_select %p136, %s131, 195
          %s138 = smul.addr %s137, 4
          %s139 = scalar_lea.vmem %s0, %s138
          %s140 = smul.u32 64, %s9
          %s141 = ssub.s32 196, %s140
          %p142 = scmp.lt.s32.totalorder %s141, 64
          %s143 = scalar_select %p142, %s141, 64
          %s144 = smul.u32 64, %s143
        $region28: #{cnn_cifar_forward.5} parent=23 // pred_fallthru
          _
      $region24: #{cnn_cifar_forward.5} parent=5 // pred_fallthru
        _
      %p145 = scmp.le.s32.totalorder 1, %s9
      %p146 = scmp.lt.s32.totalorder %s9, 5
      %p147 = pnand %p145, %p146
      %p148 = pneg %p147
      // Predicated region
      $region29: #{cnn_cifar_forward.5} parent=5 // pred_check
        _
      $region30: #{cnn_cifar_forward.5} parent=5 // pred_check_branch
        %150 = sbr.rel (%p147) target = $region32
      $region31: #{cnn_cifar_forward.5} parent=5 // pred_region
        %s151 = ssub.s32 %s9, 1
        %s152 = smul.u32 64, %s14
        %s153 = ssub.s32 196, %s152
        %p154 = scmp.lt.s32.totalorder %s153, 64
        %s155 = scalar_select %p154, %s153, 64
        %s156 = smul.u32 64, %s155
        %p157 = scmp.lt.s32.totalorder %s152, 195
        %s158 = scalar_select %p157, %s152, 195
        %s159 = smul.addr %s158, 4
        %s160 = scalar_lea.vmem %s0, %s159
        %p161 = pneg %p35
        %p162 = pneg %p32
        %p163 = pneg %p56
        %p164 = pneg %p53
        %p165 = pneg %p77
        %p166 = pneg %p74
        %p167 = pneg %p103
        %p168 = pneg %p100
        %s169 = sand.u32 %s90, 1
        %s170 = sand.u32 %s90, 1
        %s171 = smul.addr %s170, 512
        %s172 = scalar_lea.vmem [#allocation2], %s171
        %s173 = smul.u32 64, %s14
        %s174 = ssub.s32 196, %s173
        %p175 = scmp.lt.s32.totalorder %s174, 64
        %s176 = scalar_select %p175, %s174, 64
        %s177 = smul.u32 64, %s176
        %p178 = scmp.lt.s32.totalorder %s173, 195
        %s179 = scalar_select %p178, %s173, 195
        %s180 = smul.addr %s179, 4
        %s181 = scalar_lea.vmem %s0, %s180
        %s182 = smul.u32 64, %s14
        %s183 = ssub.s32 196, %s182
        %p184 = scmp.lt.s32.totalorder %s183, 64
        %s185 = scalar_select %p184, %s183, 64
        %s186 = smul.u32 64, %s185
        %s187 = smul.u32 64, %s14
        %s188 = ssub.s32 196, %s187
        %p189 = scmp.lt.s32.totalorder %s188, 64
        %s190 = scalar_select %p189, %s188, 64
        %s191 = smul.u32 128, %s190
        %v193 = vld [vmem:[%s181] sm:$0xf]
        %v194 = vld [vmem:[%s181 + $0x4] sm:$0xf]
        %v195 = vld [vmem:[%s181 + $0x8] sm:$0xf]
        %v196 = vld [vmem:[%s181 + $0xc] sm:$0xf]
        %v197 = vld [vmem:[%s181 + $0x10] sm:$0xf]
        %v198 = vld [vmem:[%s181 + $0x14] sm:$0xf]
        %v199 = vld [vmem:[%s181 + $0x18] sm:$0xf]
        %v200 = vld [vmem:[%s181 + $0x1c] sm:$0xf]
        %v201 = vld [vmem:[%s181 + $0x20] sm:$0xf]
        %v202 = vld [vmem:[%s181 + $0x24] sm:$0xf]
        %v203 = vld [vmem:[%s181 + $0x28] sm:$0xf]
        %v204 = vld [vmem:[%s181 + $0x2c] sm:$0xf]
        %v205 = vld [vmem:[%s181 + $0x30] sm:$0xf]
        %v206 = vld [vmem:[%s181 + $0x34] sm:$0xf]
        %v207 = vld [vmem:[%s181 + $0x38] sm:$0xf]
        %v208 = vld [vmem:[%s181 + $0x3c] sm:$0xf]
        %v209 = vld [vmem:[%s181 + $0x40] sm:$0xf]
        %v210 = vld [vmem:[%s181 + $0x44] sm:$0xf]
        %v211 = vld [vmem:[%s181 + $0x48] sm:$0xf]
        %v212 = vld [vmem:[%s181 + $0x4c] sm:$0xf]
        %v213 = vld [vmem:[%s181 + $0x50] sm:$0xf]
        %v214 = vld [vmem:[%s181 + $0x54] sm:$0xf]
        %v215 = vld [vmem:[%s181 + $0x58] sm:$0xf]
        %v216 = vld [vmem:[%s181 + $0x5c] sm:$0xf]
        %v217 = vld [vmem:[%s181 + $0x60] sm:$0xf]
        %v218 = vld [vmem:[%s181 + $0x64] sm:$0xf]
        %v219 = vld [vmem:[%s181 + $0x68] sm:$0xf]
        %v220 = vld [vmem:[%s181 + $0x6c] sm:$0xf]
        %v221 = vld [vmem:[%s181 + $0x70] sm:$0xf]
        %v222 = vld [vmem:[%s181 + $0x74] sm:$0xf]
        %v223 = vld [vmem:[%s181 + $0x78] sm:$0xf]
        %v224 = vld [vmem:[%s181 + $0x7c] sm:$0xf]
        %v225 = vld [vmem:[%s181 + $0x80] sm:$0xf]
        %v226 = vld [vmem:[%s181 + $0x84] sm:$0xf]
        %v227 = vld [vmem:[%s181 + $0x88] sm:$0xf]
        %v228 = vld [vmem:[%s181 + $0x8c] sm:$0xf]
        %v229 = vld [vmem:[%s181 + $0x90] sm:$0xf]
        %v230 = vld [vmem:[%s181 + $0x94] sm:$0xf]
        %v231 = vld [vmem:[%s181 + $0x98] sm:$0xf]
        %v232 = vld [vmem:[%s181 + $0x9c] sm:$0xf]
        %v233 = vld [vmem:[%s181 + $0xa0] sm:$0xf]
        %v234 = vld [vmem:[%s181 + $0xa4] sm:$0xf]
        %v235 = vld [vmem:[%s181 + $0xa8] sm:$0xf]
        %v236 = vld [vmem:[%s181 + $0xac] sm:$0xf]
        %v237 = vld [vmem:[%s181 + $0xb0] sm:$0xf]
        %v238 = vld [vmem:[%s181 + $0xb4] sm:$0xf]
        %v239 = vld [vmem:[%s181 + $0xb8] sm:$0xf]
        %v240 = vld [vmem:[%s181 + $0xbc] sm:$0xf]
        %v241 = vld [vmem:[%s181 + $0xc0] sm:$0xf]
        %v242 = vld [vmem:[%s181 + $0xc4] sm:$0xf]
        %v243 = vld [vmem:[%s181 + $0xc8] sm:$0xf]
        %v244 = vld [vmem:[%s181 + $0xcc] sm:$0xf]
        %v245 = vld [vmem:[%s181 + $0xd0] sm:$0xf]
        %v246 = vld [vmem:[%s181 + $0xd4] sm:$0xf]
        %v247 = vld [vmem:[%s181 + $0xd8] sm:$0xf]
        %v248 = vld [vmem:[%s181 + $0xdc] sm:$0xf]
        %v249 = vld [vmem:[%s181 + $0xe0] sm:$0xf]
        %v250 = vld [vmem:[%s181 + $0xe4] sm:$0xf]
        %v251 = vld [vmem:[%s181 + $0xe8] sm:$0xf]
        %v252 = vld [vmem:[%s181 + $0xec] sm:$0xf]
        %v253 = vld [vmem:[%s181 + $0xf0] sm:$0xf]
        %v254 = vld [vmem:[%s181 + $0xf4] sm:$0xf]
        %v255 = vld [vmem:[%s181 + $0xf8] sm:$0xf]
        %v256 = vld [vmem:[%s181 + $0xfc] sm:$0xf]
        %v257 = vld [vmem:[%s1] sm:$0xf]
        %v258 = vld [vmem:[%s1 + $0x4] sm:$0xf]
        %v259 = vld [vmem:[%s1 + $0x8] sm:$0xf]
        %v260 = vld [vmem:[%s1 + $0xc] sm:$0xf]
        %v261 = vld [vmem:[%s1 + $0x10] sm:$0xf]
        %v262 = vld [vmem:[%s1 + $0x14] sm:$0xf]
        %v263 = vld [vmem:[%s1 + $0x18] sm:$0xf]
        %v264 = vld [vmem:[%s1 + $0x1c] sm:$0xf]
        %v265 = vld [vmem:[%s1 + $0x20] sm:$0xf]
        %v266 = vld [vmem:[%s1 + $0x24] sm:$0x3]
        %v267 = vld [vmem:[%s2] sm:$0x1]
        %v269 = vlaneseq
        %v270 = vshrl.u32 %v269, 7
        %v271 = vsub.s32 0, %v270
        %v272 = vrot.slane %v267, %v271
        %v338 = vunpack.c.l.b16 %v193
        %v339 = vunpack.c.l.b16 %v194
        %v340 = vunpack.c.l.b16 %v195
        %v341 = vunpack.c.l.b16 %v196
        %v342 = vunpack.c.l.b16 %v197
        %v343 = vunpack.c.l.b16 %v198
        %v344 = vunpack.c.l.b16 %v199
        %v345 = vunpack.c.l.b16 %v200
        %v346 = vunpack.c.l.b16 %v201
        %v347 = vunpack.c.l.b16 %v202
        %v348 = vunpack.c.l.b16 %v203
        %v349 = vunpack.c.l.b16 %v204
        %v350 = vunpack.c.l.b16 %v205
        %v351 = vunpack.c.l.b16 %v206
        %v352 = vunpack.c.l.b16 %v207
        %v353 = vunpack.c.l.b16 %v208
        %v354 = vunpack.c.l.b16 %v209
        %v355 = vunpack.c.l.b16 %v210
        %v356 = vunpack.c.l.b16 %v211
        %v357 = vunpack.c.l.b16 %v212
        %v358 = vunpack.c.l.b16 %v213
        %v359 = vunpack.c.l.b16 %v214
        %v360 = vunpack.c.l.b16 %v215
        %v361 = vunpack.c.l.b16 %v216
        %v362 = vunpack.c.l.b16 %v217
        %v363 = vunpack.c.l.b16 %v218
        %v364 = vunpack.c.l.b16 %v219
        %v365 = vunpack.c.l.b16 %v220
        %v366 = vunpack.c.l.b16 %v221
        %v367 = vunpack.c.l.b16 %v222
        %v368 = vunpack.c.l.b16 %v223
        %v369 = vunpack.c.l.b16 %v224
        %v370 = vunpack.c.l.b16 %v225
        %v371 = vunpack.c.l.b16 %v226
        %v372 = vunpack.c.l.b16 %v227
        %v373 = vunpack.c.l.b16 %v228
        %v374 = vunpack.c.l.b16 %v229
        %v375 = vunpack.c.l.b16 %v230
        %v376 = vunpack.c.l.b16 %v231
        %v377 = vunpack.c.l.b16 %v232
        %v378 = vunpack.c.l.b16 %v233
        %v379 = vunpack.c.l.b16 %v234
        %v380 = vunpack.c.l.b16 %v235
        %v381 = vunpack.c.l.b16 %v236
        %v382 = vunpack.c.l.b16 %v237
        %v383 = vunpack.c.l.b16 %v238
        %v384 = vunpack.c.l.b16 %v239
        %v385 = vunpack.c.l.b16 %v240
        %v386 = vunpack.c.l.b16 %v241
        %v387 = vunpack.c.l.b16 %v242
        %v388 = vunpack.c.l.b16 %v243
        %v389 = vunpack.c.l.b16 %v244
        %v390 = vunpack.c.l.b16 %v245
        %v391 = vunpack.c.l.b16 %v246
        %v392 = vunpack.c.l.b16 %v247
        %v393 = vunpack.c.l.b16 %v248
        %v394 = vunpack.c.l.b16 %v249
        %v395 = vunpack.c.l.b16 %v250
        %v396 = vunpack.c.l.b16 %v251
        %v397 = vunpack.c.l.b16 %v252
        %v398 = vunpack.c.l.b16 %v253
        %v399 = vunpack.c.l.b16 %v254
        %v400 = vunpack.c.l.b16 %v255
        %v401 = vunpack.c.l.b16 %v256
        %v402 = vpack.c.b16 %v339, %v338
        %v403 = vpack.c.b16 %v341, %v340
        %v404 = vpack.c.b16 %v343, %v342
        %v405 = vpack.c.b16 %v345, %v344
        %v406 = vpack.c.b16 %v347, %v346
        %v407 = vpack.c.b16 %v349, %v348
        %v408 = vpack.c.b16 %v351, %v350
        %v409 = vpack.c.b16 %v353, %v352
        %v410 = vpack.c.b16 %v355, %v354
        %v411 = vpack.c.b16 %v357, %v356
        %v412 = vpack.c.b16 %v359, %v358
        %v413 = vpack.c.b16 %v361, %v360
        %v414 = vpack.c.b16 %v363, %v362
        %v415 = vpack.c.b16 %v365, %v364
        %v416 = vpack.c.b16 %v367, %v366
        %v417 = vpack.c.b16 %v369, %v368
        %v418 = vpack.c.b16 %v371, %v370
        %v419 = vpack.c.b16 %v373, %v372
        %v420 = vpack.c.b16 %v375, %v374
        %v421 = vpack.c.b16 %v377, %v376
        %v422 = vpack.c.b16 %v379, %v378
        %v423 = vpack.c.b16 %v381, %v380
        %v424 = vpack.c.b16 %v383, %v382
        %v425 = vpack.c.b16 %v385, %v384
        %v426 = vpack.c.b16 %v387, %v386
        %v427 = vpack.c.b16 %v389, %v388
        %v428 = vpack.c.b16 %v391, %v390
        %v429 = vpack.c.b16 %v393, %v392
        %v430 = vpack.c.b16 %v395, %v394
        %v431 = vpack.c.b16 %v397, %v396
        %v432 = vpack.c.b16 %v399, %v398
        %v433 = vpack.c.b16 %v401, %v400
        %v444 = vunpack.c.l.b16 %v257
        %v445 = vunpack.c.l.b16 %v258
        %v446 = vunpack.c.l.b16 %v259
        %v447 = vunpack.c.l.b16 %v260
        %v448 = vunpack.c.l.b16 %v261
        %v449 = vunpack.c.l.b16 %v262
        %v450 = vunpack.c.l.b16 %v263
        %v451 = vunpack.c.l.b16 %v264
        %v452 = vunpack.c.l.b16 %v265
        %v453 = vunpack.c.l.b16 %v266
        %v454 = vpack.c.b16 %v445, %v444
        %v455 = vpack.c.b16 %v447, %v446
        %v456 = vpack.c.b16 %v449, %v448
        %v457 = vpack.c.b16 %v451, %v450
        %v458 = vpack.c.b16 %v453, %v452
        %vm463 = vcmask 613376
        %v465 = vsel %vm463, %v402, 0
        %v468 = vsel %vm463, %v403, 0
        %v471 = vsel %vm463, %v404, 0
        %v474 = vsel %vm463, %v405, 0
        %v477 = vsel %vm463, %v406, 0
        %v480 = vsel %vm463, %v407, 0
        %v483 = vsel %vm463, %v408, 0
        %v486 = vsel %vm463, %v409, 0
        %v489 = vsel %vm463, %v410, 0
        %v492 = vsel %vm463, %v411, 0
        %v495 = vsel %vm463, %v412, 0
        %v498 = vsel %vm463, %v413, 0
        %v501 = vsel %vm463, %v414, 0
        %v504 = vsel %vm463, %v415, 0
        %v507 = vsel %vm463, %v416, 0
        %v510 = vsel %vm463, %v417, 0
        %v513 = vsel %vm463, %v418, 0
        %v516 = vsel %vm463, %v419, 0
        %v519 = vsel %vm463, %v420, 0
        %v522 = vsel %vm463, %v421, 0
        %v525 = vsel %vm463, %v422, 0
        %v528 = vsel %vm463, %v423, 0
        %v531 = vsel %vm463, %v424, 0
        %v534 = vsel %vm463, %v425, 0
        %v537 = vsel %vm463, %v426, 0
        %v540 = vsel %vm463, %v427, 0
        %v543 = vsel %vm463, %v428, 0
        %v546 = vsel %vm463, %v429, 0
        %v549 = vsel %vm463, %v430, 0
        %v552 = vsel %vm463, %v431, 0
        %v555 = vsel %vm463, %v432, 0
        %v558 = vsel %vm463, %v433, 0
        %vm560 = vcmask 1044480
        %vm561 = vcmask 1045504
        %v562 = vsel %vm560, 4294967295, 65535
        %v563 = vsel %vm561, %v562, 0
        %v565 = vand.u32 %v458, %v563
        %567 = vmatprep.subr.bf16.mxu0 0
        %568 = vmatpush1.bf16.msra.mxu0 %v454
        %569 = vmatprep.subr.bf16.mxu0 0
        %570 = vmatpush1.bf16.msra.mxu0 %v455
        %571 = vmatprep.subr.bf16.mxu0 0
        %572 = vmatpush1.bf16.msra.mxu0 %v456
        %573 = vmatprep.subr.bf16.mxu0 0
        %574 = vmatpush1.bf16.msra.mxu0 %v457
        %575 = vmatprep.subr.bf16.mxu0 0
        %576 = vmatpush1.bf16.msra.mxu0 %v565
        %577 = vmatprep.subr.bf16.mxu0 0
        %578 = vmatpush1.bf16.msra.mxu0 0
        %579 = vmatprep.subr.bf16.mxu0 0
        %580 = vmatpush1.bf16.msra.mxu0 0
        %581 = vmatprep.subr.bf16.mxu0 0
        %582 = vmatpush1.bf16.msra.mxu0 0
        %583 = vmatprep.subr.bf16.mxu0 0
        %584 = vmatpush1.bf16.msra.mxu0 0
        %585 = vmatprep.subr.bf16.mxu0 0
        %586 = vmatpush1.bf16.msra.mxu0 0
        %587 = vmatprep.subr.bf16.mxu0 0
        %588 = vmatpush1.bf16.msra.mxu0 0
        %589 = vmatprep.subr.bf16.mxu0 0
        %590 = vmatpush1.bf16.msra.mxu0 0
        %591 = vmatprep.subr.bf16.mxu0 0
        %592 = vmatpush1.bf16.msra.mxu0 0
        %593 = vmatprep.subr.bf16.mxu0 0
        %594 = vmatpush1.bf16.msra.mxu0 0
        %595 = vmatprep.subr.bf16.mxu0 0
        %596 = vmatpush1.bf16.msra.mxu0 0
        %597 = vmatprep.subr.bf16.mxu0 0
        %598 = vmatpush1.bf16.msra.mxu0 0
        %599 = vmatprep.mubr.bf16.mxu0 0
        %600 = vmatmul.mubr.bf16.gmra.mrb[0].mxu0 %v465
        %v601 = vpop.f32.mrb[0].mxu0
        %v602 = vadd.f32 %v272, %v601
        %v603 = vpop.f32.mrb[0].mxu0
        %v604 = vpop.f32.mrb[0].mxu0
        %v605 = vadd.f32 %v272, %v604
        %v606 = vpop.f32.mrb[0].mxu0
        %607 = vmatprep.mubr.bf16.mxu0 0
        %608 = vmatmul.mubr.bf16.gmra.mrb[0].mxu0 %v468
        %v609 = vpop.f32.mrb[0].mxu0
        %v610 = vadd.f32 %v272, %v609
        %v611 = vpop.f32.mrb[0].mxu0
        %v612 = vpop.f32.mrb[0].mxu0
        %v613 = vadd.f32 %v272, %v612
        %v614 = vpop.f32.mrb[0].mxu0
        %615 = vmatprep.mubr.bf16.mxu0 0
        %616 = vmatmul.mubr.bf16.gmra.mrb[0].mxu0 %v471
        %v617 = vpop.f32.mrb[0].mxu0
        %v618 = vadd.f32 %v272, %v617
        %v619 = vpop.f32.mrb[0].mxu0
        %v620 = vpop.f32.mrb[0].mxu0
        %v621 = vadd.f32 %v272, %v620
        %v622 = vpop.f32.mrb[0].mxu0
        %623 = vmatprep.mubr.bf16.mxu0 0
        %624 = vmatmul.mubr.bf16.gmra.mrb[0].mxu0 %v474
        %v625 = vpop.f32.mrb[0].mxu0
        %v626 = vadd.f32 %v272, %v625
        %v627 = vpop.f32.mrb[0].mxu0
        %v628 = vpop.f32.mrb[0].mxu0
        %v629 = vadd.f32 %v272, %v628
        %v630 = vpop.f32.mrb[0].mxu0
        %631 = vmatprep.mubr.bf16.mxu0 0
        %632 = vmatmul.mubr.bf16.gmra.mrb[0].mxu0 %v477
        %v633 = vpop.f32.mrb[0].mxu0
        %v634 = vadd.f32 %v272, %v633
        %v635 = vpop.f32.mrb[0].mxu0
        %v636 = vpop.f32.mrb[0].mxu0
        %v637 = vadd.f32 %v272, %v636
        %v638 = vpop.f32.mrb[0].mxu0
        %639 = vmatprep.mubr.bf16.mxu0 0
        %640 = vmatmul.mubr.bf16.gmra.mrb[0].mxu0 %v480
        %v641 = vpop.f32.mrb[0].mxu0
        %v642 = vadd.f32 %v272, %v641
        %v643 = vpop.f32.mrb[0].mxu0
        %v644 = vpop.f32.mrb[0].mxu0
        %v645 = vadd.f32 %v272, %v644
        %v646 = vpop.f32.mrb[0].mxu0
        %647 = vmatprep.mubr.bf16.mxu0 0
        %648 = vmatmul.mubr.bf16.gmra.mrb[0].mxu0 %v483
        %v649 = vpop.f32.mrb[0].mxu0
        %v650 = vadd.f32 %v272, %v649
        %v651 = vpop.f32.mrb[0].mxu0
        %v652 = vpop.f32.mrb[0].mxu0
        %v653 = vadd.f32 %v272, %v652
        %v654 = vpop.f32.mrb[0].mxu0
        %655 = vmatprep.mubr.bf16.mxu0 0
        %656 = vmatmul.mubr.bf16.gmra.mrb[0].mxu0 %v486
        %v657 = vpop.f32.mrb[0].mxu0
        %v658 = vadd.f32 %v272, %v657
        %v659 = vpop.f32.mrb[0].mxu0
        %v660 = vpop.f32.mrb[0].mxu0
        %v661 = vadd.f32 %v272, %v660
        %v662 = vpop.f32.mrb[0].mxu0
        %663 = vmatprep.mubr.bf16.mxu0 0
        %664 = vmatmul.mubr.bf16.gmra.mrb[0].mxu0 %v489
        %v665 = vpop.f32.mrb[0].mxu0
        %v666 = vadd.f32 %v272, %v665
        %v667 = vpop.f32.mrb[0].mxu0
        %v668 = vpop.f32.mrb[0].mxu0
        %v669 = vadd.f32 %v272, %v668
        %v670 = vpop.f32.mrb[0].mxu0
        %671 = vmatprep.mubr.bf16.mxu0 0
        %672 = vmatmul.mubr.bf16.gmra.mrb[0].mxu0 %v492
        %v673 = vpop.f32.mrb[0].mxu0
        %v674 = vadd.f32 %v272, %v673
        %v675 = vpop.f32.mrb[0].mxu0
        %v676 = vpop.f32.mrb[0].mxu0
        %v677 = vadd.f32 %v272, %v676
        %v678 = vpop.f32.mrb[0].mxu0
        %679 = vmatprep.mubr.bf16.mxu0 0
        %680 = vmatmul.mubr.bf16.gmra.mrb[0].mxu0 %v495
        %v681 = vpop.f32.mrb[0].mxu0
        %v682 = vadd.f32 %v272, %v681
        %v683 = vpop.f32.mrb[0].mxu0
        %v684 = vpop.f32.mrb[0].mxu0
        %v685 = vadd.f32 %v272, %v684
        %v686 = vpop.f32.mrb[0].mxu0
        %687 = vmatprep.mubr.bf16.mxu0 0
        %688 = vmatmul.mubr.bf16.gmra.mrb[0].mxu0 %v498
        %v689 = vpop.f32.mrb[0].mxu0
        %v690 = vadd.f32 %v272, %v689
        %v691 = vpop.f32.mrb[0].mxu0
        %v692 = vpop.f32.mrb[0].mxu0
        %v693 = vadd.f32 %v272, %v692
        %v694 = vpop.f32.mrb[0].mxu0
        %695 = vmatprep.mubr.bf16.mxu0 0
        %696 = vmatmul.mubr.bf16.gmra.mrb[0].mxu0 %v501
        %v697 = vpop.f32.mrb[0].mxu0
        %v698 = vadd.f32 %v272, %v697
        %v699 = vpop.f32.mrb[0].mxu0
        %v700 = vpop.f32.mrb[0].mxu0
        %v701 = vadd.f32 %v272, %v700
        %v702 = vpop.f32.mrb[0].mxu0
        %703 = vmatprep.mubr.bf16.mxu0 0
        %704 = vmatmul.mubr.bf16.gmra.mrb[0].mxu0 %v504
        %v705 = vpop.f32.mrb[0].mxu0
        %v706 = vadd.f32 %v272, %v705
        %v707 = vpop.f32.mrb[0].mxu0
        %v708 = vpop.f32.mrb[0].mxu0
        %v709 = vadd.f32 %v272, %v708
        %v710 = vpop.f32.mrb[0].mxu0
        %711 = vmatprep.mubr.bf16.mxu0 0
        %712 = vmatmul.mubr.bf16.gmra.mrb[0].mxu0 %v507
        %v713 = vpop.f32.mrb[0].mxu0
        %v714 = vadd.f32 %v272, %v713
        %v715 = vpop.f32.mrb[0].mxu0
        %v716 = vpop.f32.mrb[0].mxu0
        %v717 = vadd.f32 %v272, %v716
        %v718 = vpop.f32.mrb[0].mxu0
        %719 = vmatprep.mubr.bf16.mxu0 0
        %720 = vmatmul.mubr.bf16.gmra.mrb[0].mxu0 %v510
        %v721 = vpop.f32.mrb[0].mxu0
        %v722 = vadd.f32 %v272, %v721
        %v723 = vpop.f32.mrb[0].mxu0
        %v724 = vpop.f32.mrb[0].mxu0
        %v725 = vadd.f32 %v272, %v724
        %v726 = vpop.f32.mrb[0].mxu0
        %727 = vmatprep.mubr.bf16.mxu0 0
        %728 = vmatmul.mubr.bf16.gmra.mrb[0].mxu0 %v513
        %v729 = vpop.f32.mrb[0].mxu0
        %v730 = vadd.f32 %v272, %v729
        %v731 = vpop.f32.mrb[0].mxu0
        %v732 = vpop.f32.mrb[0].mxu0
        %v733 = vadd.f32 %v272, %v732
        %v734 = vpop.f32.mrb[0].mxu0
        %735 = vmatprep.mubr.bf16.mxu0 0
        %736 = vmatmul.mubr.bf16.gmra.mrb[0].mxu0 %v516
        %v737 = vpop.f32.mrb[0].mxu0
        %v738 = vadd.f32 %v272, %v737
        %v739 = vpop.f32.mrb[0].mxu0
        %v740 = vpop.f32.mrb[0].mxu0
        %v741 = vadd.f32 %v272, %v740
        %v742 = vpop.f32.mrb[0].mxu0
        %743 = vmatprep.mubr.bf16.mxu0 0
        %744 = vmatmul.mubr.bf16.gmra.mrb[0].mxu0 %v519
        %v745 = vpop.f32.mrb[0].mxu0
        %v746 = vadd.f32 %v272, %v745
        %v747 = vpop.f32.mrb[0].mxu0
        %v748 = vpop.f32.mrb[0].mxu0
        %v749 = vadd.f32 %v272, %v748
        %v750 = vpop.f32.mrb[0].mxu0
        %751 = vmatprep.mubr.bf16.mxu0 0
        %752 = vmatmul.mubr.bf16.gmra.mrb[0].mxu0 %v522
        %v753 = vpop.f32.mrb[0].mxu0
        %v754 = vadd.f32 %v272, %v753
        %v755 = vpop.f32.mrb[0].mxu0
        %v756 = vpop.f32.mrb[0].mxu0
        %v757 = vadd.f32 %v272, %v756
        %v758 = vpop.f32.mrb[0].mxu0
        %759 = vmatprep.mubr.bf16.mxu0 0
        %760 = vmatmul.mubr.bf16.gmra.mrb[0].mxu0 %v525
        %v761 = vpop.f32.mrb[0].mxu0
        %v762 = vadd.f32 %v272, %v761
        %v763 = vpop.f32.mrb[0].mxu0
        %v764 = vpop.f32.mrb[0].mxu0
        %v765 = vadd.f32 %v272, %v764
        %v766 = vpop.f32.mrb[0].mxu0
        %767 = vmatprep.mubr.bf16.mxu0 0
        %768 = vmatmul.mubr.bf16.gmra.mrb[0].mxu0 %v528
        %v769 = vpop.f32.mrb[0].mxu0
        %v770 = vadd.f32 %v272, %v769
        %v771 = vpop.f32.mrb[0].mxu0
        %v772 = vpop.f32.mrb[0].mxu0
        %v773 = vadd.f32 %v272, %v772
        %v774 = vpop.f32.mrb[0].mxu0
        %775 = vmatprep.mubr.bf16.mxu0 0
        %776 = vmatmul.mubr.bf16.gmra.mrb[0].mxu0 %v531
        %v777 = vpop.f32.mrb[0].mxu0
        %v778 = vadd.f32 %v272, %v777
        %v779 = vpop.f32.mrb[0].mxu0
        %v780 = vpop.f32.mrb[0].mxu0
        %v781 = vadd.f32 %v272, %v780
        %v782 = vpop.f32.mrb[0].mxu0
        %783 = vmatprep.mubr.bf16.mxu0 0
        %784 = vmatmul.mubr.bf16.gmra.mrb[0].mxu0 %v534
        %v785 = vpop.f32.mrb[0].mxu0
        %v786 = vadd.f32 %v272, %v785
        %v787 = vpop.f32.mrb[0].mxu0
        %v788 = vpop.f32.mrb[0].mxu0
        %v789 = vadd.f32 %v272, %v788
        %v790 = vpop.f32.mrb[0].mxu0
        %791 = vmatprep.mubr.bf16.mxu0 0
        %792 = vmatmul.mubr.bf16.gmra.mrb[0].mxu0 %v537
        %v793 = vpop.f32.mrb[0].mxu0
        %v794 = vadd.f32 %v272, %v793
        %v795 = vpop.f32.mrb[0].mxu0
        %v796 = vpop.f32.mrb[0].mxu0
        %v797 = vadd.f32 %v272, %v796
        %v798 = vpop.f32.mrb[0].mxu0
        %799 = vmatprep.mubr.bf16.mxu0 0
        %800 = vmatmul.mubr.bf16.gmra.mrb[0].mxu0 %v540
        %v801 = vpop.f32.mrb[0].mxu0
        %v802 = vadd.f32 %v272, %v801
        %v803 = vpop.f32.mrb[0].mxu0
        %v804 = vpop.f32.mrb[0].mxu0
        %v805 = vadd.f32 %v272, %v804
        %v806 = vpop.f32.mrb[0].mxu0
        %807 = vmatprep.mubr.bf16.mxu0 0
        %808 = vmatmul.mubr.bf16.gmra.mrb[0].mxu0 %v543
        %v809 = vpop.f32.mrb[0].mxu0
        %v810 = vadd.f32 %v272, %v809
        %v811 = vpop.f32.mrb[0].mxu0
        %v812 = vpop.f32.mrb[0].mxu0
        %v813 = vadd.f32 %v272, %v812
        %v814 = vpop.f32.mrb[0].mxu0
        %815 = vmatprep.mubr.bf16.mxu0 0
        %816 = vmatmul.mubr.bf16.gmra.mrb[0].mxu0 %v546
        %v817 = vpop.f32.mrb[0].mxu0
        %v818 = vadd.f32 %v272, %v817
        %v819 = vpop.f32.mrb[0].mxu0
        %v820 = vpop.f32.mrb[0].mxu0
        %v821 = vadd.f32 %v272, %v820
        %v822 = vpop.f32.mrb[0].mxu0
        %823 = vmatprep.mubr.bf16.mxu0 0
        %824 = vmatmul.mubr.bf16.gmra.mrb[0].mxu0 %v549
        %v825 = vpop.f32.mrb[0].mxu0
        %v826 = vadd.f32 %v272, %v825
        %v827 = vpop.f32.mrb[0].mxu0
        %v828 = vpop.f32.mrb[0].mxu0
        %v829 = vadd.f32 %v272, %v828
        %v830 = vpop.f32.mrb[0].mxu0
        %831 = vmatprep.mubr.bf16.mxu0 0
        %832 = vmatmul.mubr.bf16.gmra.mrb[0].mxu0 %v552
        %v833 = vpop.f32.mrb[0].mxu0
        %v834 = vadd.f32 %v272, %v833
        %v835 = vpop.f32.mrb[0].mxu0
        %v836 = vpop.f32.mrb[0].mxu0
        %v837 = vadd.f32 %v272, %v836
        %v838 = vpop.f32.mrb[0].mxu0
        %839 = vmatprep.mubr.bf16.mxu0 0
        %840 = vmatmul.mubr.bf16.gmra.mrb[0].mxu0 %v555
        %v841 = vpop.f32.mrb[0].mxu0
        %v842 = vadd.f32 %v272, %v841
        %v843 = vpop.f32.mrb[0].mxu0
        %v844 = vpop.f32.mrb[0].mxu0
        %v845 = vadd.f32 %v272, %v844
        %v846 = vpop.f32.mrb[0].mxu0
        %847 = vmatprep.mubr.bf16.mxu0 0
        %848 = vmatmul.mubr.bf16.gmra.mrb[0].mxu0 %v558
        %v849 = vpop.f32.mrb[0].mxu0
        %v850 = vadd.f32 %v272, %v849
        %v851 = vpop.f32.mrb[0].mxu0
        %v852 = vpop.f32.mrb[0].mxu0
        %v853 = vadd.f32 %v272, %v852
        %v854 = vpop.f32.mrb[0].mxu0
        %855 = vdwg.mxu0
        %v856 = vmax.f32 %v602, 0.0
        %v857 = vmax.f32 %v605, 0.0
        %v858 = vmax.f32 %v610, 0.0
        %v859 = vmax.f32 %v613, 0.0
        %v860 = vmax.f32 %v618, 0.0
        %v861 = vmax.f32 %v621, 0.0
        %v862 = vmax.f32 %v626, 0.0
        %v863 = vmax.f32 %v629, 0.0
        %v864 = vmax.f32 %v634, 0.0
        %v865 = vmax.f32 %v637, 0.0
        %v866 = vmax.f32 %v642, 0.0
        %v867 = vmax.f32 %v645, 0.0
        %v868 = vmax.f32 %v650, 0.0
        %v869 = vmax.f32 %v653, 0.0
        %v870 = vmax.f32 %v658, 0.0
        %v871 = vmax.f32 %v661, 0.0
        %v872 = vmax.f32 %v666, 0.0
        %v873 = vmax.f32 %v669, 0.0
        %v874 = vmax.f32 %v674, 0.0
        %v875 = vmax.f32 %v677, 0.0
        %v876 = vmax.f32 %v682, 0.0
        %v877 = vmax.f32 %v685, 0.0
        %v878 = vmax.f32 %v690, 0.0
        %v879 = vmax.f32 %v693, 0.0
        %v880 = vmax.f32 %v698, 0.0
        %v881 = vmax.f32 %v701, 0.0
        %v882 = vmax.f32 %v706, 0.0
        %v883 = vmax.f32 %v709, 0.0
        %v884 = vmax.f32 %v714, 0.0
        %v885 = vmax.f32 %v717, 0.0
        %v886 = vmax.f32 %v722, 0.0
        %v887 = vmax.f32 %v725, 0.0
        %v888 = vmax.f32 %v730, 0.0
        %v889 = vmax.f32 %v733, 0.0
        %v890 = vmax.f32 %v738, 0.0
        %v891 = vmax.f32 %v741, 0.0
        %v892 = vmax.f32 %v746, 0.0
        %v893 = vmax.f32 %v749, 0.0
        %v894 = vmax.f32 %v754, 0.0
        %v895 = vmax.f32 %v757, 0.0
        %v896 = vmax.f32 %v762, 0.0
        %v897 = vmax.f32 %v765, 0.0
        %v898 = vmax.f32 %v770, 0.0
        %v899 = vmax.f32 %v773, 0.0
        %v900 = vmax.f32 %v778, 0.0
        %v901 = vmax.f32 %v781, 0.0
        %v902 = vmax.f32 %v786, 0.0
        %v903 = vmax.f32 %v789, 0.0
        %v904 = vmax.f32 %v794, 0.0
        %v905 = vmax.f32 %v797, 0.0
        %v906 = vmax.f32 %v802, 0.0
        %v907 = vmax.f32 %v805, 0.0
        %v908 = vmax.f32 %v810, 0.0
        %v909 = vmax.f32 %v813, 0.0
        %v910 = vmax.f32 %v818, 0.0
        %v911 = vmax.f32 %v821, 0.0
        %v912 = vmax.f32 %v826, 0.0
        %v913 = vmax.f32 %v829, 0.0
        %v914 = vmax.f32 %v834, 0.0
        %v915 = vmax.f32 %v837, 0.0
        %v916 = vmax.f32 %v842, 0.0
        %v917 = vmax.f32 %v845, 0.0
        %v918 = vmax.f32 %v850, 0.0
        %v919 = vmax.f32 %v853, 0.0
        %920 = vst [vmem:[%s172] sm:$0xff] %v856
        %921 = vst [vmem:[%s172 + $0x8] sm:$0xff] %v857
        %922 = vst [vmem:[%s172 + $0x10] sm:$0xff] %v858
        %923 = vst [vmem:[%s172 + $0x18] sm:$0xff] %v859
        %924 = vst [vmem:[%s172 + $0x20] sm:$0xff] %v860
        %925 = vst [vmem:[%s172 + $0x28] sm:$0xff] %v861
        %926 = vst [vmem:[%s172 + $0x30] sm:$0xff] %v862
        %927 = vst [vmem:[%s172 + $0x38] sm:$0xff] %v863
        %928 = vst [vmem:[%s172 + $0x40] sm:$0xff] %v864
        %929 = vst [vmem:[%s172 + $0x48] sm:$0xff] %v865
        %930 = vst [vmem:[%s172 + $0x50] sm:$0xff] %v866
        %931 = vst [vmem:[%s172 + $0x58] sm:$0xff] %v867
        %932 = vst [vmem:[%s172 + $0x60] sm:$0xff] %v868
        %933 = vst [vmem:[%s172 + $0x68] sm:$0xff] %v869
        %934 = vst [vmem:[%s172 + $0x70] sm:$0xff] %v870
        %935 = vst [vmem:[%s172 + $0x78] sm:$0xff] %v871
        %936 = vst [vmem:[%s172 + $0x80] sm:$0xff] %v872
        %937 = vst [vmem:[%s172 + $0x88] sm:$0xff] %v873
        %938 = vst [vmem:[%s172 + $0x90] sm:$0xff] %v874
        %939 = vst [vmem:[%s172 + $0x98] sm:$0xff] %v875
        %940 = vst [vmem:[%s172 + $0xa0] sm:$0xff] %v876
        %941 = vst [vmem:[%s172 + $0xa8] sm:$0xff] %v877
        %942 = vst [vmem:[%s172 + $0xb0] sm:$0xff] %v878
        %943 = vst [vmem:[%s172 + $0xb8] sm:$0xff] %v879
        %944 = vst [vmem:[%s172 + $0xc0] sm:$0xff] %v880
        %945 = vst [vmem:[%s172 + $0xc8] sm:$0xff] %v881
        %946 = vst [vmem:[%s172 + $0xd0] sm:$0xff] %v882
        %947 = vst [vmem:[%s172 + $0xd8] sm:$0xff] %v883
        %948 = vst [vmem:[%s172 + $0xe0] sm:$0xff] %v884
        %949 = vst [vmem:[%s172 + $0xe8] sm:$0xff] %v885
        %950 = vst [vmem:[%s172 + $0xf0] sm:$0xff] %v886
        %951 = vst [vmem:[%s172 + $0xf8] sm:$0xff] %v887
        %952 = vst [vmem:[%s172 + $0x100] sm:$0xff] %v888
        %953 = vst [vmem:[%s172 + $0x108] sm:$0xff] %v889
        %954 = vst [vmem:[%s172 + $0x110] sm:$0xff] %v890
        %955 = vst [vmem:[%s172 + $0x118] sm:$0xff] %v891
        %956 = vst [vmem:[%s172 + $0x120] sm:$0xff] %v892
        %957 = vst [vmem:[%s172 + $0x128] sm:$0xff] %v893
        %958 = vst [vmem:[%s172 + $0x130] sm:$0xff] %v894
        %959 = vst [vmem:[%s172 + $0x138] sm:$0xff] %v895
        %960 = vst [vmem:[%s172 + $0x140] sm:$0xff] %v896
        %961 = vst [vmem:[%s172 + $0x148] sm:$0xff] %v897
        %962 = vst [vmem:[%s172 + $0x150] sm:$0xff] %v898
        %963 = vst [vmem:[%s172 + $0x158] sm:$0xff] %v899
        %964 = vst [vmem:[%s172 + $0x160] sm:$0xff] %v900
        %965 = vst [vmem:[%s172 + $0x168] sm:$0xff] %v901
        %966 = vst [vmem:[%s172 + $0x170] sm:$0xff] %v902
        %967 = vst [vmem:[%s172 + $0x178] sm:$0xff] %v903
        %968 = vst [vmem:[%s172 + $0x180] sm:$0xff] %v904
        %969 = vst [vmem:[%s172 + $0x188] sm:$0xff] %v905
        %970 = vst [vmem:[%s172 + $0x190] sm:$0xff] %v906
        %971 = vst [vmem:[%s172 + $0x198] sm:$0xff] %v907
        %972 = vst [vmem:[%s172 + $0x1a0] sm:$0xff] %v908
        %973 = vst [vmem:[%s172 + $0x1a8] sm:$0xff] %v909
        %974 = vst [vmem:[%s172 + $0x1b0] sm:$0xff] %v910
        %975 = vst [vmem:[%s172 + $0x1b8] sm:$0xff] %v911
        %976 = vst [vmem:[%s172 + $0x1c0] sm:$0xff] %v912
        %977 = vst [vmem:[%s172 + $0x1c8] sm:$0xff] %v913
        %978 = vst [vmem:[%s172 + $0x1d0] sm:$0xff] %v914
        %979 = vst [vmem:[%s172 + $0x1d8] sm:$0xff] %v915
        %980 = vst [vmem:[%s172 + $0x1e0] sm:$0xff] %v916
        %981 = vst [vmem:[%s172 + $0x1e8] sm:$0xff] %v917
        %982 = vst [vmem:[%s172 + $0x1f0] sm:$0xff] %v918
        %983 = vst [vmem:[%s172 + $0x1f8] sm:$0xff] %v919
        %s984 = sand.u32 %s90, 1
        %s985 = sand.u32 %s90, 1
        %s986 = smul.addr %s985, 512
        %s987 = scalar_lea.vmem [#allocation2], %s986
        // Predicated region
        $region33: #{cnn_cifar_forward.5} parent=31 // pred_check
          %p988 = pneg %p100
        $region34: #{cnn_cifar_forward.5} parent=31 // pred_check_branch
          %990 = sbr.rel (%p988) target = $region36
        $region35: #{cnn_cifar_forward.5} parent=31 // pred_region
          %s991 = smul.u32 64, %s14
          %s992 = ssub.s32 196, %s991
          %p993 = scmp.lt.s32.totalorder %s992, 64
          %s994 = scalar_select %p993, %s992, 64
          %s995 = smul.u32 128, %s994
          %p996 = scmp.ne.s32.totalorder 0, %s995
          %s997 = smul.addr %s991, 8
          %s998 = scalar_lea.vmem %s3, %s997
          // Predicated region
          $region37: #{cnn_cifar_forward.5} parent=35 // pred_check
            %p999 = pneg %p996
          $region38: #{cnn_cifar_forward.5} parent=35 // pred_check_branch
            %1001 = sbr.rel (%p999) target = $region40
          $region39: #{cnn_cifar_forward.5} parent=35 // pred_region
            // Predicated region
            $region41: #{cnn_cifar_forward.5} parent=39 // pred_check
              _
            $region42: #{cnn_cifar_forward.5} parent=39 // pred_check_branch
              %1003 = sbr.rel (0) target = $region44
            $region43: #{cnn_cifar_forward.5} parent=39 // pred_region
              // Predicated region
              $region63: #{cnn_cifar_forward.5} parent=43 // pred_check
                _
              $region64: #{cnn_cifar_forward.5} parent=43 // pred_check_branch
                %1178 = sbr.rel (0) target = $region66
              $region65: #{cnn_cifar_forward.5} parent=43 // pred_region
                %s1179 = sshrl.u32 %s994, 6
                // While loop
                $region67: #{cnn_cifar_forward.5} parent=65 // loop_pre_header
                  _
                $region68: #{cnn_cifar_forward.5} parent=65 // loop_header
                  %s1181 = sphi 0, %s1183
                  %p1182 = scmp.ge.s32.totalorder %s1181, %s1179
                  %s1186 = sphi 0, %s1319
                  %s1187 = sphi %s987, %s1322
                  %s1188 = sphi %s998, %s1323
                $region69: #{cnn_cifar_forward.5} parent=65 // loop_header_branch
                  %1185 = sbr.rel (%p1182) target = $region73
                $region70: #{cnn_cifar_forward.5} parent=65 // loop_body
                  %v1189 = vld [vmem:[%s1187] sm:$0xff]
                  %1190 = vst [vmem:[%s1188] sm:$0xff] %v1189
                  %v1191 = vld [vmem:[%s1187 + $0x8] sm:$0xff]
                  %1192 = vst [vmem:[%s1188 + $0x8] sm:$0xff] %v1191
                  %v1193 = vld [vmem:[%s1187 + $0x10] sm:$0xff]
                  %1194 = vst [vmem:[%s1188 + $0x10] sm:$0xff] %v1193
                  %v1195 = vld [vmem:[%s1187 + $0x18] sm:$0xff]
                  %1196 = vst [vmem:[%s1188 + $0x18] sm:$0xff] %v1195
                  %v1197 = vld [vmem:[%s1187 + $0x20] sm:$0xff]
                  %1198 = vst [vmem:[%s1188 + $0x20] sm:$0xff] %v1197
                  %v1199 = vld [vmem:[%s1187 + $0x28] sm:$0xff]
                  %1200 = vst [vmem:[%s1188 + $0x28] sm:$0xff] %v1199
                  %v1201 = vld [vmem:[%s1187 + $0x30] sm:$0xff]
                  %1202 = vst [vmem:[%s1188 + $0x30] sm:$0xff] %v1201
                  %v1203 = vld [vmem:[%s1187 + $0x38] sm:$0xff]
                  %1204 = vst [vmem:[%s1188 + $0x38] sm:$0xff] %v1203
                  %v1205 = vld [vmem:[%s1187 + $0x40] sm:$0xff]
                  %1206 = vst [vmem:[%s1188 + $0x40] sm:$0xff] %v1205
                  %v1207 = vld [vmem:[%s1187 + $0x48] sm:$0xff]
                  %1208 = vst [vmem:[%s1188 + $0x48] sm:$0xff] %v1207
                  %v1209 = vld [vmem:[%s1187 + $0x50] sm:$0xff]
                  %1210 = vst [vmem:[%s1188 + $0x50] sm:$0xff] %v1209
                  %v1211 = vld [vmem:[%s1187 + $0x58] sm:$0xff]
                  %1212 = vst [vmem:[%s1188 + $0x58] sm:$0xff] %v1211
                  %v1213 = vld [vmem:[%s1187 + $0x60] sm:$0xff]
                  %1214 = vst [vmem:[%s1188 + $0x60] sm:$0xff] %v1213
                  %v1215 = vld [vmem:[%s1187 + $0x68] sm:$0xff]
                  %1216 = vst [vmem:[%s1188 + $0x68] sm:$0xff] %v1215
                  %v1217 = vld [vmem:[%s1187 + $0x70] sm:$0xff]
                  %1218 = vst [vmem:[%s1188 + $0x70] sm:$0xff] %v1217
                  %v1219 = vld [vmem:[%s1187 + $0x78] sm:$0xff]
                  %1220 = vst [vmem:[%s1188 + $0x78] sm:$0xff] %v1219
                  %v1221 = vld [vmem:[%s1187 + $0x80] sm:$0xff]
                  %1222 = vst [vmem:[%s1188 + $0x80] sm:$0xff] %v1221
                  %v1223 = vld [vmem:[%s1187 + $0x88] sm:$0xff]
                  %1224 = vst [vmem:[%s1188 + $0x88] sm:$0xff] %v1223
                  %v1225 = vld [vmem:[%s1187 + $0x90] sm:$0xff]
                  %1226 = vst [vmem:[%s1188 + $0x90] sm:$0xff] %v1225
                  %v1227 = vld [vmem:[%s1187 + $0x98] sm:$0xff]
                  %1228 = vst [vmem:[%s1188 + $0x98] sm:$0xff] %v1227
                  %v1229 = vld [vmem:[%s1187 + $0xa0] sm:$0xff]
                  %1230 = vst [vmem:[%s1188 + $0xa0] sm:$0xff] %v1229
                  %v1231 = vld [vmem:[%s1187 + $0xa8] sm:$0xff]
                  %1232 = vst [vmem:[%s1188 + $0xa8] sm:$0xff] %v1231
                  %v1233 = vld [vmem:[%s1187 + $0xb0] sm:$0xff]
                  %1234 = vst [vmem:[%s1188 + $0xb0] sm:$0xff] %v1233
                  %v1235 = vld [vmem:[%s1187 + $0xb8] sm:$0xff]
                  %1236 = vst [vmem:[%s1188 + $0xb8] sm:$0xff] %v1235
                  %v1237 = vld [vmem:[%s1187 + $0xc0] sm:$0xff]
                  %1238 = vst [vmem:[%s1188 + $0xc0] sm:$0xff] %v1237
                  %v1239 = vld [vmem:[%s1187 + $0xc8] sm:$0xff]
                  %1240 = vst [vmem:[%s1188 + $0xc8] sm:$0xff] %v1239
                  %v1241 = vld [vmem:[%s1187 + $0xd0] sm:$0xff]
                  %1242 = vst [vmem:[%s1188 + $0xd0] sm:$0xff] %v1241
                  %v1243 = vld [vmem:[%s1187 + $0xd8] sm:$0xff]
                  %1244 = vst [vmem:[%s1188 + $0xd8] sm:$0xff] %v1243
                  %v1245 = vld [vmem:[%s1187 + $0xe0] sm:$0xff]
                  %1246 = vst [vmem:[%s1188 + $0xe0] sm:$0xff] %v1245
                  %v1247 = vld [vmem:[%s1187 + $0xe8] sm:$0xff]
                  %1248 = vst [vmem:[%s1188 + $0xe8] sm:$0xff] %v1247
                  %v1249 = vld [vmem:[%s1187 + $0xf0] sm:$0xff]
                  %1250 = vst [vmem:[%s1188 + $0xf0] sm:$0xff] %v1249
                  %v1251 = vld [vmem:[%s1187 + $0xf8] sm:$0xff]
                  %1252 = vst [vmem:[%s1188 + $0xf8] sm:$0xff] %v1251
                  %v1253 = vld [vmem:[%s1187 + $0x100] sm:$0xff]
                  %1254 = vst [vmem:[%s1188 + $0x100] sm:$0xff] %v1253
                  %v1255 = vld [vmem:[%s1187 + $0x108] sm:$0xff]
                  %1256 = vst [vmem:[%s1188 + $0x108] sm:$0xff] %v1255
                  %v1257 = vld [vmem:[%s1187 + $0x110] sm:$0xff]
                  %1258 = vst [vmem:[%s1188 + $0x110] sm:$0xff] %v1257
                  %v1259 = vld [vmem:[%s1187 + $0x118] sm:$0xff]
                  %1260 = vst [vmem:[%s1188 + $0x118] sm:$0xff] %v1259
                  %v1261 = vld [vmem:[%s1187 + $0x120] sm:$0xff]
                  %1262 = vst [vmem:[%s1188 + $0x120] sm:$0xff] %v1261
                  %v1263 = vld [vmem:[%s1187 + $0x128] sm:$0xff]
                  %1264 = vst [vmem:[%s1188 + $0x128] sm:$0xff] %v1263
                  %v1265 = vld [vmem:[%s1187 + $0x130] sm:$0xff]
                  %1266 = vst [vmem:[%s1188 + $0x130] sm:$0xff] %v1265
                  %v1267 = vld [vmem:[%s1187 + $0x138] sm:$0xff]
                  %1268 = vst [vmem:[%s1188 + $0x138] sm:$0xff] %v1267
                  %v1269 = vld [vmem:[%s1187 + $0x140] sm:$0xff]
                  %1270 = vst [vmem:[%s1188 + $0x140] sm:$0xff] %v1269
                  %v1271 = vld [vmem:[%s1187 + $0x148] sm:$0xff]
                  %1272 = vst [vmem:[%s1188 + $0x148] sm:$0xff] %v1271
                  %v1273 = vld [vmem:[%s1187 + $0x150] sm:$0xff]
                  %1274 = vst [vmem:[%s1188 + $0x150] sm:$0xff] %v1273
                  %v1275 = vld [vmem:[%s1187 + $0x158] sm:$0xff]
                  %1276 = vst [vmem:[%s1188 + $0x158] sm:$0xff] %v1275
                  %v1277 = vld [vmem:[%s1187 + $0x160] sm:$0xff]
                  %1278 = vst [vmem:[%s1188 + $0x160] sm:$0xff] %v1277
                  %v1279 = vld [vmem:[%s1187 + $0x168] sm:$0xff]
                  %1280 = vst [vmem:[%s1188 + $0x168] sm:$0xff] %v1279
                  %v1281 = vld [vmem:[%s1187 + $0x170] sm:$0xff]
                  %1282 = vst [vmem:[%s1188 + $0x170] sm:$0xff] %v1281
                  %v1283 = vld [vmem:[%s1187 + $0x178] sm:$0xff]
                  %1284 = vst [vmem:[%s1188 + $0x178] sm:$0xff] %v1283
                  %v1285 = vld [vmem:[%s1187 + $0x180] sm:$0xff]
                  %1286 = vst [vmem:[%s1188 + $0x180] sm:$0xff] %v1285
                  %v1287 = vld [vmem:[%s1187 + $0x188] sm:$0xff]
                  %1288 = vst [vmem:[%s1188 + $0x188] sm:$0xff] %v1287
                  %v1289 = vld [vmem:[%s1187 + $0x190] sm:$0xff]
                  %1290 = vst [vmem:[%s1188 + $0x190] sm:$0xff] %v1289
                  %v1291 = vld [vmem:[%s1187 + $0x198] sm:$0xff]
                  %1292 = vst [vmem:[%s1188 + $0x198] sm:$0xff] %v1291
                  %v1293 = vld [vmem:[%s1187 + $0x1a0] sm:$0xff]
                  %1294 = vst [vmem:[%s1188 + $0x1a0] sm:$0xff] %v1293
                  %v1295 = vld [vmem:[%s1187 + $0x1a8] sm:$0xff]
                  %1296 = vst [vmem:[%s1188 + $0x1a8] sm:$0xff] %v1295
                  %v1297 = vld [vmem:[%s1187 + $0x1b0] sm:$0xff]
                  %1298 = vst [vmem:[%s1188 + $0x1b0] sm:$0xff] %v1297
                  %v1299 = vld [vmem:[%s1187 + $0x1b8] sm:$0xff]
                  %1300 = vst [vmem:[%s1188 + $0x1b8] sm:$0xff] %v1299
                  %v1301 = vld [vmem:[%s1187 + $0x1c0] sm:$0xff]
                  %1302 = vst [vmem:[%s1188 + $0x1c0] sm:$0xff] %v1301
                  %v1303 = vld [vmem:[%s1187 + $0x1c8] sm:$0xff]
                  %1304 = vst [vmem:[%s1188 + $0x1c8] sm:$0xff] %v1303
                  %v1305 = vld [vmem:[%s1187 + $0x1d0] sm:$0xff]
                  %1306 = vst [vmem:[%s1188 + $0x1d0] sm:$0xff] %v1305
                  %v1307 = vld [vmem:[%s1187 + $0x1d8] sm:$0xff]
                  %1308 = vst [vmem:[%s1188 + $0x1d8] sm:$0xff] %v1307
                  %v1309 = vld [vmem:[%s1187 + $0x1e0] sm:$0xff]
                  %1310 = vst [vmem:[%s1188 + $0x1e0] sm:$0xff] %v1309
                  %v1311 = vld [vmem:[%s1187 + $0x1e8] sm:$0xff]
                  %1312 = vst [vmem:[%s1188 + $0x1e8] sm:$0xff] %v1311
                  %v1313 = vld [vmem:[%s1187 + $0x1f0] sm:$0xff]
                  %1314 = vst [vmem:[%s1188 + $0x1f0] sm:$0xff] %v1313
                  %v1315 = vld [vmem:[%s1187 + $0x1f8] sm:$0xff]
                  %1316 = vst [vmem:[%s1188 + $0x1f8] sm:$0xff] %v1315
                  %s1317 = sadd.s32 1, %s1186
                  %p1318 = scmp.ge.s32.totalorder %s1317, %s1179
                  %s1319 = scalar_select %p1318, 0, %s1317
                  %s1320 = smul.u32 %s1319, 512
                  %s1321 = smul.u32 %s1319, 512
                  %s1322 = scalar_lea.vmem %s987, %s1320 [#allocation2]
                  %s1323 = scalar_lea.vmem %s998, %s1321
                $region71: #{cnn_cifar_forward.5} parent=65 // loop_footer
                  %s1183 = sadd.s32 %s1181, 1
                $region72: #{cnn_cifar_forward.5} parent=65 // loop_footer_branch
                  %1180 = sbr.rel target = $region68
                $region73: #{cnn_cifar_forward.5} parent=65 // loop_exit
                  _
                %s1324 = sshrl.u32 %s994, 6
                %s1325 = sand.u32 %s994, 63
                %s1326 = smul.u32 %s1324, 64
                %s1327 = smul.u32 8, %s1326
                %s1328 = scalar_lea.vmem %s987, %s1327 [#allocation2]
                %s1329 = smul.u32 8, %s1326
                %s1330 = scalar_lea.vmem %s998, %s1329
                // While loop
                $region74: #{cnn_cifar_forward.5} parent=65 // loop_pre_header
                  _
                $region75: #{cnn_cifar_forward.5} parent=65 // loop_header
                  %s1332 = sphi 0, %s1334
                  %p1333 = scmp.ge.s32.totalorder %s1332, %s1325
                  %s1337 = sphi 0, %s1344
                  %s1338 = sphi %s1328, %s1347
                  %s1339 = sphi %s1330, %s1348
                $region76: #{cnn_cifar_forward.5} parent=65 // loop_header_branch
                  %1336 = sbr.rel (%p1333) target = $region80
                $region77: #{cnn_cifar_forward.5} parent=65 // loop_body
                  %v1340 = vld [vmem:[%s1338] sm:$0xff]
                  %1341 = vst [vmem:[%s1339] sm:$0xff] %v1340
                  %s1342 = sadd.s32 1, %s1337
                  %p1343 = scmp.ge.s32.totalorder %s1342, %s1325
                  %s1344 = scalar_select %p1343, 0, %s1342
                  %s1345 = smul.u32 %s1344, 8
                  %s1346 = smul.u32 %s1344, 8
                  %s1347 = scalar_lea.vmem %s1328, %s1345 [#allocation2]
                  %s1348 = scalar_lea.vmem %s1330, %s1346
                $region78: #{cnn_cifar_forward.5} parent=65 // loop_footer
                  %s1334 = sadd.s32 %s1332, 1
                $region79: #{cnn_cifar_forward.5} parent=65 // loop_footer_branch
                  %1331 = sbr.rel target = $region75
                $region80: #{cnn_cifar_forward.5} parent=65 // loop_exit
                  _
              $region66: #{cnn_cifar_forward.5} parent=43 // pred_fallthru
                _
              // Predicated region
              $region81: #{cnn_cifar_forward.5} parent=43 // pred_check
                _
              $region82: #{cnn_cifar_forward.5} parent=43 // pred_check_branch
                %1350 = sbr.rel target = $region84
              $region83: #{cnn_cifar_forward.5} parent=43 // pred_region
                _
              $region84: #{cnn_cifar_forward.5} parent=43 // pred_fallthru
                _
            $region44: #{cnn_cifar_forward.5} parent=39 // pred_fallthru
              _
            // Predicated region
            $region45: #{cnn_cifar_forward.5} parent=39 // pred_check
              _
            $region46: #{cnn_cifar_forward.5} parent=39 // pred_check_branch
              %1005 = sbr.rel target = $region48
            $region47: #{cnn_cifar_forward.5} parent=39 // pred_region
              %s1007 = sshrl.u32 %s994, 6
              // While loop
              $region49: #{cnn_cifar_forward.5} parent=47 // loop_pre_header
                _
              $region50: #{cnn_cifar_forward.5} parent=47 // loop_header
                %s1009 = sphi 0, %s1011
                %p1010 = scmp.ge.s32.totalorder %s1009, %s1007
                %s1014 = sphi 0, %s1147
                %s1015 = sphi %s987, %s1150
                %s1016 = sphi %s998, %s1151
              $region51: #{cnn_cifar_forward.5} parent=47 // loop_header_branch
                %1013 = sbr.rel (%p1010) target = $region55
              $region52: #{cnn_cifar_forward.5} parent=47 // loop_body
                %v1017 = vld [vmem:[%s1015] sm:$0xff]
                %1018 = vst [vmem:[%s1016] sm:$0xff] %v1017
                %v1019 = vld [vmem:[%s1015 + $0x8] sm:$0xff]
                %1020 = vst [vmem:[%s1016 + $0x8] sm:$0xff] %v1019
                %v1021 = vld [vmem:[%s1015 + $0x10] sm:$0xff]
                %1022 = vst [vmem:[%s1016 + $0x10] sm:$0xff] %v1021
                %v1023 = vld [vmem:[%s1015 + $0x18] sm:$0xff]
                %1024 = vst [vmem:[%s1016 + $0x18] sm:$0xff] %v1023
                %v1025 = vld [vmem:[%s1015 + $0x20] sm:$0xff]
                %1026 = vst [vmem:[%s1016 + $0x20] sm:$0xff] %v1025
                %v1027 = vld [vmem:[%s1015 + $0x28] sm:$0xff]
                %1028 = vst [vmem:[%s1016 + $0x28] sm:$0xff] %v1027
                %v1029 = vld [vmem:[%s1015 + $0x30] sm:$0xff]
                %1030 = vst [vmem:[%s1016 + $0x30] sm:$0xff] %v1029
                %v1031 = vld [vmem:[%s1015 + $0x38] sm:$0xff]
                %1032 = vst [vmem:[%s1016 + $0x38] sm:$0xff] %v1031
                %v1033 = vld [vmem:[%s1015 + $0x40] sm:$0xff]
                %1034 = vst [vmem:[%s1016 + $0x40] sm:$0xff] %v1033
                %v1035 = vld [vmem:[%s1015 + $0x48] sm:$0xff]
                %1036 = vst [vmem:[%s1016 + $0x48] sm:$0xff] %v1035
                %v1037 = vld [vmem:[%s1015 + $0x50] sm:$0xff]
                %1038 = vst [vmem:[%s1016 + $0x50] sm:$0xff] %v1037
                %v1039 = vld [vmem:[%s1015 + $0x58] sm:$0xff]
                %1040 = vst [vmem:[%s1016 + $0x58] sm:$0xff] %v1039
                %v1041 = vld [vmem:[%s1015 + $0x60] sm:$0xff]
                %1042 = vst [vmem:[%s1016 + $0x60] sm:$0xff] %v1041
                %v1043 = vld [vmem:[%s1015 + $0x68] sm:$0xff]
                %1044 = vst [vmem:[%s1016 + $0x68] sm:$0xff] %v1043
                %v1045 = vld [vmem:[%s1015 + $0x70] sm:$0xff]
                %1046 = vst [vmem:[%s1016 + $0x70] sm:$0xff] %v1045
                %v1047 = vld [vmem:[%s1015 + $0x78] sm:$0xff]
                %1048 = vst [vmem:[%s1016 + $0x78] sm:$0xff] %v1047
                %v1049 = vld [vmem:[%s1015 + $0x80] sm:$0xff]
                %1050 = vst [vmem:[%s1016 + $0x80] sm:$0xff] %v1049
                %v1051 = vld [vmem:[%s1015 + $0x88] sm:$0xff]
                %1052 = vst [vmem:[%s1016 + $0x88] sm:$0xff] %v1051
                %v1053 = vld [vmem:[%s1015 + $0x90] sm:$0xff]
                %1054 = vst [vmem:[%s1016 + $0x90] sm:$0xff] %v1053
                %v1055 = vld [vmem:[%s1015 + $0x98] sm:$0xff]
                %1056 = vst [vmem:[%s1016 + $0x98] sm:$0xff] %v1055
                %v1057 = vld [vmem:[%s1015 + $0xa0] sm:$0xff]
                %1058 = vst [vmem:[%s1016 + $0xa0] sm:$0xff] %v1057
                %v1059 = vld [vmem:[%s1015 + $0xa8] sm:$0xff]
                %1060 = vst [vmem:[%s1016 + $0xa8] sm:$0xff] %v1059
                %v1061 = vld [vmem:[%s1015 + $0xb0] sm:$0xff]
                %1062 = vst [vmem:[%s1016 + $0xb0] sm:$0xff] %v1061
                %v1063 = vld [vmem:[%s1015 + $0xb8] sm:$0xff]
                %1064 = vst [vmem:[%s1016 + $0xb8] sm:$0xff] %v1063
                %v1065 = vld [vmem:[%s1015 + $0xc0] sm:$0xff]
                %1066 = vst [vmem:[%s1016 + $0xc0] sm:$0xff] %v1065
                %v1067 = vld [vmem:[%s1015 + $0xc8] sm:$0xff]
                %1068 = vst [vmem:[%s1016 + $0xc8] sm:$0xff] %v1067
                %v1069 = vld [vmem:[%s1015 + $0xd0] sm:$0xff]
                %1070 = vst [vmem:[%s1016 + $0xd0] sm:$0xff] %v1069
                %v1071 = vld [vmem:[%s1015 + $0xd8] sm:$0xff]
                %1072 = vst [vmem:[%s1016 + $0xd8] sm:$0xff] %v1071
                %v1073 = vld [vmem:[%s1015 + $0xe0] sm:$0xff]
                %1074 = vst [vmem:[%s1016 + $0xe0] sm:$0xff] %v1073
                %v1075 = vld [vmem:[%s1015 + $0xe8] sm:$0xff]
                %1076 = vst [vmem:[%s1016 + $0xe8] sm:$0xff] %v1075
                %v1077 = vld [vmem:[%s1015 + $0xf0] sm:$0xff]
                %1078 = vst [vmem:[%s1016 + $0xf0] sm:$0xff] %v1077
                %v1079 = vld [vmem:[%s1015 + $0xf8] sm:$0xff]
                %1080 = vst [vmem:[%s1016 + $0xf8] sm:$0xff] %v1079
                %v1081 = vld [vmem:[%s1015 + $0x100] sm:$0xff]
                %1082 = vst [vmem:[%s1016 + $0x100] sm:$0xff] %v1081
                %v1083 = vld [vmem:[%s1015 + $0x108] sm:$0xff]
                %1084 = vst [vmem:[%s1016 + $0x108] sm:$0xff] %v1083
                %v1085 = vld [vmem:[%s1015 + $0x110] sm:$0xff]
                %1086 = vst [vmem:[%s1016 + $0x110] sm:$0xff] %v1085
                %v1087 = vld [vmem:[%s1015 + $0x118] sm:$0xff]
                %1088 = vst [vmem:[%s1016 + $0x118] sm:$0xff] %v1087
                %v1089 = vld [vmem:[%s1015 + $0x120] sm:$0xff]
                %1090 = vst [vmem:[%s1016 + $0x120] sm:$0xff] %v1089
                %v1091 = vld [vmem:[%s1015 + $0x128] sm:$0xff]
                %1092 = vst [vmem:[%s1016 + $0x128] sm:$0xff] %v1091
                %v1093 = vld [vmem:[%s1015 + $0x130] sm:$0xff]
                %1094 = vst [vmem:[%s1016 + $0x130] sm:$0xff] %v1093
                %v1095 = vld [vmem:[%s1015 + $0x138] sm:$0xff]
                %1096 = vst [vmem:[%s1016 + $0x138] sm:$0xff] %v1095
                %v1097 = vld [vmem:[%s1015 + $0x140] sm:$0xff]
                %1098 = vst [vmem:[%s1016 + $0x140] sm:$0xff] %v1097
                %v1099 = vld [vmem:[%s1015 + $0x148] sm:$0xff]
                %1100 = vst [vmem:[%s1016 + $0x148] sm:$0xff] %v1099
                %v1101 = vld [vmem:[%s1015 + $0x150] sm:$0xff]
                %1102 = vst [vmem:[%s1016 + $0x150] sm:$0xff] %v1101
                %v1103 = vld [vmem:[%s1015 + $0x158] sm:$0xff]
                %1104 = vst [vmem:[%s1016 + $0x158] sm:$0xff] %v1103
                %v1105 = vld [vmem:[%s1015 + $0x160] sm:$0xff]
                %1106 = vst [vmem:[%s1016 + $0x160] sm:$0xff] %v1105
                %v1107 = vld [vmem:[%s1015 + $0x168] sm:$0xff]
                %1108 = vst [vmem:[%s1016 + $0x168] sm:$0xff] %v1107
                %v1109 = vld [vmem:[%s1015 + $0x170] sm:$0xff]
                %1110 = vst [vmem:[%s1016 + $0x170] sm:$0xff] %v1109
                %v1111 = vld [vmem:[%s1015 + $0x178] sm:$0xff]
                %1112 = vst [vmem:[%s1016 + $0x178] sm:$0xff] %v1111
                %v1113 = vld [vmem:[%s1015 + $0x180] sm:$0xff]
                %1114 = vst [vmem:[%s1016 + $0x180] sm:$0xff] %v1113
                %v1115 = vld [vmem:[%s1015 + $0x188] sm:$0xff]
                %1116 = vst [vmem:[%s1016 + $0x188] sm:$0xff] %v1115
                %v1117 = vld [vmem:[%s1015 + $0x190] sm:$0xff]
                %1118 = vst [vmem:[%s1016 + $0x190] sm:$0xff] %v1117
                %v1119 = vld [vmem:[%s1015 + $0x198] sm:$0xff]
                %1120 = vst [vmem:[%s1016 + $0x198] sm:$0xff] %v1119
                %v1121 = vld [vmem:[%s1015 + $0x1a0] sm:$0xff]
                %1122 = vst [vmem:[%s1016 + $0x1a0] sm:$0xff] %v1121
                %v1123 = vld [vmem:[%s1015 + $0x1a8] sm:$0xff]
                %1124 = vst [vmem:[%s1016 + $0x1a8] sm:$0xff] %v1123
                %v1125 = vld [vmem:[%s1015 + $0x1b0] sm:$0xff]
                %1126 = vst [vmem:[%s1016 + $0x1b0] sm:$0xff] %v1125
                %v1127 = vld [vmem:[%s1015 + $0x1b8] sm:$0xff]
                %1128 = vst [vmem:[%s1016 + $0x1b8] sm:$0xff] %v1127
                %v1129 = vld [vmem:[%s1015 + $0x1c0] sm:$0xff]
                %1130 = vst [vmem:[%s1016 + $0x1c0] sm:$0xff] %v1129
                %v1131 = vld [vmem:[%s1015 + $0x1c8] sm:$0xff]
                %1132 = vst [vmem:[%s1016 + $0x1c8] sm:$0xff] %v1131
                %v1133 = vld [vmem:[%s1015 + $0x1d0] sm:$0xff]
                %1134 = vst [vmem:[%s1016 + $0x1d0] sm:$0xff] %v1133
                %v1135 = vld [vmem:[%s1015 + $0x1d8] sm:$0xff]
                %1136 = vst [vmem:[%s1016 + $0x1d8] sm:$0xff] %v1135
                %v1137 = vld [vmem:[%s1015 + $0x1e0] sm:$0xff]
                %1138 = vst [vmem:[%s1016 + $0x1e0] sm:$0xff] %v1137
                %v1139 = vld [vmem:[%s1015 + $0x1e8] sm:$0xff]
                %1140 = vst [vmem:[%s1016 + $0x1e8] sm:$0xff] %v1139
                %v1141 = vld [vmem:[%s1015 + $0x1f0] sm:$0xff]
                %1142 = vst [vmem:[%s1016 + $0x1f0] sm:$0xff] %v1141
                %v1143 = vld [vmem:[%s1015 + $0x1f8] sm:$0xff]
                %1144 = vst [vmem:[%s1016 + $0x1f8] sm:$0xff] %v1143
                %s1145 = sadd.s32 1, %s1014
                %p1146 = scmp.ge.s32.totalorder %s1145, %s1007
                %s1147 = scalar_select %p1146, 0, %s1145
                %s1148 = smul.u32 %s1147, 512
                %s1149 = smul.u32 %s1147, 512
                %s1150 = scalar_lea.vmem %s987, %s1148 [#allocation2]
                %s1151 = scalar_lea.vmem %s998, %s1149
              $region53: #{cnn_cifar_forward.5} parent=47 // loop_footer
                %s1011 = sadd.s32 %s1009, 1
              $region54: #{cnn_cifar_forward.5} parent=47 // loop_footer_branch
                %1008 = sbr.rel target = $region50
              $region55: #{cnn_cifar_forward.5} parent=47 // loop_exit
                _
              %s1152 = sshrl.u32 %s994, 6
              %s1153 = sand.u32 %s994, 63
              %s1154 = smul.u32 %s1152, 64
              %s1155 = smul.u32 8, %s1154
              %s1156 = scalar_lea.vmem %s987, %s1155 [#allocation2]
              %s1157 = smul.u32 8, %s1154
              %s1158 = scalar_lea.vmem %s998, %s1157
              // While loop
              $region56: #{cnn_cifar_forward.5} parent=47 // loop_pre_header
                _
              $region57: #{cnn_cifar_forward.5} parent=47 // loop_header
                %s1160 = sphi 0, %s1162
                %p1161 = scmp.ge.s32.totalorder %s1160, %s1153
                %s1165 = sphi 0, %s1172
                %s1166 = sphi %s1156, %s1175
                %s1167 = sphi %s1158, %s1176
              $region58: #{cnn_cifar_forward.5} parent=47 // loop_header_branch
                %1164 = sbr.rel (%p1161) target = $region62
              $region59: #{cnn_cifar_forward.5} parent=47 // loop_body
                %v1168 = vld [vmem:[%s1166] sm:$0xff]
                %1169 = vst [vmem:[%s1167] sm:$0xff] %v1168
                %s1170 = sadd.s32 1, %s1165
                %p1171 = scmp.ge.s32.totalorder %s1170, %s1153
                %s1172 = scalar_select %p1171, 0, %s1170
                %s1173 = smul.u32 %s1172, 8
                %s1174 = smul.u32 %s1172, 8
                %s1175 = scalar_lea.vmem %s1156, %s1173 [#allocation2]
                %s1176 = scalar_lea.vmem %s1158, %s1174
              $region60: #{cnn_cifar_forward.5} parent=47 // loop_footer
                %s1162 = sadd.s32 %s1160, 1
              $region61: #{cnn_cifar_forward.5} parent=47 // loop_footer_branch
                %1159 = sbr.rel target = $region57
              $region62: #{cnn_cifar_forward.5} parent=47 // loop_exit
                _
            $region48: #{cnn_cifar_forward.5} parent=39 // pred_fallthru
              _
          $region40: #{cnn_cifar_forward.5} parent=35 // pred_fallthru
            _
          %1351 = vnop
        $region36: #{cnn_cifar_forward.5} parent=31 // pred_fallthru
          _
      $region32: #{cnn_cifar_forward.5} parent=5 // pred_fallthru
        _
      %p1352 = scmp.le.s32.totalorder 2, %s9
      // Predicated region
      $region85: #{cnn_cifar_forward.5} parent=5 // pred_check
        %p1353 = pneg %p1352
      $region86: #{cnn_cifar_forward.5} parent=5 // pred_check_branch
        %1355 = sbr.rel (%p1353) target = $region88
      $region87: #{cnn_cifar_forward.5} parent=5 // pred_region
        %s1356 = ssub.s32 %s9, 2
        // Predicated region
        $region89: #{cnn_cifar_forward.5} parent=87 // pred_check
          %p1357 = pneg %p106
        $region90: #{cnn_cifar_forward.5} parent=87 // pred_check_branch
          %1359 = sbr.rel (%p1357) target = $region92
        $region91: #{cnn_cifar_forward.5} parent=87 // pred_region
          %s1360 = sand.u32 %s91, 1
          %s1361 = sand.u32 %s91, 1
          %s1362 = smul.addr %s1361, 512
          %s1363 = scalar_lea.vmem [#allocation2], %s1362
        $region92: #{cnn_cifar_forward.5} parent=87 // pred_fallthru
          _
      $region88: #{cnn_cifar_forward.5} parent=5 // pred_fallthru
        _
    $region6: #{cnn_cifar_forward.5} parent=1 // loop_footer
      %s13 = sadd.s32 1, %s9
    $region7: #{cnn_cifar_forward.5} parent=1 // loop_footer_branch
      %8 = sbr.rel target = $region3
    $region8: #{cnn_cifar_forward.5} parent=1 // loop_exit
      _

// kernel: cnn_cifar_forward.6
$region0: #{cnn_cifar_forward.6}
  #allocation0 [shape = 'u32[]', space=smem, size = 0x4, offset = 0x4, fixed_abs, tag = 'smem constant byte address 0x4 - core index']
  #allocation1 [shape = 'u32[144,128]{1,0:T(1,128)}', space=vmem, size = 0x12000, scoped, tag = 'internal scratch']
  %s0 = inlined_call_operand.vmem [shape: f32[28,1792], index: 0, kind: input, shape index: {}]
  %s1 = inlined_call_operand.vmem [shape: f32[28,1792], index: 1, kind: input, shape index: {}]
  %s2 = inlined_call_operand.vmem [shape: f32[28,1792], index: 2, kind: input, shape index: {}]
  %s3 = inlined_call_operand.vmem [shape: f32[28,1792], index: 3, kind: input, shape index: {}]
  %s4 = inlined_call_operand.vmem [shape: f32[28,1792], index: 4, kind: output, shape index: {}]
  %s5 = sld [smem:[#allocation0]]
  $region26: #{cnn_cifar_forward.6} parent=0
    _
  %s7 = ssub.s32 1, %s5
  %s8 = scalar_select 0, %s7, %s5
  // Predicated region
  $region2: #{cnn_cifar_forward.6} parent=0 // pred_check
    _
  $region3: #{cnn_cifar_forward.6} parent=0 // pred_check_branch
    %10 = sbr.rel (0) target = $region5
  $region4: #{cnn_cifar_forward.6} parent=0 // pred_region
    _
  $region5: #{cnn_cifar_forward.6} parent=0 // pred_fallthru
    _
  // Predicated region
  $region6: #{cnn_cifar_forward.6} parent=0 // pred_check
    _
  $region7: #{cnn_cifar_forward.6} parent=0 // pred_check_branch
    %12 = sbr.rel (0) target = $region9
  $region8: #{cnn_cifar_forward.6} parent=0 // pred_region
    _
  $region9: #{cnn_cifar_forward.6} parent=0 // pred_fallthru
    _
  // Predicated region
  $region10: #{cnn_cifar_forward.6} parent=0 // pred_check
    _
  $region11: #{cnn_cifar_forward.6} parent=0 // pred_check_branch
    %14 = sbr.rel (0) target = $region13
  $region12: #{cnn_cifar_forward.6} parent=0 // pred_region
    _
  $region13: #{cnn_cifar_forward.6} parent=0 // pred_fallthru
    _
  // Predicated region
  $region14: #{cnn_cifar_forward.6} parent=0 // pred_check
    _
  $region15: #{cnn_cifar_forward.6} parent=0 // pred_check_branch
    %16 = sbr.rel (0) target = $region17
  $region16: #{cnn_cifar_forward.6} parent=0 // pred_region
    _
  $region17: #{cnn_cifar_forward.6} parent=0 // pred_fallthru
    _
  %v17 = vld [vmem:[%s0] sm:$0xff]
  %v18 = vld [vmem:[%s0 + $0x8] sm:$0xff]
  %v19 = vld [vmem:[%s0 + $0x10] sm:$0xff]
  %v20 = vld [vmem:[%s0 + $0x18] sm:$0xff]
  %v21 = vld [vmem:[%s0 + $0x20] sm:$0xff]
  %v22 = vld [vmem:[%s0 + $0x28] sm:$0xff]
  %v23 = vld [vmem:[%s0 + $0x30] sm:$0xff]
  %v24 = vld [vmem:[%s0 + $0x38] sm:$0xff]
  %v25 = vld [vmem:[%s0 + $0x40] sm:$0xff]
  %v26 = vld [vmem:[%s0 + $0x48] sm:$0xff]
  %v27 = vld [vmem:[%s0 + $0x50] sm:$0xff]
  %v28 = vld [vmem:[%s0 + $0x58] sm:$0xff]
  %v29 = vld [vmem:[%s0 + $0x60] sm:$0xff]
  %v30 = vld [vmem:[%s0 + $0x68] sm:$0xff]
  %v31 = vld [vmem:[%s0 + $0x70] sm:$0xff]
  %v32 = vld [vmem:[%s0 + $0x78] sm:$0xff]
  %v33 = vld [vmem:[%s0 + $0x80] sm:$0xff]
  %v34 = vld [vmem:[%s0 + $0x88] sm:$0xff]
  %v35 = vld [vmem:[%s0 + $0x90] sm:$0xff]
  %v36 = vld [vmem:[%s0 + $0x98] sm:$0xff]
  %v37 = vld [vmem:[%s0 + $0xa0] sm:$0xff]
  %v38 = vld [vmem:[%s0 + $0xa8] sm:$0xff]
  %v39 = vld [vmem:[%s0 + $0xb0] sm:$0xff]
  %v40 = vld [vmem:[%s0 + $0xb8] sm:$0xff]
  %v41 = vld [vmem:[%s0 + $0xc0] sm:$0xff]
  %v42 = vld [vmem:[%s0 + $0xc8] sm:$0xff]
  %v43 = vld [vmem:[%s0 + $0xd0] sm:$0xff]
  %v44 = vld [vmem:[%s0 + $0xd8] sm:$0xff]
  %v45 = vld [vmem:[%s0 + $0xe0] sm:$0xff]
  %v46 = vld [vmem:[%s0 + $0xe8] sm:$0xff]
  %v47 = vld [vmem:[%s0 + $0xf0] sm:$0xff]
  %v48 = vld [vmem:[%s0 + $0xf8] sm:$0xff]
  %v49 = vld [vmem:[%s0 + $0x100] sm:$0xff]
  %v50 = vld [vmem:[%s0 + $0x108] sm:$0xff]
  %v51 = vld [vmem:[%s0 + $0x110] sm:$0xff]
  %v52 = vld [vmem:[%s0 + $0x118] sm:$0xff]
  %v53 = vld [vmem:[%s0 + $0x120] sm:$0xff]
  %v54 = vld [vmem:[%s0 + $0x128] sm:$0xff]
  %v55 = vld [vmem:[%s0 + $0x130] sm:$0xff]
  %v56 = vld [vmem:[%s0 + $0x138] sm:$0xff]
  %v57 = vld [vmem:[%s0 + $0x140] sm:$0xff]
  %v58 = vld [vmem:[%s0 + $0x148] sm:$0xff]
  %v59 = vld [vmem:[%s0 + $0x150] sm:$0xf]
  %v60 = vld [vmem:[%s0 + $0x158] sm:$0xf]
  %v61 = vld [vmem:[%s0 + $0x160] sm:$0xf]
  %v62 = vld [vmem:[%s0 + $0x168] sm:$0xf]
  %v63 = vld [vmem:[%s0 + $0x170] sm:$0xf]
  %v64 = vld [vmem:[%s0 + $0x178] sm:$0xf]
  %v65 = vld [vmem:[%s0 + $0x180] sm:$0xf]
  %v66 = vld [vmem:[%s0 + $0x188] sm:$0xf]
  %v67 = vld [vmem:[%s0 + $0x190] sm:$0xf]
  %v68 = vld [vmem:[%s0 + $0x198] sm:$0xf]
  %v69 = vld [vmem:[%s0 + $0x1a0] sm:$0xf]
  %v70 = vld [vmem:[%s0 + $0x1a8] sm:$0xf]
  %v71 = vld [vmem:[%s0 + $0x1b0] sm:$0xf]
  %v72 = vld [vmem:[%s0 + $0x1b8] sm:$0xf]
  %v73 = vld [vmem:[%s1] sm:$0xff]
  %v74 = vld [vmem:[%s1 + $0x8] sm:$0xff]
  %v75 = vld [vmem:[%s1 + $0x10] sm:$0xff]
  %v76 = vld [vmem:[%s1 + $0x18] sm:$0xff]
  %v77 = vld [vmem:[%s1 + $0x20] sm:$0xff]
  %v78 = vld [vmem:[%s1 + $0x28] sm:$0xff]
  %v79 = vld [vmem:[%s1 + $0x30] sm:$0xff]
  %v80 = vld [vmem:[%s1 + $0x38] sm:$0xff]
  %v81 = vld [vmem:[%s1 + $0x40] sm:$0xff]
  %v82 = vld [vmem:[%s1 + $0x48] sm:$0xff]
  %v83 = vld [vmem:[%s1 + $0x50] sm:$0xff]
  %v84 = vld [vmem:[%s1 + $0x58] sm:$0xff]
  %v85 = vld [vmem:[%s1 + $0x60] sm:$0xff]
  %v86 = vld [vmem:[%s1 + $0x68] sm:$0xff]
  %v87 = vld [vmem:[%s1 + $0x70] sm:$0xff]
  %v88 = vld [vmem:[%s1 + $0x78] sm:$0xff]
  %v89 = vld [vmem:[%s1 + $0x80] sm:$0xff]
  %v90 = vld [vmem:[%s1 + $0x88] sm:$0xff]
  %v91 = vld [vmem:[%s1 + $0x90] sm:$0xff]
  %v92 = vld [vmem:[%s1 + $0x98] sm:$0xff]
  %v93 = vld [vmem:[%s1 + $0xa0] sm:$0xff]
  %v94 = vld [vmem:[%s1 + $0xa8] sm:$0xff]
  %v95 = vld [vmem:[%s1 + $0xb0] sm:$0xff]
  %v96 = vld [vmem:[%s1 + $0xb8] sm:$0xff]
  %v97 = vld [vmem:[%s1 + $0xc0] sm:$0xff]
  %v98 = vld [vmem:[%s1 + $0xc8] sm:$0xff]
  %v99 = vld [vmem:[%s1 + $0xd0] sm:$0xff]
  %v100 = vld [vmem:[%s1 + $0xd8] sm:$0xff]
  %v101 = vld [vmem:[%s1 + $0xe0] sm:$0xff]
  %v102 = vld [vmem:[%s1 + $0xe8] sm:$0xff]
  %v103 = vld [vmem:[%s1 + $0xf0] sm:$0xff]
  %v104 = vld [vmem:[%s1 + $0xf8] sm:$0xff]
  %v105 = vld [vmem:[%s1 + $0x100] sm:$0xff]
  %v106 = vld [vmem:[%s1 + $0x108] sm:$0xff]
  %v107 = vld [vmem:[%s1 + $0x110] sm:$0xff]
  %v108 = vld [vmem:[%s1 + $0x118] sm:$0xff]
  %v109 = vld [vmem:[%s1 + $0x120] sm:$0xff]
  %v110 = vld [vmem:[%s1 + $0x128] sm:$0xff]
  %v111 = vld [vmem:[%s1 + $0x130] sm:$0xff]
  %v112 = vld [vmem:[%s1 + $0x138] sm:$0xff]
  %v113 = vld [vmem:[%s1 + $0x140] sm:$0xff]
  %v114 = vld [vmem:[%s1 + $0x148] sm:$0xff]
  %v115 = vld [vmem:[%s1 + $0x150] sm:$0xf]
  %v116 = vld [vmem:[%s1 + $0x158] sm:$0xf]
  %v117 = vld [vmem:[%s1 + $0x160] sm:$0xf]
  %v118 = vld [vmem:[%s1 + $0x168] sm:$0xf]
  %v119 = vld [vmem:[%s1 + $0x170] sm:$0xf]
  %v120 = vld [vmem:[%s1 + $0x178] sm:$0xf]
  %v121 = vld [vmem:[%s1 + $0x180] sm:$0xf]
  %v122 = vld [vmem:[%s1 + $0x188] sm:$0xf]
  %v123 = vld [vmem:[%s1 + $0x190] sm:$0xf]
  %v124 = vld [vmem:[%s1 + $0x198] sm:$0xf]
  %v125 = vld [vmem:[%s1 + $0x1a0] sm:$0xf]
  %v126 = vld [vmem:[%s1 + $0x1a8] sm:$0xf]
  %v127 = vld [vmem:[%s1 + $0x1b0] sm:$0xf]
  %v128 = vld [vmem:[%s1 + $0x1b8] sm:$0xf]
  %v129 = vmax.f32 %v17, %v73
  %v130 = vmax.f32 %v18, %v74
  %v131 = vmax.f32 %v19, %v75
  %v132 = vmax.f32 %v20, %v76
  %v133 = vmax.f32 %v21, %v77
  %v134 = vmax.f32 %v22, %v78
  %v135 = vmax.f32 %v23, %v79
  %v136 = vmax.f32 %v24, %v80
  %v137 = vmax.f32 %v25, %v81
  %v138 = vmax.f32 %v26, %v82
  %v139 = vmax.f32 %v27, %v83
  %v140 = vmax.f32 %v28, %v84
  %v141 = vmax.f32 %v29, %v85
  %v142 = vmax.f32 %v30, %v86
  %v143 = vmax.f32 %v31, %v87
  %v144 = vmax.f32 %v32, %v88
  %v145 = vmax.f32 %v33, %v89
  %v146 = vmax.f32 %v34, %v90
  %v147 = vmax.f32 %v35, %v91
  %v148 = vmax.f32 %v36, %v92
  %v149 = vmax.f32 %v37, %v93
  %v150 = vmax.f32 %v38, %v94
  %v151 = vmax.f32 %v39, %v95
  %v152 = vmax.f32 %v40, %v96
  %v153 = vmax.f32 %v41, %v97
  %v154 = vmax.f32 %v42, %v98
  %v155 = vmax.f32 %v43, %v99
  %v156 = vmax.f32 %v44, %v100
  %v157 = vmax.f32 %v45, %v101
  %v158 = vmax.f32 %v46, %v102
  %v159 = vmax.f32 %v47, %v103
  %v160 = vmax.f32 %v48, %v104
  %v161 = vmax.f32 %v49, %v105
  %v162 = vmax.f32 %v50, %v106
  %v163 = vmax.f32 %v51, %v107
  %v164 = vmax.f32 %v52, %v108
  %v165 = vmax.f32 %v53, %v109
  %v166 = vmax.f32 %v54, %v110
  %v167 = vmax.f32 %v55, %v111
  %v168 = vmax.f32 %v56, %v112
  %v169 = vmax.f32 %v57, %v113
  %v170 = vmax.f32 %v58, %v114
  %v171 = vmax.f32 %v59, %v115
  %v172 = vmax.f32 %v60, %v116
  %v173 = vmax.f32 %v61, %v117
  %v174 = vmax.f32 %v62, %v118
  %v175 = vmax.f32 %v63, %v119
  %v176 = vmax.f32 %v64, %v120
  %v177 = vmax.f32 %v65, %v121
  %v178 = vmax.f32 %v66, %v122
  %v179 = vmax.f32 %v67, %v123
  %v180 = vmax.f32 %v68, %v124
  %v181 = vmax.f32 %v69, %v125
  %v182 = vmax.f32 %v70, %v126
  %v183 = vmax.f32 %v71, %v127
  %v184 = vmax.f32 %v72, %v128
  %v185 = vld [vmem:[%s2] sm:$0xff]
  %v186 = vld [vmem:[%s2 + $0x8] sm:$0xff]
  %v187 = vld [vmem:[%s2 + $0x10] sm:$0xff]
  %v188 = vld [vmem:[%s2 + $0x18] sm:$0xff]
  %v189 = vld [vmem:[%s2 + $0x20] sm:$0xff]
  %v190 = vld [vmem:[%s2 + $0x28] sm:$0xff]
  %v191 = vld [vmem:[%s2 + $0x30] sm:$0xff]
  %v192 = vld [vmem:[%s2 + $0x38] sm:$0xff]
  %v193 = vld [vmem:[%s2 + $0x40] sm:$0xff]
  %v194 = vld [vmem:[%s2 + $0x48] sm:$0xff]
  %v195 = vld [vmem:[%s2 + $0x50] sm:$0xff]
  %v196 = vld [vmem:[%s2 + $0x58] sm:$0xff]
  %v197 = vld [vmem:[%s2 + $0x60] sm:$0xff]
  %v198 = vld [vmem:[%s2 + $0x68] sm:$0xff]
  %v199 = vld [vmem:[%s2 + $0x70] sm:$0xff]
  %v200 = vld [vmem:[%s2 + $0x78] sm:$0xff]
  %v201 = vld [vmem:[%s2 + $0x80] sm:$0xff]
  %v202 = vld [vmem:[%s2 + $0x88] sm:$0xff]
  %v203 = vld [vmem:[%s2 + $0x90] sm:$0xff]
  %v204 = vld [vmem:[%s2 + $0x98] sm:$0xff]
  %v205 = vld [vmem:[%s2 + $0xa0] sm:$0xff]
  %v206 = vld [vmem:[%s2 + $0xa8] sm:$0xff]
  %v207 = vld [vmem:[%s2 + $0xb0] sm:$0xff]
  %v208 = vld [vmem:[%s2 + $0xb8] sm:$0xff]
  %v209 = vld [vmem:[%s2 + $0xc0] sm:$0xff]
  %v210 = vld [vmem:[%s2 + $0xc8] sm:$0xff]
  %v211 = vld [vmem:[%s2 + $0xd0] sm:$0xff]
  %v212 = vld [vmem:[%s2 + $0xd8] sm:$0xff]
  %v213 = vld [vmem:[%s2 + $0xe0] sm:$0xff]
  %v214 = vld [vmem:[%s2 + $0xe8] sm:$0xff]
  %v215 = vld [vmem:[%s2 + $0xf0] sm:$0xff]
  %v216 = vld [vmem:[%s2 + $0xf8] sm:$0xff]
  %v217 = vld [vmem:[%s2 + $0x100] sm:$0xff]
  %v218 = vld [vmem:[%s2 + $0x108] sm:$0xff]
  %v219 = vld [vmem:[%s2 + $0x110] sm:$0xff]
  %v220 = vld [vmem:[%s2 + $0x118] sm:$0xff]
  %v221 = vld [vmem:[%s2 + $0x120] sm:$0xff]
  %v222 = vld [vmem:[%s2 + $0x128] sm:$0xff]
  %v223 = vld [vmem:[%s2 + $0x130] sm:$0xff]
  %v224 = vld [vmem:[%s2 + $0x138] sm:$0xff]
  %v225 = vld [vmem:[%s2 + $0x140] sm:$0xff]
  %v226 = vld [vmem:[%s2 + $0x148] sm:$0xff]
  %v227 = vld [vmem:[%s2 + $0x150] sm:$0xf]
  %v228 = vld [vmem:[%s2 + $0x158] sm:$0xf]
  %v229 = vld [vmem:[%s2 + $0x160] sm:$0xf]
  %v230 = vld [vmem:[%s2 + $0x168] sm:$0xf]
  %v231 = vld [vmem:[%s2 + $0x170] sm:$0xf]
  %v232 = vld [vmem:[%s2 + $0x178] sm:$0xf]
  %v233 = vld [vmem:[%s2 + $0x180] sm:$0xf]
  %v234 = vld [vmem:[%s2 + $0x188] sm:$0xf]
  %v235 = vld [vmem:[%s2 + $0x190] sm:$0xf]
  %v236 = vld [vmem:[%s2 + $0x198] sm:$0xf]
  %v237 = vld [vmem:[%s2 + $0x1a0] sm:$0xf]
  %v238 = vld [vmem:[%s2 + $0x1a8] sm:$0xf]
  %v239 = vld [vmem:[%s2 + $0x1b0] sm:$0xf]
  %v240 = vld [vmem:[%s2 + $0x1b8] sm:$0xf]
  %v241 = vld [vmem:[%s3] sm:$0xff]
  %v242 = vld [vmem:[%s3 + $0x8] sm:$0xff]
  %v243 = vld [vmem:[%s3 + $0x10] sm:$0xff]
  %v244 = vld [vmem:[%s3 + $0x18] sm:$0xff]
  %v245 = vld [vmem:[%s3 + $0x20] sm:$0xff]
  %v246 = vld [vmem:[%s3 + $0x28] sm:$0xff]
  %v247 = vld [vmem:[%s3 + $0x30] sm:$0xff]
  %v248 = vld [vmem:[%s3 + $0x38] sm:$0xff]
  %v249 = vld [vmem:[%s3 + $0x40] sm:$0xff]
  %v250 = vld [vmem:[%s3 + $0x48] sm:$0xff]
  %v251 = vld [vmem:[%s3 + $0x50] sm:$0xff]
  %v252 = vld [vmem:[%s3 + $0x58] sm:$0xff]
  %v253 = vld [vmem:[%s3 + $0x60] sm:$0xff]
  %v254 = vld [vmem:[%s3 + $0x68] sm:$0xff]
  %v255 = vld [vmem:[%s3 + $0x70] sm:$0xff]
  %v256 = vld [vmem:[%s3 + $0x78] sm:$0xff]
  %v257 = vld [vmem:[%s3 + $0x80] sm:$0xff]
  %v258 = vld [vmem:[%s3 + $0x88] sm:$0xff]
  %v259 = vld [vmem:[%s3 + $0x90] sm:$0xff]
  %v260 = vld [vmem:[%s3 + $0x98] sm:$0xff]
  %v261 = vld [vmem:[%s3 + $0xa0] sm:$0xff]
  %v262 = vld [vmem:[%s3 + $0xa8] sm:$0xff]
  %v263 = vld [vmem:[%s3 + $0xb0] sm:$0xff]
  %v264 = vld [vmem:[%s3 + $0xb8] sm:$0xff]
  %v265 = vld [vmem:[%s3 + $0xc0] sm:$0xff]
  %v266 = vld [vmem:[%s3 + $0xc8] sm:$0xff]
  %v267 = vld [vmem:[%s3 + $0xd0] sm:$0xff]
  %v268 = vld [vmem:[%s3 + $0xd8] sm:$0xff]
  %v269 = vld [vmem:[%s3 + $0xe0] sm:$0xff]
  %v270 = vld [vmem:[%s3 + $0xe8] sm:$0xff]
  %v271 = vld [vmem:[%s3 + $0xf0] sm:$0xff]
  %v272 = vld [vmem:[%s3 + $0xf8] sm:$0xff]
  %v273 = vld [vmem:[%s3 + $0x100] sm:$0xff]
  %v274 = vld [vmem:[%s3 + $0x108] sm:$0xff]
  %v275 = vld [vmem:[%s3 + $0x110] sm:$0xff]
  %v276 = vld [vmem:[%s3 + $0x118] sm:$0xff]
  %v277 = vld [vmem:[%s3 + $0x120] sm:$0xff]
  %v278 = vld [vmem:[%s3 + $0x128] sm:$0xff]
  %v279 = vld [vmem:[%s3 + $0x130] sm:$0xff]
  %v280 = vld [vmem:[%s3 + $0x138] sm:$0xff]
  %v281 = vld [vmem:[%s3 + $0x140] sm:$0xff]
  %v282 = vld [vmem:[%s3 + $0x148] sm:$0xff]
  %v283 = vld [vmem:[%s3 + $0x150] sm:$0xf]
  %v284 = vld [vmem:[%s3 + $0x158] sm:$0xf]
  %v285 = vld [vmem:[%s3 + $0x160] sm:$0xf]
  %v286 = vld [vmem:[%s3 + $0x168] sm:$0xf]
  %v287 = vld [vmem:[%s3 + $0x170] sm:$0xf]
  %v288 = vld [vmem:[%s3 + $0x178] sm:$0xf]
  %v289 = vld [vmem:[%s3 + $0x180] sm:$0xf]
  %v290 = vld [vmem:[%s3 + $0x188] sm:$0xf]
  %v291 = vld [vmem:[%s3 + $0x190] sm:$0xf]
  %v292 = vld [vmem:[%s3 + $0x198] sm:$0xf]
  %v293 = vld [vmem:[%s3 + $0x1a0] sm:$0xf]
  %v294 = vld [vmem:[%s3 + $0x1a8] sm:$0xf]
  %v295 = vld [vmem:[%s3 + $0x1b0] sm:$0xf]
  %v296 = vld [vmem:[%s3 + $0x1b8] sm:$0xf]
  %v297 = vmax.f32 %v185, %v241
  %v298 = vmax.f32 %v186, %v242
  %v299 = vmax.f32 %v187, %v243
  %v300 = vmax.f32 %v188, %v244
  %v301 = vmax.f32 %v189, %v245
  %v302 = vmax.f32 %v190, %v246
  %v303 = vmax.f32 %v191, %v247
  %v304 = vmax.f32 %v192, %v248
  %v305 = vmax.f32 %v193, %v249
  %v306 = vmax.f32 %v194, %v250
  %v307 = vmax.f32 %v195, %v251
  %v308 = vmax.f32 %v196, %v252
  %v309 = vmax.f32 %v197, %v253
  %v310 = vmax.f32 %v198, %v254
  %v311 = vmax.f32 %v199, %v255
  %v312 = vmax.f32 %v200, %v256
  %v313 = vmax.f32 %v201, %v257
  %v314 = vmax.f32 %v202, %v258
  %v315 = vmax.f32 %v203, %v259
  %v316 = vmax.f32 %v204, %v260
  %v317 = vmax.f32 %v205, %v261
  %v318 = vmax.f32 %v206, %v262
  %v319 = vmax.f32 %v207, %v263
  %v320 = vmax.f32 %v208, %v264
  %v321 = vmax.f32 %v209, %v265
  %v322 = vmax.f32 %v210, %v266
  %v323 = vmax.f32 %v211, %v267
  %v324 = vmax.f32 %v212, %v268
  %v325 = vmax.f32 %v213, %v269
  %v326 = vmax.f32 %v214, %v270
  %v327 = vmax.f32 %v215, %v271
  %v328 = vmax.f32 %v216, %v272
  %v329 = vmax.f32 %v217, %v273
  %v330 = vmax.f32 %v218, %v274
  %v331 = vmax.f32 %v219, %v275
  %v332 = vmax.f32 %v220, %v276
  %v333 = vmax.f32 %v221, %v277
  %v334 = vmax.f32 %v222, %v278
  %v335 = vmax.f32 %v223, %v279
  %v336 = vmax.f32 %v224, %v280
  %v337 = vmax.f32 %v225, %v281
  %v338 = vmax.f32 %v226, %v282
  %v339 = vmax.f32 %v227, %v283
  %v340 = vmax.f32 %v228, %v284
  %v341 = vmax.f32 %v229, %v285
  %v342 = vmax.f32 %v230, %v286
  %v343 = vmax.f32 %v231, %v287
  %v344 = vmax.f32 %v232, %v288
  %v345 = vmax.f32 %v233, %v289
  %v346 = vmax.f32 %v234, %v290
  %v347 = vmax.f32 %v235, %v291
  %v348 = vmax.f32 %v236, %v292
  %v349 = vmax.f32 %v237, %v293
  %v350 = vmax.f32 %v238, %v294
  %v351 = vmax.f32 %v239, %v295
  %v352 = vmax.f32 %v240, %v296
  %v353 = vmax.f32 %v129, %v297
  %v354 = vmax.f32 %v130, %v298
  %v355 = vmax.f32 %v131, %v299
  %v356 = vmax.f32 %v132, %v300
  %v357 = vmax.f32 %v133, %v301
  %v358 = vmax.f32 %v134, %v302
  %v359 = vmax.f32 %v135, %v303
  %v360 = vmax.f32 %v136, %v304
  %v361 = vmax.f32 %v137, %v305
  %v362 = vmax.f32 %v138, %v306
  %v363 = vmax.f32 %v139, %v307
  %v364 = vmax.f32 %v140, %v308
  %v365 = vmax.f32 %v141, %v309
  %v366 = vmax.f32 %v142, %v310
  %v367 = vmax.f32 %v143, %v311
  %v368 = vmax.f32 %v144, %v312
  %v369 = vmax.f32 %v145, %v313
  %v370 = vmax.f32 %v146, %v314
  %v371 = vmax.f32 %v147, %v315
  %v372 = vmax.f32 %v148, %v316
  %v373 = vmax.f32 %v149, %v317
  %v374 = vmax.f32 %v150, %v318
  %v375 = vmax.f32 %v151, %v319
  %v376 = vmax.f32 %v152, %v320
  %v377 = vmax.f32 %v153, %v321
  %v378 = vmax.f32 %v154, %v322
  %v379 = vmax.f32 %v155, %v323
  %v380 = vmax.f32 %v156, %v324
  %v381 = vmax.f32 %v157, %v325
  %v382 = vmax.f32 %v158, %v326
  %v383 = vmax.f32 %v159, %v327
  %v384 = vmax.f32 %v160, %v328
  %v385 = vmax.f32 %v161, %v329
  %v386 = vmax.f32 %v162, %v330
  %v387 = vmax.f32 %v163, %v331
  %v388 = vmax.f32 %v164, %v332
  %v389 = vmax.f32 %v165, %v333
  %v390 = vmax.f32 %v166, %v334
  %v391 = vmax.f32 %v167, %v335
  %v392 = vmax.f32 %v168, %v336
  %v393 = vmax.f32 %v169, %v337
  %v394 = vmax.f32 %v170, %v338
  %v395 = vmax.f32 %v171, %v339
  %v396 = vmax.f32 %v172, %v340
  %v397 = vmax.f32 %v173, %v341
  %v398 = vmax.f32 %v174, %v342
  %v399 = vmax.f32 %v175, %v343
  %v400 = vmax.f32 %v176, %v344
  %v401 = vmax.f32 %v177, %v345
  %v402 = vmax.f32 %v178, %v346
  %v403 = vmax.f32 %v179, %v347
  %v404 = vmax.f32 %v180, %v348
  %v405 = vmax.f32 %v181, %v349
  %v406 = vmax.f32 %v182, %v350
  %v407 = vmax.f32 %v183, %v351
  %v408 = vmax.f32 %v184, %v352
  %409 = vst [vmem:[%s4] sm:$0xff] %v353
  %410 = vst [vmem:[%s4 + $0x8] sm:$0xff] %v354
  %411 = vst [vmem:[%s4 + $0x10] sm:$0xff] %v355
  %412 = vst [vmem:[%s4 + $0x18] sm:$0xff] %v356
  %413 = vst [vmem:[%s4 + $0x20] sm:$0xff] %v357
  %414 = vst [vmem:[%s4 + $0x28] sm:$0xff] %v358
  %415 = vst [vmem:[%s4 + $0x30] sm:$0xff] %v359
  %416 = vst [vmem:[%s4 + $0x38] sm:$0xff] %v360
  %417 = vst [vmem:[%s4 + $0x40] sm:$0xff] %v361
  %418 = vst [vmem:[%s4 + $0x48] sm:$0xff] %v362
  %419 = vst [vmem:[%s4 + $0x50] sm:$0xff] %v363
  %420 = vst [vmem:[%s4 + $0x58] sm:$0xff] %v364
  %421 = vst [vmem:[%s4 + $0x60] sm:$0xff] %v365
  %422 = vst [vmem:[%s4 + $0x68] sm:$0xff] %v366
  %423 = vst [vmem:[%s4 + $0x70] sm:$0xff] %v367
  %424 = vst [vmem:[%s4 + $0x78] sm:$0xff] %v368
  %425 = vst [vmem:[%s4 + $0x80] sm:$0xff] %v369
  %426 = vst [vmem:[%s4 + $0x88] sm:$0xff] %v370
  %427 = vst [vmem:[%s4 + $0x90] sm:$0xff] %v371
  %428 = vst [vmem:[%s4 + $0x98] sm:$0xff] %v372
  %429 = vst [vmem:[%s4 + $0xa0] sm:$0xff] %v373
  %430 = vst [vmem:[%s4 + $0xa8] sm:$0xff] %v374
  %431 = vst [vmem:[%s4 + $0xb0] sm:$0xff] %v375
  %432 = vst [vmem:[%s4 + $0xb8] sm:$0xff] %v376
  %433 = vst [vmem:[%s4 + $0xc0] sm:$0xff] %v377
  %434 = vst [vmem:[%s4 + $0xc8] sm:$0xff] %v378
  %435 = vst [vmem:[%s4 + $0xd0] sm:$0xff] %v379
  %436 = vst [vmem:[%s4 + $0xd8] sm:$0xff] %v380
  %437 = vst [vmem:[%s4 + $0xe0] sm:$0xff] %v381
  %438 = vst [vmem:[%s4 + $0xe8] sm:$0xff] %v382
  %439 = vst [vmem:[%s4 + $0xf0] sm:$0xff] %v383
  %440 = vst [vmem:[%s4 + $0xf8] sm:$0xff] %v384
  %441 = vst [vmem:[%s4 + $0x100] sm:$0xff] %v385
  %442 = vst [vmem:[%s4 + $0x108] sm:$0xff] %v386
  %443 = vst [vmem:[%s4 + $0x110] sm:$0xff] %v387
  %444 = vst [vmem:[%s4 + $0x118] sm:$0xff] %v388
  %445 = vst [vmem:[%s4 + $0x120] sm:$0xff] %v389
  %446 = vst [vmem:[%s4 + $0x128] sm:$0xff] %v390
  %447 = vst [vmem:[%s4 + $0x130] sm:$0xff] %v391
  %448 = vst [vmem:[%s4 + $0x138] sm:$0xff] %v392
  %449 = vst [vmem:[%s4 + $0x140] sm:$0xff] %v393
  %450 = vst [vmem:[%s4 + $0x148] sm:$0xff] %v394
  %451 = vst [vmem:[%s4 + $0x150] sm:$0xf] %v395
  %452 = vst [vmem:[%s4 + $0x158] sm:$0xf] %v396
  %453 = vst [vmem:[%s4 + $0x160] sm:$0xf] %v397
  %454 = vst [vmem:[%s4 + $0x168] sm:$0xf] %v398
  %455 = vst [vmem:[%s4 + $0x170] sm:$0xf] %v399
  %456 = vst [vmem:[%s4 + $0x178] sm:$0xf] %v400
  %457 = vst [vmem:[%s4 + $0x180] sm:$0xf] %v401
  %458 = vst [vmem:[%s4 + $0x188] sm:$0xf] %v402
  %459 = vst [vmem:[%s4 + $0x190] sm:$0xf] %v403
  %460 = vst [vmem:[%s4 + $0x198] sm:$0xf] %v404
  %461 = vst [vmem:[%s4 + $0x1a0] sm:$0xf] %v405
  %462 = vst [vmem:[%s4 + $0x1a8] sm:$0xf] %v406
  %463 = vst [vmem:[%s4 + $0x1b0] sm:$0xf] %v407
  %464 = vst [vmem:[%s4 + $0x1b8] sm:$0xf] %v408
  // Predicated region
  $region18: #{cnn_cifar_forward.6} parent=0 // pred_check
    _
  $region19: #{cnn_cifar_forward.6} parent=0 // pred_check_branch
    %466 = sbr.rel (0) target = $region21
  $region20: #{cnn_cifar_forward.6} parent=0 // pred_region
    _
  $region21: #{cnn_cifar_forward.6} parent=0 // pred_fallthru
    _
  // Predicated region
  $region22: #{cnn_cifar_forward.6} parent=0 // pred_check
    _
  $region23: #{cnn_cifar_forward.6} parent=0 // pred_check_branch
    %468 = sbr.rel (0) target = $region25
  $region24: #{cnn_cifar_forward.6} parent=0 // pred_region
    _
  $region25: #{cnn_cifar_forward.6} parent=0 // pred_fallthru
    _

// kernel: cnn_cifar_forward.7
$region0: #{cnn_cifar_forward.7}
  #allocation0 [shape = 'u32[]', space=smem, size = 0x4, offset = 0x4, fixed_abs, tag = 'smem constant byte address 0x4 - core index']
  #allocation1 [shape = 'u32[144,128]{1,0:T(1,128)}', space=vmem, size = 0x12000, scoped, tag = 'internal scratch']
  %s0 = inlined_call_operand.vmem [shape: bf16[200,150], index: 0, kind: input, shape index: {}]
  %s1 = inlined_call_operand.vmem [shape: bf16[150,128], index: 1, kind: input, shape index: {}]
  %s2 = inlined_call_operand.vmem [shape: f32[1,128], index: 2, kind: input, shape index: {}]
  %s3 = inlined_call_operand.vmem [shape: f32[200,128], index: 3, kind: output, shape index: {}]
  %s4 = sld [smem:[#allocation0]]
  $region22: #{cnn_cifar_forward.7} parent=0
    _
  %s6 = ssub.s32 1, %s4
  %s7 = scalar_select 0, %s6, %s4
  // Predicated region
  $region2: #{cnn_cifar_forward.7} parent=0 // pred_check
    _
  $region3: #{cnn_cifar_forward.7} parent=0 // pred_check_branch
    %9 = sbr.rel (0) target = $region5
  $region4: #{cnn_cifar_forward.7} parent=0 // pred_region
    _
  $region5: #{cnn_cifar_forward.7} parent=0 // pred_fallthru
    _
  // Predicated region
  $region6: #{cnn_cifar_forward.7} parent=0 // pred_check
    _
  $region7: #{cnn_cifar_forward.7} parent=0 // pred_check_branch
    %11 = sbr.rel (0) target = $region9
  $region8: #{cnn_cifar_forward.7} parent=0 // pred_region
    _
  $region9: #{cnn_cifar_forward.7} parent=0 // pred_fallthru
    _
  // Predicated region
  $region10: #{cnn_cifar_forward.7} parent=0 // pred_check
    _
  $region11: #{cnn_cifar_forward.7} parent=0 // pred_check_branch
    %13 = sbr.rel (0) target = $region13
  $region12: #{cnn_cifar_forward.7} parent=0 // pred_region
    _
  $region13: #{cnn_cifar_forward.7} parent=0 // pred_fallthru
    _
  %v15 = vld [vmem:[%s0] sm:$0xff]
  %v16 = vld [vmem:[%s0 + $0x8] sm:$0xff]
  %v17 = vld [vmem:[%s0 + $0x10] sm:$0xff]
  %v18 = vld [vmem:[%s0 + $0x18] sm:$0xff]
  %v19 = vld [vmem:[%s0 + $0x20] sm:$0xff]
  %v20 = vld [vmem:[%s0 + $0x28] sm:$0xff]
  %v21 = vld [vmem:[%s0 + $0x30] sm:$0xff]
  %v22 = vld [vmem:[%s0 + $0x38] sm:$0xff]
  %v23 = vld [vmem:[%s0 + $0x40] sm:$0xff]
  %v24 = vld [vmem:[%s0 + $0x48] sm:$0xff]
  %v25 = vld [vmem:[%s0 + $0x50] sm:$0xff]
  %v26 = vld [vmem:[%s0 + $0x58] sm:$0xff]
  %v27 = vld [vmem:[%s0 + $0x60] sm:$0xff]
  %v28 = vld [vmem:[%s0 + $0x68] sm:$0xff]
  %v29 = vld [vmem:[%s0 + $0x70] sm:$0xff]
  %v30 = vld [vmem:[%s0 + $0x78] sm:$0xff]
  %v31 = vld [vmem:[%s0 + $0x80] sm:$0xff]
  %v32 = vld [vmem:[%s0 + $0x88] sm:$0xff]
  %v33 = vld [vmem:[%s0 + $0x90] sm:$0xff]
  %v34 = vld [vmem:[%s0 + $0x98] sm:$0xff]
  %v35 = vld [vmem:[%s0 + $0xa0] sm:$0xff]
  %v36 = vld [vmem:[%s0 + $0xa8] sm:$0xff]
  %v37 = vld [vmem:[%s0 + $0xb0] sm:$0xff]
  %v38 = vld [vmem:[%s0 + $0xb8] sm:$0xff]
  %v39 = vld [vmem:[%s0 + $0xc0] sm:$0xff]
  %v40 = vld [vmem:[%s1] sm:$0xf]
  %v41 = vld [vmem:[%s1 + $0x4] sm:$0xf]
  %v42 = vld [vmem:[%s1 + $0x8] sm:$0xf]
  %v43 = vld [vmem:[%s1 + $0xc] sm:$0xf]
  %v44 = vld [vmem:[%s1 + $0x10] sm:$0xf]
  %v45 = vld [vmem:[%s1 + $0x14] sm:$0xf]
  %v46 = vld [vmem:[%s1 + $0x18] sm:$0xf]
  %v47 = vld [vmem:[%s1 + $0x1c] sm:$0xf]
  %v48 = vld [vmem:[%s1 + $0x20] sm:$0xf]
  %v49 = vld [vmem:[%s1 + $0x24] sm:$0xf]
  %v50 = vld [vmem:[%s1 + $0x28] sm:$0xf]
  %v51 = vld [vmem:[%s1 + $0x2c] sm:$0xf]
  %v52 = vld [vmem:[%s1 + $0x30] sm:$0xf]
  %v53 = vld [vmem:[%s1 + $0x34] sm:$0xf]
  %v54 = vld [vmem:[%s1 + $0x38] sm:$0xf]
  %v55 = vld [vmem:[%s1 + $0x3c] sm:$0xf]
  %v56 = vld [vmem:[%s1 + $0x40] sm:$0xf]
  %v57 = vld [vmem:[%s1 + $0x44] sm:$0xf]
  %v58 = vld [vmem:[%s1 + $0x48] sm:$0x7]
  %v59 = vld [vmem:[%s2] sm:$0x1]
  %v61 = vlaneseq
  %v62 = vshrl.u32 %v61, 7
  %v63 = vsub.s32 0, %v62
  %v64 = vrot.slane %v59, %v63
  %v91 = vunpack.c.l.b16 %v15
  %v92 = vunpack.c.h.b16 %v15
  %v93 = vunpack.c.l.b16 %v16
  %v94 = vunpack.c.h.b16 %v16
  %v95 = vunpack.c.l.b16 %v17
  %v96 = vunpack.c.h.b16 %v17
  %v97 = vunpack.c.l.b16 %v18
  %v98 = vunpack.c.h.b16 %v18
  %v99 = vunpack.c.l.b16 %v19
  %v100 = vunpack.c.h.b16 %v19
  %v101 = vunpack.c.l.b16 %v20
  %v102 = vunpack.c.h.b16 %v20
  %v103 = vunpack.c.l.b16 %v21
  %v104 = vunpack.c.h.b16 %v21
  %v105 = vunpack.c.l.b16 %v22
  %v106 = vunpack.c.h.b16 %v22
  %v107 = vunpack.c.l.b16 %v23
  %v108 = vunpack.c.h.b16 %v23
  %v109 = vunpack.c.l.b16 %v24
  %v110 = vunpack.c.h.b16 %v24
  %v111 = vunpack.c.l.b16 %v25
  %v112 = vunpack.c.h.b16 %v25
  %v113 = vunpack.c.l.b16 %v26
  %v114 = vunpack.c.h.b16 %v26
  %v115 = vunpack.c.l.b16 %v27
  %v116 = vunpack.c.h.b16 %v27
  %v117 = vunpack.c.l.b16 %v28
  %v118 = vunpack.c.h.b16 %v28
  %v119 = vunpack.c.l.b16 %v29
  %v120 = vunpack.c.h.b16 %v29
  %v121 = vunpack.c.l.b16 %v30
  %v122 = vunpack.c.h.b16 %v30
  %v123 = vunpack.c.l.b16 %v31
  %v124 = vunpack.c.h.b16 %v31
  %v125 = vunpack.c.l.b16 %v32
  %v126 = vunpack.c.h.b16 %v32
  %v127 = vunpack.c.l.b16 %v33
  %v128 = vunpack.c.h.b16 %v33
  %v129 = vunpack.c.l.b16 %v34
  %v130 = vunpack.c.h.b16 %v34
  %v131 = vunpack.c.l.b16 %v35
  %v132 = vunpack.c.h.b16 %v35
  %v133 = vunpack.c.l.b16 %v36
  %v134 = vunpack.c.h.b16 %v36
  %v135 = vunpack.c.l.b16 %v37
  %v136 = vunpack.c.h.b16 %v37
  %v137 = vunpack.c.l.b16 %v38
  %v138 = vunpack.c.h.b16 %v38
  %v139 = vunpack.c.l.b16 %v39
  %v140 = vunpack.c.h.b16 %v39
  %v141 = vpack.c.b16 %v93, %v91
  %v142 = vpack.c.b16 %v94, %v92
  %v143 = vpack.c.b16 %v97, %v95
  %v144 = vpack.c.b16 %v98, %v96
  %v145 = vpack.c.b16 %v101, %v99
  %v146 = vpack.c.b16 %v102, %v100
  %v147 = vpack.c.b16 %v105, %v103
  %v148 = vpack.c.b16 %v106, %v104
  %v149 = vpack.c.b16 %v109, %v107
  %v150 = vpack.c.b16 %v110, %v108
  %v151 = vpack.c.b16 %v113, %v111
  %v152 = vpack.c.b16 %v114, %v112
  %v153 = vpack.c.b16 %v117, %v115
  %v154 = vpack.c.b16 %v118, %v116
  %v155 = vpack.c.b16 %v121, %v119
  %v156 = vpack.c.b16 %v122, %v120
  %v157 = vpack.c.b16 %v125, %v123
  %v158 = vpack.c.b16 %v126, %v124
  %v159 = vpack.c.b16 %v129, %v127
  %v160 = vpack.c.b16 %v130, %v128
  %v161 = vpack.c.b16 %v133, %v131
  %v162 = vpack.c.b16 %v134, %v132
  %v163 = vpack.c.b16 %v137, %v135
  %v164 = vpack.c.b16 %v138, %v136
  %v165 = vpack.c.b16 %v139, %v139
  %v166 = vpack.c.b16 %v140, %v140
  %v199 = vunpack.c.l.b16 %v40
  %v200 = vunpack.c.l.b16 %v41
  %v201 = vunpack.c.l.b16 %v42
  %v202 = vunpack.c.l.b16 %v43
  %v203 = vunpack.c.l.b16 %v44
  %v204 = vunpack.c.l.b16 %v45
  %v205 = vunpack.c.l.b16 %v46
  %v206 = vunpack.c.l.b16 %v47
  %v207 = vunpack.c.l.b16 %v48
  %v208 = vunpack.c.l.b16 %v49
  %v209 = vunpack.c.l.b16 %v50
  %v210 = vunpack.c.l.b16 %v51
  %v211 = vunpack.c.l.b16 %v52
  %v212 = vunpack.c.l.b16 %v53
  %v213 = vunpack.c.l.b16 %v54
  %v214 = vunpack.c.l.b16 %v55
  %v215 = vunpack.c.l.b16 %v56
  %v216 = vunpack.c.l.b16 %v57
  %v217 = vunpack.c.l.b16 %v58
  %v218 = vpack.c.b16 %v200, %v199
  %v219 = vpack.c.b16 %v202, %v201
  %v220 = vpack.c.b16 %v204, %v203
  %v221 = vpack.c.b16 %v206, %v205
  %v222 = vpack.c.b16 %v208, %v207
  %v223 = vpack.c.b16 %v210, %v209
  %v224 = vpack.c.b16 %v212, %v211
  %v225 = vpack.c.b16 %v214, %v213
  %v226 = vpack.c.b16 %v216, %v215
  %v227 = vpack.c.b16 %v217, %v217
  %vm237 = vcmask 179200
  %v239 = vsel %vm237, %v142, 0
  %v242 = vsel %vm237, %v144, 0
  %v245 = vsel %vm237, %v146, 0
  %v248 = vsel %vm237, %v148, 0
  %v251 = vsel %vm237, %v150, 0
  %v254 = vsel %vm237, %v152, 0
  %v257 = vsel %vm237, %v154, 0
  %v260 = vsel %vm237, %v156, 0
  %v263 = vsel %vm237, %v158, 0
  %v266 = vsel %vm237, %v160, 0
  %v269 = vsel %vm237, %v162, 0
  %v272 = vsel %vm237, %v164, 0
  %v275 = vsel %vm237, %v166, 0
  %vm277 = vcmask 1042432
  %v279 = vsel %vm277, %v227, 0
  %281 = vmatprep.subr.bf16.mxu0 0
  %282 = vmatpush1.bf16.msra.mxu0 %v218
  %283 = vmatprep.subr.bf16.mxu0 0
  %284 = vmatpush1.bf16.msra.mxu0 %v219
  %285 = vmatprep.subr.bf16.mxu0 0
  %286 = vmatpush1.bf16.msra.mxu0 %v220
  %287 = vmatprep.subr.bf16.mxu0 0
  %288 = vmatpush1.bf16.msra.mxu0 %v221
  %289 = vmatprep.subr.bf16.mxu0 0
  %290 = vmatpush1.bf16.msra.mxu0 %v222
  %291 = vmatprep.subr.bf16.mxu0 0
  %292 = vmatpush1.bf16.msra.mxu0 %v223
  %293 = vmatprep.subr.bf16.mxu0 0
  %294 = vmatpush1.bf16.msra.mxu0 %v224
  %295 = vmatprep.subr.bf16.mxu0 0
  %296 = vmatpush1.bf16.msra.mxu0 %v225
  %297 = vmatprep.subr.bf16.mxu0 0
  %298 = vmatpush1.bf16.msra.mxu0 %v226
  %299 = vmatprep.subr.bf16.mxu0 0
  %300 = vmatpush1.bf16.msra.mxu0 %v279
  %301 = vmatprep.subr.bf16.mxu0 0
  %302 = vmatpush1.bf16.msra.mxu0 0
  %303 = vmatprep.subr.bf16.mxu0 0
  %304 = vmatpush1.bf16.msra.mxu0 0
  %305 = vmatprep.subr.bf16.mxu0 0
  %306 = vmatpush1.bf16.msra.mxu0 0
  %307 = vmatprep.subr.bf16.mxu0 0
  %308 = vmatpush1.bf16.msra.mxu0 0
  %309 = vmatprep.subr.bf16.mxu0 0
  %310 = vmatpush1.bf16.msra.mxu0 0
  %311 = vmatprep.subr.bf16.mxu0 0
  %312 = vmatpush1.bf16.msra.mxu0 0
  %313 = vmatprep.mubr.bf16.mxu0 %v239
  %314 = vmatmul.mubr.bf16.gmra.mrb[0].mxu0 %v141
  %v315 = vpop.f32.mrb[0].mxu0
  %v316 = vadd.f32 %v64, %v315
  %v317 = vpop.f32.mrb[0].mxu0
  %v318 = vpop.f32.mrb[0].mxu0
  %v319 = vadd.f32 %v64, %v318
  %v320 = vpop.f32.mrb[0].mxu0
  %321 = vmatprep.mubr.bf16.mxu0 %v242
  %322 = vmatmul.mubr.bf16.gmra.mrb[0].mxu0 %v143
  %v323 = vpop.f32.mrb[0].mxu0
  %v324 = vadd.f32 %v64, %v323
  %v325 = vpop.f32.mrb[0].mxu0
  %v326 = vpop.f32.mrb[0].mxu0
  %v327 = vadd.f32 %v64, %v326
  %v328 = vpop.f32.mrb[0].mxu0
  %329 = vmatprep.mubr.bf16.mxu0 %v245
  %330 = vmatmul.mubr.bf16.gmra.mrb[0].mxu0 %v145
  %v331 = vpop.f32.mrb[0].mxu0
  %v332 = vadd.f32 %v64, %v331
  %v333 = vpop.f32.mrb[0].mxu0
  %v334 = vpop.f32.mrb[0].mxu0
  %v335 = vadd.f32 %v64, %v334
  %v336 = vpop.f32.mrb[0].mxu0
  %337 = vmatprep.mubr.bf16.mxu0 %v248
  %338 = vmatmul.mubr.bf16.gmra.mrb[0].mxu0 %v147
  %v339 = vpop.f32.mrb[0].mxu0
  %v340 = vadd.f32 %v64, %v339
  %v341 = vpop.f32.mrb[0].mxu0
  %v342 = vpop.f32.mrb[0].mxu0
  %v343 = vadd.f32 %v64, %v342
  %v344 = vpop.f32.mrb[0].mxu0
  %345 = vmatprep.mubr.bf16.mxu0 %v251
  %346 = vmatmul.mubr.bf16.gmra.mrb[0].mxu0 %v149
  %v347 = vpop.f32.mrb[0].mxu0
  %v348 = vadd.f32 %v64, %v347
  %v349 = vpop.f32.mrb[0].mxu0
  %v350 = vpop.f32.mrb[0].mxu0
  %v351 = vadd.f32 %v64, %v350
  %v352 = vpop.f32.mrb[0].mxu0
  %353 = vmatprep.mubr.bf16.mxu0 %v254
  %354 = vmatmul.mubr.bf16.gmra.mrb[0].mxu0 %v151
  %v355 = vpop.f32.mrb[0].mxu0
  %v356 = vadd.f32 %v64, %v355
  %v357 = vpop.f32.mrb[0].mxu0
  %v358 = vpop.f32.mrb[0].mxu0
  %v359 = vadd.f32 %v64, %v358
  %v360 = vpop.f32.mrb[0].mxu0
  %361 = vmatprep.mubr.bf16.mxu0 %v257
  %362 = vmatmul.mubr.bf16.gmra.mrb[0].mxu0 %v153
  %v363 = vpop.f32.mrb[0].mxu0
  %v364 = vadd.f32 %v64, %v363
  %v365 = vpop.f32.mrb[0].mxu0
  %v366 = vpop.f32.mrb[0].mxu0
  %v367 = vadd.f32 %v64, %v366
  %v368 = vpop.f32.mrb[0].mxu0
  %369 = vmatprep.mubr.bf16.mxu0 %v260
  %370 = vmatmul.mubr.bf16.gmra.mrb[0].mxu0 %v155
  %v371 = vpop.f32.mrb[0].mxu0
  %v372 = vadd.f32 %v64, %v371
  %v373 = vpop.f32.mrb[0].mxu0
  %v374 = vpop.f32.mrb[0].mxu0
  %v375 = vadd.f32 %v64, %v374
  %v376 = vpop.f32.mrb[0].mxu0
  %377 = vmatprep.mubr.bf16.mxu0 %v263
  %378 = vmatmul.mubr.bf16.gmra.mrb[0].mxu0 %v157
  %v379 = vpop.f32.mrb[0].mxu0
  %v380 = vadd.f32 %v64, %v379
  %v381 = vpop.f32.mrb[0].mxu0
  %v382 = vpop.f32.mrb[0].mxu0
  %v383 = vadd.f32 %v64, %v382
  %v384 = vpop.f32.mrb[0].mxu0
  %385 = vmatprep.mubr.bf16.mxu0 %v266
  %386 = vmatmul.mubr.bf16.gmra.mrb[0].mxu0 %v159
  %v387 = vpop.f32.mrb[0].mxu0
  %v388 = vadd.f32 %v64, %v387
  %v389 = vpop.f32.mrb[0].mxu0
  %v390 = vpop.f32.mrb[0].mxu0
  %v391 = vadd.f32 %v64, %v390
  %v392 = vpop.f32.mrb[0].mxu0
  %393 = vmatprep.mubr.bf16.mxu0 %v269
  %394 = vmatmul.mubr.bf16.gmra.mrb[0].mxu0 %v161
  %v395 = vpop.f32.mrb[0].mxu0
  %v396 = vadd.f32 %v64, %v395
  %v397 = vpop.f32.mrb[0].mxu0
  %v398 = vpop.f32.mrb[0].mxu0
  %v399 = vadd.f32 %v64, %v398
  %v400 = vpop.f32.mrb[0].mxu0
  %401 = vmatprep.mubr.bf16.mxu0 %v272
  %402 = vmatmul.mubr.bf16.gmra.mrb[0].mxu0 %v163
  %v403 = vpop.f32.mrb[0].mxu0
  %v404 = vadd.f32 %v64, %v403
  %v405 = vpop.f32.mrb[0].mxu0
  %v406 = vpop.f32.mrb[0].mxu0
  %v407 = vadd.f32 %v64, %v406
  %v408 = vpop.f32.mrb[0].mxu0
  %409 = vmatprep.mubr.bf16.mxu0 %v275
  %410 = vmatmul.mubr.bf16.gmra.mrb[0].mxu0 %v165
  %v411 = vpop.f32.mrb[0].mxu0
  %v412 = vadd.f32 %v64, %v411
  %v413 = vpop.f32.mrb[0].mxu0
  %v414 = vpop.f32.mrb[0].mxu0
  %v415 = vpop.f32.mrb[0].mxu0
  %416 = vdwg.mxu0
  %v417 = vmax.f32 %v316, 0.0
  %v418 = vmax.f32 %v319, 0.0
  %v419 = vmax.f32 %v324, 0.0
  %v420 = vmax.f32 %v327, 0.0
  %v421 = vmax.f32 %v332, 0.0
  %v422 = vmax.f32 %v335, 0.0
  %v423 = vmax.f32 %v340, 0.0
  %v424 = vmax.f32 %v343, 0.0
  %v425 = vmax.f32 %v348, 0.0
  %v426 = vmax.f32 %v351, 0.0
  %v427 = vmax.f32 %v356, 0.0
  %v428 = vmax.f32 %v359, 0.0
  %v429 = vmax.f32 %v364, 0.0
  %v430 = vmax.f32 %v367, 0.0
  %v431 = vmax.f32 %v372, 0.0
  %v432 = vmax.f32 %v375, 0.0
  %v433 = vmax.f32 %v380, 0.0
  %v434 = vmax.f32 %v383, 0.0
  %v435 = vmax.f32 %v388, 0.0
  %v436 = vmax.f32 %v391, 0.0
  %v437 = vmax.f32 %v396, 0.0
  %v438 = vmax.f32 %v399, 0.0
  %v439 = vmax.f32 %v404, 0.0
  %v440 = vmax.f32 %v407, 0.0
  %v441 = vmax.f32 %v412, 0.0
  %442 = vst [vmem:[%s3] sm:$0xff] %v417
  %443 = vst [vmem:[%s3 + $0x8] sm:$0xff] %v418
  %444 = vst [vmem:[%s3 + $0x10] sm:$0xff] %v419
  %445 = vst [vmem:[%s3 + $0x18] sm:$0xff] %v420
  %446 = vst [vmem:[%s3 + $0x20] sm:$0xff] %v421
  %447 = vst [vmem:[%s3 + $0x28] sm:$0xff] %v422
  %448 = vst [vmem:[%s3 + $0x30] sm:$0xff] %v423
  %449 = vst [vmem:[%s3 + $0x38] sm:$0xff] %v424
  %450 = vst [vmem:[%s3 + $0x40] sm:$0xff] %v425
  %451 = vst [vmem:[%s3 + $0x48] sm:$0xff] %v426
  %452 = vst [vmem:[%s3 + $0x50] sm:$0xff] %v427
  %453 = vst [vmem:[%s3 + $0x58] sm:$0xff] %v428
  %454 = vst [vmem:[%s3 + $0x60] sm:$0xff] %v429
  %455 = vst [vmem:[%s3 + $0x68] sm:$0xff] %v430
  %456 = vst [vmem:[%s3 + $0x70] sm:$0xff] %v431
  %457 = vst [vmem:[%s3 + $0x78] sm:$0xff] %v432
  %458 = vst [vmem:[%s3 + $0x80] sm:$0xff] %v433
  %459 = vst [vmem:[%s3 + $0x88] sm:$0xff] %v434
  %460 = vst [vmem:[%s3 + $0x90] sm:$0xff] %v435
  %461 = vst [vmem:[%s3 + $0x98] sm:$0xff] %v436
  %462 = vst [vmem:[%s3 + $0xa0] sm:$0xff] %v437
  %463 = vst [vmem:[%s3 + $0xa8] sm:$0xff] %v438
  %464 = vst [vmem:[%s3 + $0xb0] sm:$0xff] %v439
  %465 = vst [vmem:[%s3 + $0xb8] sm:$0xff] %v440
  %466 = vst [vmem:[%s3 + $0xc0] sm:$0xff] %v441
  // Predicated region
  $region14: #{cnn_cifar_forward.7} parent=0 // pred_check
    _
  $region15: #{cnn_cifar_forward.7} parent=0 // pred_check_branch
    %468 = sbr.rel (0) target = $region17
  $region16: #{cnn_cifar_forward.7} parent=0 // pred_region
    _
  $region17: #{cnn_cifar_forward.7} parent=0 // pred_fallthru
    _
  // Predicated region
  $region18: #{cnn_cifar_forward.7} parent=0 // pred_check
    _
  $region19: #{cnn_cifar_forward.7} parent=0 // pred_check_branch
    %470 = sbr.rel (0) target = $region21
  $region20: #{cnn_cifar_forward.7} parent=0 // pred_region
    _
  $region21: #{cnn_cifar_forward.7} parent=0 // pred_fallthru
    _

// kernel: cnn_cifar_forward.8
$region0: #{cnn_cifar_forward.8}
  #allocation0 [shape = 'u32[]', space=smem, size = 0x4, offset = 0x4, fixed_abs, tag = 'smem constant byte address 0x4 - core index']
  #allocation1 [shape = 'u32[144,128]{1,0:T(1,128)}', space=vmem, size = 0x12000, scoped, tag = 'internal scratch']
  %s0 = inlined_call_operand.vmem [shape: f32[10,640], index: 0, kind: input, shape index: {}]
  %s1 = inlined_call_operand.vmem [shape: f32[10,640], index: 1, kind: input, shape index: {}]
  %s2 = inlined_call_operand.vmem [shape: f32[10,640], index: 2, kind: input, shape index: {}]
  %s3 = inlined_call_operand.vmem [shape: f32[10,640], index: 3, kind: input, shape index: {}]
  %s4 = inlined_call_operand.vmem [shape: f32[10,640], index: 4, kind: output, shape index: {}]
  %s5 = sld [smem:[#allocation0]]
  $region26: #{cnn_cifar_forward.8} parent=0
    _
  %s7 = ssub.s32 1, %s5
  %s8 = scalar_select 0, %s7, %s5
  // Predicated region
  $region2: #{cnn_cifar_forward.8} parent=0 // pred_check
    _
  $region3: #{cnn_cifar_forward.8} parent=0 // pred_check_branch
    %10 = sbr.rel (0) target = $region5
  $region4: #{cnn_cifar_forward.8} parent=0 // pred_region
    _
  $region5: #{cnn_cifar_forward.8} parent=0 // pred_fallthru
    _
  // Predicated region
  $region6: #{cnn_cifar_forward.8} parent=0 // pred_check
    _
  $region7: #{cnn_cifar_forward.8} parent=0 // pred_check_branch
    %12 = sbr.rel (0) target = $region9
  $region8: #{cnn_cifar_forward.8} parent=0 // pred_region
    _
  $region9: #{cnn_cifar_forward.8} parent=0 // pred_fallthru
    _
  // Predicated region
  $region10: #{cnn_cifar_forward.8} parent=0 // pred_check
    _
  $region11: #{cnn_cifar_forward.8} parent=0 // pred_check_branch
    %14 = sbr.rel (0) target = $region13
  $region12: #{cnn_cifar_forward.8} parent=0 // pred_region
    _
  $region13: #{cnn_cifar_forward.8} parent=0 // pred_fallthru
    _
  // Predicated region
  $region14: #{cnn_cifar_forward.8} parent=0 // pred_check
    _
  $region15: #{cnn_cifar_forward.8} parent=0 // pred_check_branch
    %16 = sbr.rel (0) target = $region17
  $region16: #{cnn_cifar_forward.8} parent=0 // pred_region
    _
  $region17: #{cnn_cifar_forward.8} parent=0 // pred_fallthru
    _
  %v17 = vld [vmem:[%s0] sm:$0xff]
  %v18 = vld [vmem:[%s0 + $0x8] sm:$0xff]
  %v19 = vld [vmem:[%s0 + $0x10] sm:$0xff]
  %v20 = vld [vmem:[%s0 + $0x18] sm:$0xff]
  %v21 = vld [vmem:[%s0 + $0x20] sm:$0xff]
  %v22 = vld [vmem:[%s0 + $0x28] sm:$0x3]
  %v23 = vld [vmem:[%s0 + $0x30] sm:$0x3]
  %v24 = vld [vmem:[%s0 + $0x38] sm:$0x3]
  %v25 = vld [vmem:[%s0 + $0x40] sm:$0x3]
  %v26 = vld [vmem:[%s0 + $0x48] sm:$0x3]
  %v27 = vld [vmem:[%s1] sm:$0xff]
  %v28 = vld [vmem:[%s1 + $0x8] sm:$0xff]
  %v29 = vld [vmem:[%s1 + $0x10] sm:$0xff]
  %v30 = vld [vmem:[%s1 + $0x18] sm:$0xff]
  %v31 = vld [vmem:[%s1 + $0x20] sm:$0xff]
  %v32 = vld [vmem:[%s1 + $0x28] sm:$0x3]
  %v33 = vld [vmem:[%s1 + $0x30] sm:$0x3]
  %v34 = vld [vmem:[%s1 + $0x38] sm:$0x3]
  %v35 = vld [vmem:[%s1 + $0x40] sm:$0x3]
  %v36 = vld [vmem:[%s1 + $0x48] sm:$0x3]
  %v37 = vmax.f32 %v17, %v27
  %v38 = vmax.f32 %v18, %v28
  %v39 = vmax.f32 %v19, %v29
  %v40 = vmax.f32 %v20, %v30
  %v41 = vmax.f32 %v21, %v31
  %v42 = vmax.f32 %v22, %v32
  %v43 = vmax.f32 %v23, %v33
  %v44 = vmax.f32 %v24, %v34
  %v45 = vmax.f32 %v25, %v35
  %v46 = vmax.f32 %v26, %v36
  %v47 = vld [vmem:[%s2] sm:$0xff]
  %v48 = vld [vmem:[%s2 + $0x8] sm:$0xff]
  %v49 = vld [vmem:[%s2 + $0x10] sm:$0xff]
  %v50 = vld [vmem:[%s2 + $0x18] sm:$0xff]
  %v51 = vld [vmem:[%s2 + $0x20] sm:$0xff]
  %v52 = vld [vmem:[%s2 + $0x28] sm:$0x3]
  %v53 = vld [vmem:[%s2 + $0x30] sm:$0x3]
  %v54 = vld [vmem:[%s2 + $0x38] sm:$0x3]
  %v55 = vld [vmem:[%s2 + $0x40] sm:$0x3]
  %v56 = vld [vmem:[%s2 + $0x48] sm:$0x3]
  %v57 = vld [vmem:[%s3] sm:$0xff]
  %v58 = vld [vmem:[%s3 + $0x8] sm:$0xff]
  %v59 = vld [vmem:[%s3 + $0x10] sm:$0xff]
  %v60 = vld [vmem:[%s3 + $0x18] sm:$0xff]
  %v61 = vld [vmem:[%s3 + $0x20] sm:$0xff]
  %v62 = vld [vmem:[%s3 + $0x28] sm:$0x3]
  %v63 = vld [vmem:[%s3 + $0x30] sm:$0x3]
  %v64 = vld [vmem:[%s3 + $0x38] sm:$0x3]
  %v65 = vld [vmem:[%s3 + $0x40] sm:$0x3]
  %v66 = vld [vmem:[%s3 + $0x48] sm:$0x3]
  %v67 = vmax.f32 %v47, %v57
  %v68 = vmax.f32 %v48, %v58
  %v69 = vmax.f32 %v49, %v59
  %v70 = vmax.f32 %v50, %v60
  %v71 = vmax.f32 %v51, %v61
  %v72 = vmax.f32 %v52, %v62
  %v73 = vmax.f32 %v53, %v63
  %v74 = vmax.f32 %v54, %v64
  %v75 = vmax.f32 %v55, %v65
  %v76 = vmax.f32 %v56, %v66
  %v77 = vmax.f32 %v37, %v67
  %v78 = vmax.f32 %v38, %v68
  %v79 = vmax.f32 %v39, %v69
  %v80 = vmax.f32 %v40, %v70
  %v81 = vmax.f32 %v41, %v71
  %v82 = vmax.f32 %v42, %v72
  %v83 = vmax.f32 %v43, %v73
  %v84 = vmax.f32 %v44, %v74
  %v85 = vmax.f32 %v45, %v75
  %v86 = vmax.f32 %v46, %v76
  %87 = vst [vmem:[%s4] sm:$0xff] %v77
  %88 = vst [vmem:[%s4 + $0x8] sm:$0xff] %v78
  %89 = vst [vmem:[%s4 + $0x10] sm:$0xff] %v79
  %90 = vst [vmem:[%s4 + $0x18] sm:$0xff] %v80
  %91 = vst [vmem:[%s4 + $0x20] sm:$0xff] %v81
  %92 = vst [vmem:[%s4 + $0x28] sm:$0x3] %v82
  %93 = vst [vmem:[%s4 + $0x30] sm:$0x3] %v83
  %94 = vst [vmem:[%s4 + $0x38] sm:$0x3] %v84
  %95 = vst [vmem:[%s4 + $0x40] sm:$0x3] %v85
  %96 = vst [vmem:[%s4 + $0x48] sm:$0x3] %v86
  // Predicated region
  $region18: #{cnn_cifar_forward.8} parent=0 // pred_check
    _
  $region19: #{cnn_cifar_forward.8} parent=0 // pred_check_branch
    %98 = sbr.rel (0) target = $region21
  $region20: #{cnn_cifar_forward.8} parent=0 // pred_region
    _
  $region21: #{cnn_cifar_forward.8} parent=0 // pred_fallthru
    _
  // Predicated region
  $region22: #{cnn_cifar_forward.8} parent=0 // pred_check
    _
  $region23: #{cnn_cifar_forward.8} parent=0 // pred_check_branch
    %100 = sbr.rel (0) target = $region25
  $region24: #{cnn_cifar_forward.8} parent=0 // pred_region
    _
  $region25: #{cnn_cifar_forward.8} parent=0 // pred_fallthru
    _

// kernel: cnn_cifar_forward.9
$region0: #{cnn_cifar_forward.9}
  #allocation0 [shape = 'u32[]', space=smem, size = 0x4, offset = 0x4, fixed_abs, tag = 'smem constant byte address 0x4 - core index']
  #allocation1 [shape = 'u32[144,128]{1,0:T(1,128)}', space=vmem, size = 0x12000, scoped, tag = 'internal scratch']
  %s0 = inlined_call_operand.vmem [shape: bf16[2,400], index: 0, kind: input, shape index: {}]
  %s1 = inlined_call_operand.vmem [shape: bf16[400,128], index: 1, kind: input, shape index: {}]
  %s2 = inlined_call_operand.vmem [shape: f32[1,128], index: 2, kind: input, shape index: {}]
  %s3 = inlined_call_operand.vmem [shape: bf16[128,128], index: 3, kind: input, shape index: {}]
  %s4 = inlined_call_operand.vmem [shape: f32[1,128], index: 4, kind: input, shape index: {}]
  %s5 = inlined_call_operand.vmem [shape: bf16[128,128], index: 5, kind: input, shape index: {}]
  %s6 = inlined_call_operand.vmem [shape: f32[1,128], index: 6, kind: input, shape index: {}]
  %s7 = inlined_call_operand.hbm [shape: f32[2,128], index: 7, kind: output, shape index: {0}]
  %s8 = inlined_call_operand.hbm [shape: f32[2,128], index: 8, kind: output, shape index: {1}]
  %9 = xla_tuple %s7, %s8
  %s10 = sld [smem:[#allocation0]]
  $region46: #{cnn_cifar_forward.9} parent=0
    _
  %s12 = ssub.s32 1, %s10
  %s13 = scalar_select 0, %s12, %s10
  $region1: #{cnn_cifar_forward.9} parent=0
    #allocation2 [shape = 'u8[1024]{0}', space=vmem, size = 0x400, scoped, tag = 'output window, operand 0, single buffered']
    #allocation3 [shape = 's32[1]{0}', space=sflag, size = 0x4, scoped, tag = 'scoped memory for cnn_cifar_forward.9']
    #allocation4 [shape = 'u8[1024]{0}', space=vmem, size = 0x400, scoped, tag = 'output window, operand 1, single buffered']
    #allocation5 [shape = 's32[1]{0}', space=sflag, size = 0x4, scoped, tag = 'scoped memory for cnn_cifar_forward.9']
    %14 = vsyncpa [#allocation3], 0
    %15 = vsyncpa [#allocation5], 0
    // Predicated region
    $region2: #{cnn_cifar_forward.9} parent=1 // pred_check
      _
    $region3: #{cnn_cifar_forward.9} parent=1 // pred_check_branch
      %17 = sbr.rel (0) target = $region5
    $region4: #{cnn_cifar_forward.9} parent=1 // pred_region
      _
    $region5: #{cnn_cifar_forward.9} parent=1 // pred_fallthru
      _
    // Predicated region
    $region6: #{cnn_cifar_forward.9} parent=1 // pred_check
      _
    $region7: #{cnn_cifar_forward.9} parent=1 // pred_check_branch
      %19 = sbr.rel (0) target = $region9
    $region8: #{cnn_cifar_forward.9} parent=1 // pred_region
      _
    $region9: #{cnn_cifar_forward.9} parent=1 // pred_fallthru
      _
    // Predicated region
    $region10: #{cnn_cifar_forward.9} parent=1 // pred_check
      _
    $region11: #{cnn_cifar_forward.9} parent=1 // pred_check_branch
      %21 = sbr.rel (0) target = $region13
    $region12: #{cnn_cifar_forward.9} parent=1 // pred_region
      _
    $region13: #{cnn_cifar_forward.9} parent=1 // pred_fallthru
      _
    // Predicated region
    $region14: #{cnn_cifar_forward.9} parent=1 // pred_check
      _
    $region15: #{cnn_cifar_forward.9} parent=1 // pred_check_branch
      %23 = sbr.rel (0) target = $region17
    $region16: #{cnn_cifar_forward.9} parent=1 // pred_region
      _
    $region17: #{cnn_cifar_forward.9} parent=1 // pred_fallthru
      _
    // Predicated region
    $region18: #{cnn_cifar_forward.9} parent=1 // pred_check
      _
    $region19: #{cnn_cifar_forward.9} parent=1 // pred_check_branch
      %25 = sbr.rel (0) target = $region21
    $region20: #{cnn_cifar_forward.9} parent=1 // pred_region
      _
    $region21: #{cnn_cifar_forward.9} parent=1 // pred_fallthru
      _
    // Predicated region
    $region22: #{cnn_cifar_forward.9} parent=1 // pred_check
      _
    $region23: #{cnn_cifar_forward.9} parent=1 // pred_check_branch
      %27 = sbr.rel (0) target = $region25
    $region24: #{cnn_cifar_forward.9} parent=1 // pred_region
      _
    $region25: #{cnn_cifar_forward.9} parent=1 // pred_fallthru
      _
    // Predicated region
    $region26: #{cnn_cifar_forward.9} parent=1 // pred_check
      _
    $region27: #{cnn_cifar_forward.9} parent=1 // pred_check_branch
      %29 = sbr.rel (0) target = $region29
    $region28: #{cnn_cifar_forward.9} parent=1 // pred_region
      _
    $region29: #{cnn_cifar_forward.9} parent=1 // pred_fallthru
      _
    %v31 = vld [vmem:[%s0] sm:$0xf]
    %v32 = vld [vmem:[%s1] sm:$0xf]
    %v33 = vld [vmem:[%s1 + $0x4] sm:$0xf]
    %v34 = vld [vmem:[%s1 + $0x8] sm:$0xf]
    %v35 = vld [vmem:[%s1 + $0xc] sm:$0xf]
    %v36 = vld [vmem:[%s1 + $0x10] sm:$0xf]
    %v37 = vld [vmem:[%s1 + $0x14] sm:$0xf]
    %v38 = vld [vmem:[%s1 + $0x18] sm:$0xf]
    %v39 = vld [vmem:[%s1 + $0x1c] sm:$0xf]
    %v40 = vld [vmem:[%s1 + $0x20] sm:$0xf]
    %v41 = vld [vmem:[%s1 + $0x24] sm:$0xf]
    %v42 = vld [vmem:[%s1 + $0x28] sm:$0xf]
    %v43 = vld [vmem:[%s1 + $0x2c] sm:$0xf]
    %v44 = vld [vmem:[%s1 + $0x30] sm:$0xf]
    %v45 = vld [vmem:[%s1 + $0x34] sm:$0xf]
    %v46 = vld [vmem:[%s1 + $0x38] sm:$0xf]
    %v47 = vld [vmem:[%s1 + $0x3c] sm:$0xf]
    %v48 = vld [vmem:[%s1 + $0x40] sm:$0xf]
    %v49 = vld [vmem:[%s1 + $0x44] sm:$0xf]
    %v50 = vld [vmem:[%s1 + $0x48] sm:$0xf]
    %v51 = vld [vmem:[%s1 + $0x4c] sm:$0xf]
    %v52 = vld [vmem:[%s1 + $0x50] sm:$0xf]
    %v53 = vld [vmem:[%s1 + $0x54] sm:$0xf]
    %v54 = vld [vmem:[%s1 + $0x58] sm:$0xf]
    %v55 = vld [vmem:[%s1 + $0x5c] sm:$0xf]
    %v56 = vld [vmem:[%s1 + $0x60] sm:$0xf]
    %v57 = vld [vmem:[%s1 + $0x64] sm:$0xf]
    %v58 = vld [vmem:[%s1 + $0x68] sm:$0xf]
    %v59 = vld [vmem:[%s1 + $0x6c] sm:$0xf]
    %v60 = vld [vmem:[%s1 + $0x70] sm:$0xf]
    %v61 = vld [vmem:[%s1 + $0x74] sm:$0xf]
    %v62 = vld [vmem:[%s1 + $0x78] sm:$0xf]
    %v63 = vld [vmem:[%s1 + $0x7c] sm:$0xf]
    %v64 = vld [vmem:[%s1 + $0x80] sm:$0xf]
    %v65 = vld [vmem:[%s1 + $0x84] sm:$0xf]
    %v66 = vld [vmem:[%s1 + $0x88] sm:$0xf]
    %v67 = vld [vmem:[%s1 + $0x8c] sm:$0xf]
    %v68 = vld [vmem:[%s1 + $0x90] sm:$0xf]
    %v69 = vld [vmem:[%s1 + $0x94] sm:$0xf]
    %v70 = vld [vmem:[%s1 + $0x98] sm:$0xf]
    %v71 = vld [vmem:[%s1 + $0x9c] sm:$0xf]
    %v72 = vld [vmem:[%s1 + $0xa0] sm:$0xf]
    %v73 = vld [vmem:[%s1 + $0xa4] sm:$0xf]
    %v74 = vld [vmem:[%s1 + $0xa8] sm:$0xf]
    %v75 = vld [vmem:[%s1 + $0xac] sm:$0xf]
    %v76 = vld [vmem:[%s1 + $0xb0] sm:$0xf]
    %v77 = vld [vmem:[%s1 + $0xb4] sm:$0xf]
    %v78 = vld [vmem:[%s1 + $0xb8] sm:$0xf]
    %v79 = vld [vmem:[%s1 + $0xbc] sm:$0xf]
    %v80 = vld [vmem:[%s1 + $0xc0] sm:$0xf]
    %v81 = vld [vmem:[%s1 + $0xc4] sm:$0xf]
    %v82 = vld [vmem:[%s2] sm:$0x1]
    %v84 = vlaneseq
    %v85 = vshrl.u32 %v84, 7
    %v86 = vsub.s32 0, %v85
    %v87 = vrot.slane %v82, %v86
    %v91 = vunpack.c.l.s4 1966171168
    %v92 = vunpack.c.0.s8 %v91
    %v93 = vlaneseq
    %v94 = vshrl.u32 %v93, 7
    %v95 = vsub.s32 %v92, %v94
    %v96 = vrot.slane %v31, %v95
    %v97 = vcombine.high %v96, %v96
    %v99 = vunpack.c.l.s4 1966171168
    %v100 = vunpack.c.0.s8 %v99
    %v101 = vlaneseq
    %v102 = vshrl.u32 %v101, 7
    %v103 = vsub.s32 %v100, %v102
    %v104 = vrot.slane %v96, %v103
    %v106 = vunpack.c.l.s4 1966171168
    %v107 = vunpack.c.0.s8 %v106
    %v108 = vlaneseq
    %v109 = vshrl.u32 %v108, 7
    %v110 = vsub.s32 %v107, %v109
    %v111 = vrot.slane %v97, %v110
    %v112 = vcombine.high %v104, %v104
    %v113 = vcombine.high %v111, %v111
    %v167 = vunpack.c.l.b16 %v32
    %v168 = vunpack.c.l.b16 %v33
    %v169 = vunpack.c.l.b16 %v34
    %v170 = vunpack.c.l.b16 %v35
    %v171 = vunpack.c.l.b16 %v36
    %v172 = vunpack.c.l.b16 %v37
    %v173 = vunpack.c.l.b16 %v38
    %v174 = vunpack.c.l.b16 %v39
    %v175 = vunpack.c.l.b16 %v40
    %v176 = vunpack.c.l.b16 %v41
    %v177 = vunpack.c.l.b16 %v42
    %v178 = vunpack.c.l.b16 %v43
    %v179 = vunpack.c.l.b16 %v44
    %v180 = vunpack.c.l.b16 %v45
    %v181 = vunpack.c.l.b16 %v46
    %v182 = vunpack.c.l.b16 %v47
    %v183 = vunpack.c.l.b16 %v48
    %v184 = vunpack.c.l.b16 %v49
    %v185 = vunpack.c.l.b16 %v50
    %v186 = vunpack.c.l.b16 %v51
    %v187 = vunpack.c.l.b16 %v52
    %v188 = vunpack.c.l.b16 %v53
    %v189 = vunpack.c.l.b16 %v54
    %v190 = vunpack.c.l.b16 %v55
    %v191 = vunpack.c.l.b16 %v56
    %v192 = vunpack.c.l.b16 %v57
    %v193 = vunpack.c.l.b16 %v58
    %v194 = vunpack.c.l.b16 %v59
    %v195 = vunpack.c.l.b16 %v60
    %v196 = vunpack.c.l.b16 %v61
    %v197 = vunpack.c.l.b16 %v62
    %v198 = vunpack.c.l.b16 %v63
    %v199 = vunpack.c.l.b16 %v64
    %v200 = vunpack.c.l.b16 %v65
    %v201 = vunpack.c.l.b16 %v66
    %v202 = vunpack.c.l.b16 %v67
    %v203 = vunpack.c.l.b16 %v68
    %v204 = vunpack.c.l.b16 %v69
    %v205 = vunpack.c.l.b16 %v70
    %v206 = vunpack.c.l.b16 %v71
    %v207 = vunpack.c.l.b16 %v72
    %v208 = vunpack.c.l.b16 %v73
    %v209 = vunpack.c.l.b16 %v74
    %v210 = vunpack.c.l.b16 %v75
    %v211 = vunpack.c.l.b16 %v76
    %v212 = vunpack.c.l.b16 %v77
    %v213 = vunpack.c.l.b16 %v78
    %v214 = vunpack.c.l.b16 %v79
    %v215 = vunpack.c.l.b16 %v80
    %v216 = vunpack.c.l.b16 %v81
    %v217 = vpack.c.b16 %v168, %v167
    %v218 = vpack.c.b16 %v170, %v169
    %v219 = vpack.c.b16 %v172, %v171
    %v220 = vpack.c.b16 %v174, %v173
    %v221 = vpack.c.b16 %v176, %v175
    %v222 = vpack.c.b16 %v178, %v177
    %v223 = vpack.c.b16 %v180, %v179
    %v224 = vpack.c.b16 %v182, %v181
    %v225 = vpack.c.b16 %v184, %v183
    %v226 = vpack.c.b16 %v186, %v185
    %v227 = vpack.c.b16 %v188, %v187
    %v228 = vpack.c.b16 %v190, %v189
    %v229 = vpack.c.b16 %v192, %v191
    %v230 = vpack.c.b16 %v194, %v193
    %v231 = vpack.c.b16 %v196, %v195
    %v232 = vpack.c.b16 %v198, %v197
    %v233 = vpack.c.b16 %v200, %v199
    %v234 = vpack.c.b16 %v202, %v201
    %v235 = vpack.c.b16 %v204, %v203
    %v236 = vpack.c.b16 %v206, %v205
    %v237 = vpack.c.b16 %v208, %v207
    %v238 = vpack.c.b16 %v210, %v209
    %v239 = vpack.c.b16 %v212, %v211
    %v240 = vpack.c.b16 %v214, %v213
    %v241 = vpack.c.b16 %v216, %v215
    %vm267 = vcmask 130048
    %v269 = vsel %vm267, %v113, 0
    %271 = vmatprep.subr.bf16.mxu0 0
    %272 = vmatpush1.bf16.msra.mxu0 %v217
    %273 = vmatprep.subr.bf16.mxu0 0
    %274 = vmatpush1.bf16.msra.mxu0 %v218
    %275 = vmatprep.subr.bf16.mxu0 0
    %276 = vmatpush1.bf16.msra.mxu0 %v219
    %277 = vmatprep.subr.bf16.mxu0 0
    %278 = vmatpush1.bf16.msra.mxu0 %v220
    %279 = vmatprep.subr.bf16.mxu0 0
    %280 = vmatpush1.bf16.msra.mxu0 %v221
    %281 = vmatprep.subr.bf16.mxu0 0
    %282 = vmatpush1.bf16.msra.mxu0 %v222
    %283 = vmatprep.subr.bf16.mxu0 0
    %284 = vmatpush1.bf16.msra.mxu0 %v223
    %285 = vmatprep.subr.bf16.mxu0 0
    %286 = vmatpush1.bf16.msra.mxu0 %v224
    %287 = vmatprep.subr.bf16.mxu0 0
    %288 = vmatpush1.bf16.msra.mxu0 %v225
    %289 = vmatprep.subr.bf16.mxu0 0
    %290 = vmatpush1.bf16.msra.mxu0 %v226
    %291 = vmatprep.subr.bf16.mxu0 0
    %292 = vmatpush1.bf16.msra.mxu0 %v227
    %293 = vmatprep.subr.bf16.mxu0 0
    %294 = vmatpush1.bf16.msra.mxu0 %v228
    %295 = vmatprep.subr.bf16.mxu0 0
    %296 = vmatpush1.bf16.msra.mxu0 %v229
    %297 = vmatprep.subr.bf16.mxu0 0
    %298 = vmatpush1.bf16.msra.mxu0 %v230
    %299 = vmatprep.subr.bf16.mxu0 0
    %300 = vmatpush1.bf16.msra.mxu0 %v231
    %301 = vmatprep.subr.bf16.mxu0 0
    %302 = vmatpush1.bf16.msra.mxu0 %v232
    %303 = vmatprep.mubr.bf16.mxu0 %v111
    %304 = vmatmul.mubr.bf16.gmra.mrb[0].mxu0 %v104
    %v305 = vpop.f32.mrb[0].mxu0
    %v306 = vadd.f32 %v87, %v305
    %v307 = vpop.f32.mrb[0].mxu0
    %v308 = vpop.f32.mrb[0].mxu0
    %v309 = vpop.f32.mrb[0].mxu0
    %310 = vdwg.mxu0
    %311 = vmatprep.subr.bf16.mxu0 0
    %312 = vmatpush1.bf16.msra.mxu0 %v233
    %313 = vmatprep.subr.bf16.mxu0 0
    %314 = vmatpush1.bf16.msra.mxu0 %v234
    %315 = vmatprep.subr.bf16.mxu0 0
    %316 = vmatpush1.bf16.msra.mxu0 %v235
    %317 = vmatprep.subr.bf16.mxu0 0
    %318 = vmatpush1.bf16.msra.mxu0 %v236
    %319 = vmatprep.subr.bf16.mxu0 0
    %320 = vmatpush1.bf16.msra.mxu0 %v237
    %321 = vmatprep.subr.bf16.mxu0 0
    %322 = vmatpush1.bf16.msra.mxu0 %v238
    %323 = vmatprep.subr.bf16.mxu0 0
    %324 = vmatpush1.bf16.msra.mxu0 %v239
    %325 = vmatprep.subr.bf16.mxu0 0
    %326 = vmatpush1.bf16.msra.mxu0 %v240
    %327 = vmatprep.subr.bf16.mxu0 0
    %328 = vmatpush1.bf16.msra.mxu0 %v241
    %329 = vmatprep.subr.bf16.mxu0 0
    %330 = vmatpush1.bf16.msra.mxu0 0
    %331 = vmatprep.subr.bf16.mxu0 0
    %332 = vmatpush1.bf16.msra.mxu0 0
    %333 = vmatprep.subr.bf16.mxu0 0
    %334 = vmatpush1.bf16.msra.mxu0 0
    %335 = vmatprep.subr.bf16.mxu0 0
    %336 = vmatpush1.bf16.msra.mxu0 0
    %337 = vmatprep.subr.bf16.mxu0 0
    %338 = vmatpush1.bf16.msra.mxu0 0
    %339 = vmatprep.subr.bf16.mxu0 0
    %340 = vmatpush1.bf16.msra.mxu0 0
    %341 = vmatprep.subr.bf16.mxu0 0
    %342 = vmatpush1.bf16.msra.mxu0 0
    %343 = vmatprep.mubr.bf16.mxu0 %v269
    %344 = vmatmul.mubr.bf16.gmra.mrb[0].mxu0 %v112
    %v345 = vpop.f32.mrb[0].mxu0
    %v346 = vadd.f32 %v306, %v345
    %v347 = vpop.f32.mrb[0].mxu0
    %v348 = vpop.f32.mrb[0].mxu0
    %v349 = vpop.f32.mrb[0].mxu0
    %350 = vdwg.mxu0
    %v351 = vmax.f32 %v346, 0.0
    %v352 = vpack.c.bf16 %v351, %v351
    %v353 = vld [vmem:[%s3] sm:$0xf]
    %v354 = vld [vmem:[%s3 + $0x4] sm:$0xf]
    %v355 = vld [vmem:[%s3 + $0x8] sm:$0xf]
    %v356 = vld [vmem:[%s3 + $0xc] sm:$0xf]
    %v357 = vld [vmem:[%s3 + $0x10] sm:$0xf]
    %v358 = vld [vmem:[%s3 + $0x14] sm:$0xf]
    %v359 = vld [vmem:[%s3 + $0x18] sm:$0xf]
    %v360 = vld [vmem:[%s3 + $0x1c] sm:$0xf]
    %v361 = vld [vmem:[%s3 + $0x20] sm:$0xf]
    %v362 = vld [vmem:[%s3 + $0x24] sm:$0xf]
    %v363 = vld [vmem:[%s3 + $0x28] sm:$0xf]
    %v364 = vld [vmem:[%s3 + $0x2c] sm:$0xf]
    %v365 = vld [vmem:[%s3 + $0x30] sm:$0xf]
    %v366 = vld [vmem:[%s3 + $0x34] sm:$0xf]
    %v367 = vld [vmem:[%s3 + $0x38] sm:$0xf]
    %v368 = vld [vmem:[%s3 + $0x3c] sm:$0xf]
    %v369 = vld [vmem:[%s4] sm:$0x1]
    %v371 = vlaneseq
    %v372 = vshrl.u32 %v371, 7
    %v373 = vsub.s32 0, %v372
    %v374 = vrot.slane %v369, %v373
    %v392 = vunpack.c.l.b16 %v353
    %v393 = vunpack.c.l.b16 %v354
    %v394 = vunpack.c.l.b16 %v355
    %v395 = vunpack.c.l.b16 %v356
    %v396 = vunpack.c.l.b16 %v357
    %v397 = vunpack.c.l.b16 %v358
    %v398 = vunpack.c.l.b16 %v359
    %v399 = vunpack.c.l.b16 %v360
    %v400 = vunpack.c.l.b16 %v361
    %v401 = vunpack.c.l.b16 %v362
    %v402 = vunpack.c.l.b16 %v363
    %v403 = vunpack.c.l.b16 %v364
    %v404 = vunpack.c.l.b16 %v365
    %v405 = vunpack.c.l.b16 %v366
    %v406 = vunpack.c.l.b16 %v367
    %v407 = vunpack.c.l.b16 %v368
    %v408 = vpack.c.b16 %v393, %v392
    %v409 = vpack.c.b16 %v395, %v394
    %v410 = vpack.c.b16 %v397, %v396
    %v411 = vpack.c.b16 %v399, %v398
    %v412 = vpack.c.b16 %v401, %v400
    %v413 = vpack.c.b16 %v403, %v402
    %v414 = vpack.c.b16 %v405, %v404
    %v415 = vpack.c.b16 %v407, %v406
    %424 = vmatprep.subr.bf16.mxu0 0
    %425 = vmatpush1.bf16.msra.mxu0 %v408
    %426 = vmatprep.subr.bf16.mxu0 0
    %427 = vmatpush1.bf16.msra.mxu0 %v409
    %428 = vmatprep.subr.bf16.mxu0 0
    %429 = vmatpush1.bf16.msra.mxu0 %v410
    %430 = vmatprep.subr.bf16.mxu0 0
    %431 = vmatpush1.bf16.msra.mxu0 %v411
    %432 = vmatprep.subr.bf16.mxu0 0
    %433 = vmatpush1.bf16.msra.mxu0 %v412
    %434 = vmatprep.subr.bf16.mxu0 0
    %435 = vmatpush1.bf16.msra.mxu0 %v413
    %436 = vmatprep.subr.bf16.mxu0 0
    %437 = vmatpush1.bf16.msra.mxu0 %v414
    %438 = vmatprep.subr.bf16.mxu0 0
    %439 = vmatpush1.bf16.msra.mxu0 %v415
    %440 = vmatprep.subr.bf16.mxu0 0
    %441 = vmatpush1.bf16.msra.mxu0 0
    %442 = vmatprep.subr.bf16.mxu0 0
    %443 = vmatpush1.bf16.msra.mxu0 0
    %444 = vmatprep.subr.bf16.mxu0 0
    %445 = vmatpush1.bf16.msra.mxu0 0
    %446 = vmatprep.subr.bf16.mxu0 0
    %447 = vmatpush1.bf16.msra.mxu0 0
    %448 = vmatprep.subr.bf16.mxu0 0
    %449 = vmatpush1.bf16.msra.mxu0 0
    %450 = vmatprep.subr.bf16.mxu0 0
    %451 = vmatpush1.bf16.msra.mxu0 0
    %452 = vmatprep.subr.bf16.mxu0 0
    %453 = vmatpush1.bf16.msra.mxu0 0
    %454 = vmatprep.subr.bf16.mxu0 0
    %455 = vmatpush1.bf16.msra.mxu0 0
    %456 = vmatprep.mubr.bf16.mxu0 0
    %457 = vmatmul.mubr.bf16.gmra.mrb[0].mxu0 %v352
    %v458 = vpop.f32.mrb[0].mxu0
    %v459 = vadd.f32 %v374, %v458
    %v460 = vpop.f32.mrb[0].mxu0
    %v461 = vpop.f32.mrb[0].mxu0
    %v462 = vpop.f32.mrb[0].mxu0
    %463 = vdwg.mxu0
    %v464 = vmax.f32 %v459, 0.0
    %v465 = vpack.c.bf16 %v464, %v464
    %v466 = vld [vmem:[%s5] sm:$0xf]
    %v467 = vld [vmem:[%s5 + $0x4] sm:$0xf]
    %v468 = vld [vmem:[%s5 + $0x8] sm:$0xf]
    %v469 = vld [vmem:[%s5 + $0xc] sm:$0xf]
    %v470 = vld [vmem:[%s5 + $0x10] sm:$0xf]
    %v471 = vld [vmem:[%s5 + $0x14] sm:$0xf]
    %v472 = vld [vmem:[%s5 + $0x18] sm:$0xf]
    %v473 = vld [vmem:[%s5 + $0x1c] sm:$0xf]
    %v474 = vld [vmem:[%s5 + $0x20] sm:$0xf]
    %v475 = vld [vmem:[%s5 + $0x24] sm:$0xf]
    %v476 = vld [vmem:[%s5 + $0x28] sm:$0xf]
    %v477 = vld [vmem:[%s5 + $0x2c] sm:$0xf]
    %v478 = vld [vmem:[%s5 + $0x30] sm:$0xf]
    %v479 = vld [vmem:[%s5 + $0x34] sm:$0xf]
    %v480 = vld [vmem:[%s5 + $0x38] sm:$0xf]
    %v481 = vld [vmem:[%s5 + $0x3c] sm:$0xf]
    %v482 = vld [vmem:[%s6] sm:$0x1]
    %v484 = vlaneseq
    %v485 = vshrl.u32 %v484, 7
    %v486 = vsub.s32 0, %v485
    %v487 = vrot.slane %v482, %v486
    %v505 = vunpack.c.l.b16 %v466
    %v506 = vunpack.c.l.b16 %v467
    %v507 = vunpack.c.l.b16 %v468
    %v508 = vunpack.c.l.b16 %v469
    %v509 = vunpack.c.l.b16 %v470
    %v510 = vunpack.c.l.b16 %v471
    %v511 = vunpack.c.l.b16 %v472
    %v512 = vunpack.c.l.b16 %v473
    %v513 = vunpack.c.l.b16 %v474
    %v514 = vunpack.c.l.b16 %v475
    %v515 = vunpack.c.l.b16 %v476
    %v516 = vunpack.c.l.b16 %v477
    %v517 = vunpack.c.l.b16 %v478
    %v518 = vunpack.c.l.b16 %v479
    %v519 = vunpack.c.l.b16 %v480
    %v520 = vunpack.c.l.b16 %v481
    %v521 = vpack.c.b16 %v506, %v505
    %v522 = vpack.c.b16 %v508, %v507
    %v523 = vpack.c.b16 %v510, %v509
    %v524 = vpack.c.b16 %v512, %v511
    %v525 = vpack.c.b16 %v514, %v513
    %v526 = vpack.c.b16 %v516, %v515
    %v527 = vpack.c.b16 %v518, %v517
    %v528 = vpack.c.b16 %v520, %v519
    %537 = vmatprep.subr.bf16.mxu0 0
    %538 = vmatpush1.bf16.msra.mxu0 %v521
    %539 = vmatprep.subr.bf16.mxu0 0
    %540 = vmatpush1.bf16.msra.mxu0 %v522
    %541 = vmatprep.subr.bf16.mxu0 0
    %542 = vmatpush1.bf16.msra.mxu0 %v523
    %543 = vmatprep.subr.bf16.mxu0 0
    %544 = vmatpush1.bf16.msra.mxu0 %v524
    %545 = vmatprep.subr.bf16.mxu0 0
    %546 = vmatpush1.bf16.msra.mxu0 %v525
    %547 = vmatprep.subr.bf16.mxu0 0
    %548 = vmatpush1.bf16.msra.mxu0 %v526
    %549 = vmatprep.subr.bf16.mxu0 0
    %550 = vmatpush1.bf16.msra.mxu0 %v527
    %551 = vmatprep.subr.bf16.mxu0 0
    %552 = vmatpush1.bf16.msra.mxu0 %v528
    %553 = vmatprep.subr.bf16.mxu0 0
    %554 = vmatpush1.bf16.msra.mxu0 0
    %555 = vmatprep.subr.bf16.mxu0 0
    %556 = vmatpush1.bf16.msra.mxu0 0
    %557 = vmatprep.subr.bf16.mxu0 0
    %558 = vmatpush1.bf16.msra.mxu0 0
    %559 = vmatprep.subr.bf16.mxu0 0
    %560 = vmatpush1.bf16.msra.mxu0 0
    %561 = vmatprep.subr.bf16.mxu0 0
    %562 = vmatpush1.bf16.msra.mxu0 0
    %563 = vmatprep.subr.bf16.mxu0 0
    %564 = vmatpush1.bf16.msra.mxu0 0
    %565 = vmatprep.subr.bf16.mxu0 0
    %566 = vmatpush1.bf16.msra.mxu0 0
    %567 = vmatprep.subr.bf16.mxu0 0
    %568 = vmatpush1.bf16.msra.mxu0 0
    %569 = vmatprep.mubr.bf16.mxu0 0
    %570 = vmatmul.mubr.bf16.gmra.mrb[0].mxu0 %v465
    %v571 = vpop.f32.mrb[0].mxu0
    %v572 = vadd.f32 %v487, %v571
    %v573 = vpop.f32.mrb[0].mxu0
    %v574 = vpop.f32.mrb[0].mxu0
    %v575 = vpop.f32.mrb[0].mxu0
    %576 = vdwg.mxu0
    %v577 = vlaneseq
    %v578 = vand.u32 %v577, 127
    %vm579 = vcmp.lt.s32.totalorder %v578, 10
    %v580 = vsel %vm579, %v572, -3.4028235e+38
    %vm581 = vcmask 1041408
    %v582 = vsel %vm581, %v580, -inf
    %583 = vmax.xlane.f32.xlu0 %v582
    %v584 = vpop.xlane.xlu0 %583
    %v585 = vsub.f32 %v572, %v584
    %v586 = vmul.f32 %v585, 1.442695
    %v587 = vpow.pop %v586
    %v588 = vsel %vm579, %v587, 0.0
    %v589 = vsel %vm581, %v588, 0.0
    %590 = vadd.xlane.f32.xlu0 %v589
    %v591 = vpop.xlane.xlu0 %590
    %v592 = vlog2.pop %v591
    %v593 = vmul.f32 %v592, 0.6931472
    %v594 = vsub.f32 %v585, %v593
    %595 = vst [vmem:[#allocation2] sm:$0x3] %v594
    %596 = vst [vmem:[#allocation4] sm:$0x3] %v351
    // Predicated region
    $region30: #{cnn_cifar_forward.9} parent=1 // pred_check
      _
    $region31: #{cnn_cifar_forward.9} parent=1 // pred_check_branch
      %598 = sbr.rel (0) target = $region33
    $region32: #{cnn_cifar_forward.9} parent=1 // pred_region
      %s600 = ssub.s32 32, 32
      %601 = vsyncadd [#allocation3], %s600
      %s603 = sshll.u32 [#allocation2], 4
      %s604 = int_to_ptr.vmem [resolvable:$true] %s603
      %606 = dma.vmem_to_hbm [thread:$0]  %s604, 32, %s7, [#allocation3]
    $region33: #{cnn_cifar_forward.9} parent=1 // pred_fallthru
      _
    // Predicated region
    $region34: #{cnn_cifar_forward.9} parent=1 // pred_check
      _
    $region35: #{cnn_cifar_forward.9} parent=1 // pred_check_branch
      %608 = sbr.rel (0) target = $region37
    $region36: #{cnn_cifar_forward.9} parent=1 // pred_region
      %s610 = ssub.s32 32, 32
      %611 = vsyncadd [#allocation5], %s610
      %s613 = sshll.u32 [#allocation4], 4
      %s614 = int_to_ptr.vmem [resolvable:$true] %s613
      %616 = dma.vmem_to_hbm [thread:$0]  %s614, 32, %s8, [#allocation5]
    $region37: #{cnn_cifar_forward.9} parent=1 // pred_fallthru
      _
    // Predicated region
    $region38: #{cnn_cifar_forward.9} parent=1 // pred_check
      _
    $region39: #{cnn_cifar_forward.9} parent=1 // pred_check_branch
      %618 = sbr.rel (0) target = $region41
    $region40: #{cnn_cifar_forward.9} parent=1 // pred_region
      %619 = dma.done [#allocation3], 32
    $region41: #{cnn_cifar_forward.9} parent=1 // pred_fallthru
      _
    // Predicated region
    $region42: #{cnn_cifar_forward.9} parent=1 // pred_check
      _
    $region43: #{cnn_cifar_forward.9} parent=1 // pred_check_branch
      %621 = sbr.rel (0) target = $region45
    $region44: #{cnn_cifar_forward.9} parent=1 // pred_region
      %622 = dma.done [#allocation5], 32
    $region45: #{cnn_cifar_forward.9} parent=1 // pred_fallthru
      _
    %623 = vsyncpa [#allocation3], 1
    %624 = vsyncpa [#allocation5], 1

</llo_original>
